<compile_context>
chip_gen: v5e
topology: v5e:2x2
jax: 0.10.0
libtpu: 0.0.40
codegen_flags: <defaults>
</compile_context>

<pallas_src>
import jax
import jax.numpy as jnp
from jax.experimental import pallas as pl
from jax.experimental.pallas import tpu as pltpu

K1 = 64     # block_1 temporal kernel width  (Conv2d(1->8, (1,64)))
K3 = 16     # block_3 temporal kernel width  (depthwise Conv2d(16->16, (1,16)))
POOL = 4    # block_2 AvgPool2d((1,4))
BN_EPS = 1e-5


def _round_up(v, m):
    return ((v + m - 1) // m) * m


def _elu(x):
    # torch.nn.ELU(alpha=1.0); clamp the exp argument so the discarded branch
    # never overflows.
    return jnp.where(x > 0, x, jnp.exp(jnp.minimum(x, 0.0)) - 1.0)


def _make_kernel(Bb, C_pad, T_pad, T2, T2_pad, chunk):
    N = Bb * T_pad

    def kernel(x_ref, w_ref, b_ref, pool_ref, w3_ref, b3_ref, o_ref,
               cols_ref, pooled_ref, zp_ref):
        # x_ref     : [Bb, C_pad, Tp]       f32 zero-padded input (31 left, >=32 right)
        # w_ref     : [16, K1*C_pad]        bf16 fused conv1+BN1+conv2+BN2 weights (k-major)
        # b_ref     : [16, 1]               f32 fused bias
        # pool_ref  : [chunk, chunk//4]     bf16 block-diagonal AvgPool(1,4) matrix
        # w3_ref    : [16, K3]              f32 depthwise taps with BN3 scale folded in
        # b3_ref    : [16, 1]               f32 BN3 bias
        # o_ref     : [Bb, 16, T2_pad]      f32 output
        # cols_ref  : [K1*C_pad, Bb*T_pad]  bf16 im2col scratch
        # pooled_ref: [16, Bb*T2_pad]       f32 pooled activations
        # zp_ref    : [16, T2_pad + K3]     f32 zero-padded buffer for the depthwise conv

        # ---- im2col (bf16): row (k*C_pad + c), col (bb*T_pad + t) <- x[bb, c, t+k] ----
        # TODO(synk): a roll-based Toeplitz build (XLU) would cut im2col vld/vst traffic
        # further on v5e's single store slot.
        for k in range(K1):
            for bb in range(Bb):
                cols_ref[k * C_pad:(k + 1) * C_pad,
                         bb * T_pad:(bb + 1) * T_pad] = (
                    x_ref[bb, :, k:k + T_pad].astype(jnp.bfloat16))

        # ---- block_1 + BN1 + block_2 conv + BN2: ONE bf16 MXU matmul, f32 accumulation ----
        z2 = jnp.dot(w_ref[...], cols_ref[...],
                     preferred_element_type=jnp.float32) + b_ref[...]      # [16, N]
        a2 = _elu(z2)
        # TODO(synk): F.dropout(p=0.25) after block_2 is treated as inference-mode identity.

        # ---- AvgPool2d((1,4)): small block-diagonal matmul per time chunk ----
        # (pool matrix is [chunk, chunk//4] regardless of T; replaces the old O(T^2) matmul)
        for c0 in range(0, N, chunk):
            part = jnp.dot(a2[:, c0:c0 + chunk].astype(jnp.bfloat16),
                           pool_ref[...],
                           preferred_element_type=jnp.float32)             # [16, chunk//4]
            pooled_ref[:, c0 // POOL:(c0 + chunk) // POOL] = part

        # ---- block_3: ZeroPad2d(7,8) + depthwise conv (1,16) + BN3(folded) + ELU ----
        zp_ref[...] = jnp.zeros_like(zp_ref)
        w3 = w3_ref[...]
        b3 = b3_ref[...]
        for bb in range(Bb):
            # Only the first T2 pooled columns per batch element are valid; keeping the
            # rest of zp_ref zero reproduces both the ZeroPad2d borders and the
            # padded-time mask, so no garbage leaks into the last valid outputs
            # through the 16-tap halo.
            zp_ref[:, 7:7 + T2] = pooled_ref[:, bb * T2_pad:bb * T2_pad + T2]
            acc3 = jnp.zeros((16, T2_pad), jnp.float32)
            for k in range(K3):
                acc3 = acc3 + w3[:, k:k + 1] * zp_ref[:, k:k + T2_pad]
            # TODO(synk): the final F.dropout(p=0.25) is also treated as inference-mode identity.
            o_ref[bb] = _elu(acc3 + b3)

    return kernel


def patch_embedding_forward(x, params):
    """x: [B, 1, C, T] float32 (PyTorch NCHW). Returns [B, T//4, 16] float32."""
    w1, s1, b1, w2, s2, b2, w3, s3, b3 = params
    B, one, C, T = x.shape
    assert one == 1
    T2 = T // POOL

    # lane / sublane friendly padded sizes (time only up to the next multiple of 128)
    T_pad = _round_up(max(T, 1), 128)
    T2_pad = T_pad // POOL
    C_pad = _round_up(C, 16)                 # multiple of 16 -> clean bf16 sublane packing
    Tp = _round_up(T_pad + K1 - 1, 128)      # zero-padded input width

    # batch blocking: stack Bb batches along the matmul N axis (chosen from a VMEM budget)
    per_batch_bytes = K1 * C_pad * T_pad * 2 + C_pad * Tp * 4 + 16 * T_pad
    Bb = int(max(1, min(B, 4, (24 << 20) // max(per_batch_bytes, 1))))
    B_pad = _round_up(B, Bb)
    num_blocks = B_pad // Bb
    N = Bb * T_pad

    # pooling chunk size (must divide N; N is always a multiple of 128)
    chunk = 512 if N % 512 == 0 else (256 if N % 256 == 0 else 128)

    # ---- fold block_1 conv + BN1 + block_2 grouped conv + BN2 into one conv ----
    # output channel o reads block_1 channel o//2 (groups=8, 2 outputs per group)
    s1g, b1g = s1[:, 0], b1[:, 0]
    s2g, b2g = s2[:, 0], b2[:, 0]
    w1_dup = jnp.repeat(w1 * s1g[:, None], 2, axis=0)                      # [16, K1]
    w2p = jnp.pad(w2, ((0, 0), (0, C_pad - C)))                            # [16, C_pad]
    w_eff = (s2g[:, None] * w2p)[:, :, None] * w1_dup[:, None, :]          # [16, C_pad, K1]
    w_eff = jnp.transpose(w_eff, (0, 2, 1)).reshape(16, K1 * C_pad)        # k-major rows
    w_eff = w_eff.astype(jnp.bfloat16)
    b_eff = (s2g * jnp.repeat(b1g, 2) * jnp.sum(w2, axis=1) + b2g)[:, None]  # [16, 1] f32

    # ---- fold BN3 scale into the depthwise conv taps ----
    w3s = (w3 * s3).astype(jnp.float32)                                    # [16, K3]
    b3f = b3.astype(jnp.float32)                                           # [16, 1]

    # ---- block-diagonal AvgPool(1,4) matrix for one time chunk (0.25 exact in bf16) ----
    t_idx = jnp.arange(chunk)[:, None]
    j_idx = jnp.arange(chunk // POOL)[None, :]
    pool_mat = jnp.where(t_idx // POOL == j_idx, 1.0 / POOL, 0.0).astype(jnp.bfloat16)

    # ---- block_1 ZeroPad2d((31,32,0,0)) + channel / batch / lane alignment padding ----
    xpad = jnp.pad(x[:, 0].astype(jnp.float32),
                   ((0, B_pad - B), (0, C_pad - C), (31, Tp - T - 31)))    # [B_pad, C_pad, Tp]

    # ---- VMEM limit from the actual working set (capped for v7x's 64 MiB physical) ----
    resident = (K1 * C_pad * N * 2            # bf16 im2col scratch
                + 16 * Bb * T2_pad * 4        # pooled scratch
                + 16 * (T2_pad + K3) * 4)     # zero-padded block_3 scratch
    streamed = (Bb * C_pad * Tp * 4 + Bb * 16 * T2_pad * 4
                + 16 * K1 * C_pad * 2 + chunk * (chunk // POOL) * 2 + 3 * 16 * 4)
    vmem_limit = int(min(max(resident + 2 * streamed + (4 << 20), 16 << 20), 64 << 20))

    def const_spec(shape):
        return pl.BlockSpec(shape, lambda i: (0,) * len(shape))

    kernel = _make_kernel(Bb, C_pad, T_pad, T2, T2_pad, chunk)

    out = pl.pallas_call(
        kernel,
        out_shape=jax.ShapeDtypeStruct((B_pad, 16, T2_pad), jnp.float32),
        grid=(num_blocks,),
        in_specs=[
            pl.BlockSpec((Bb, C_pad, Tp), lambda i: (i, 0, 0)),
            const_spec((16, K1 * C_pad)),
            const_spec((16, 1)),
            const_spec((chunk, chunk // POOL)),
            const_spec((16, K3)),
            const_spec((16, 1)),
        ],
        out_specs=pl.BlockSpec((Bb, 16, T2_pad), lambda i: (i, 0, 0)),
        scratch_shapes=[
            pltpu.VMEM((K1 * C_pad, N), jnp.bfloat16),       # im2col columns
            pltpu.VMEM((16, Bb * T2_pad), jnp.float32),      # pooled activations
            pltpu.VMEM((16, T2_pad + K3), jnp.float32),      # zero-padded block_3 buffer
        ],
        compiler_params=pltpu.CompilerParams(
            dimension_semantics=("parallel",),
            vmem_limit_bytes=vmem_limit),
    )(xpad, w_eff, b_eff, pool_mat, w3s, b3f)

    # TODO(synk): for very long T add a time-tiling grid axis (63-col input halo,
    # 15-col pooled halo) so the im2col scratch stays bounded under v7x's 64 MiB VMEM.

    # Rearrange('b e (h) (w) -> b (h w) e') with h == 1; drop batch/time alignment padding.
    return jnp.transpose(out[:B, :, :T2], (0, 2, 1))


def init_params(C, key):
    """Deterministic synthetic parameters (eval-mode BN folded to scale/bias)."""
    ks = jax.random.split(key, 15)
    w1 = 0.2 * jax.random.normal(ks[0], (8, K1), jnp.float32)      # Conv2d(1->8, (1,64))
    w2 = 0.5 * jax.random.normal(ks[1], (16, C), jnp.float32)      # Conv2d(8->16, (C,1), groups=8)
    w3 = 0.3 * jax.random.normal(ks[2], (16, K3), jnp.float32)     # Conv2d(16->16, (1,16), groups=16)

    def bn(kg, kb, km, kv, ch):
        gamma = 1.0 + 0.1 * jax.random.normal(kg, (ch, 1), jnp.float32)
        beta = 0.1 * jax.random.normal(kb, (ch, 1), jnp.float32)
        mean = 0.05 * jax.random.normal(km, (ch, 1), jnp.float32)
        var = jax.random.uniform(kv, (ch, 1), jnp.float32, 0.5, 1.5)
        scale = gamma / jnp.sqrt(var + BN_EPS)
        bias = beta - mean * scale
        return scale, bias

    s1, b1 = bn(ks[3], ks[4], ks[5], ks[6], 8)
    s2, b2 = bn(ks[7], ks[8], ks[9], ks[10], 16)
    s3, b3 = bn(ks[11], ks[12], ks[13], ks[14], 16)
    return (w1, s1, b1, w2, s2, b2, w3, s3, b3)


def reference_forward(x, params):
    """Pure-JAX f32 reference with identical (inference-mode) semantics."""
    w1, s1, b1, w2, s2, b2, w3, s3, b3 = params
    B, _, C, T = x.shape
    T2 = T // POOL
    xpad = jnp.pad(x[:, 0], ((0, 0), (0, 0), (31, 32)))                   # [B, C, T+63]
    cols1 = jnp.stack([xpad[..., k:k + T] for k in range(K1)], axis=-1)   # [B, C, T, K1]
    y1 = jnp.einsum('bctk,ok->boct', cols1, w1)                           # [B, 8, C, T]
    z1 = y1 * s1[None, :, :, None] + b1[None, :, :, None]
    z1g = jnp.repeat(z1, 2, axis=1)                                       # [B, 16, C, T]
    y2 = jnp.einsum('bgct,gc->bgt', z1g, w2)                              # [B, 16, T]
    z2 = y2 * s2[None] + b2[None]
    a2 = jnp.where(z2 > 0, z2, jnp.exp(z2) - 1.0)
    p2 = a2.reshape(B, 16, T2, POOL).mean(-1)                             # [B, 16, T2]
    zp = jnp.pad(p2, ((0, 0), (0, 0), (7, 8)))
    cols3 = jnp.stack([zp[..., k:k + T2] for k in range(K3)], axis=-1)    # [B, 16, T2, K3]
    y3 = jnp.einsum('bgtk,gk->bgt', cols3, w3)
    z3 = y3 * s3[None] + b3[None]
    a3 = jnp.where(z3 > 0, z3, jnp.exp(z3) - 1.0)
    return jnp.transpose(a3, (0, 2, 1))                                   # [B, T2, 16]


if __name__ == "__main__":
    B, C, T = 2, 4, 16          # 4 EEG channels, 16 time samples
    key = jax.random.PRNGKey(0)
    kx, kp = jax.random.split(key)
    x = jax.random.normal(kx, (B, 1, C, T), jnp.float32)
    params = init_params(C, kp)

    out = jax.jit(patch_embedding_forward)(x, params)
    out = jax.block_until_ready(out)

    ref = reference_forward(x, params)
    assert out.shape == (B, T // POOL, 16), out.shape
    max_err = float(jnp.max(jnp.abs(out - ref)))
    # bf16 MXU operands with f32 accumulation (per the perf review) -> relaxed tolerance.
    assert jnp.allclose(out, ref, atol=3e-2, rtol=3e-2), max_err
    print("KERNEL_OK")
</pallas_src>

<mosaic_0001>
module attributes {stable_mosaic.version = 11 : i64} {
  func.func @kernel(%arg0: i32, %arg1: memref<2x16x256xf32, #tpu.memory_space<vmem>>, %arg2: memref<16x1024xbf16, #tpu.memory_space<vmem>>, %arg3: memref<16x1xf32, #tpu.memory_space<vmem>>, %arg4: memref<256x64xbf16, #tpu.memory_space<vmem>>, %arg5: memref<16x16xf32, #tpu.memory_space<vmem>>, %arg6: memref<16x1xf32, #tpu.memory_space<vmem>>, %arg7: memref<2x16x32xf32, #tpu.memory_space<vmem>>, %arg8: memref<1024x256xbf16, #tpu.memory_space<vmem>>, %arg9: memref<16x64xf32, #tpu.memory_space<vmem>>, %arg10: memref<16x48xf32, #tpu.memory_space<vmem>>) attributes {dimension_semantics = [#tpu.dimension_semantics<parallel>], iteration_bounds = array<i64: 1>, scalar_prefetch = 0 : i64, scratch_operands = 3 : i64, tpu.core_type = #tpu.core_type<tc>, window_params = [{transform_indices = @transform_0, window_bounds = array<i64: 2, 16, 256>}, {pipeline_mode = #tpu.pipeline_mode<synchronous>, transform_indices = @transform_1, window_bounds = array<i64: 16, 1024>}, {pipeline_mode = #tpu.pipeline_mode<synchronous>, transform_indices = @transform_2, window_bounds = array<i64: 16, 1>}, {pipeline_mode = #tpu.pipeline_mode<synchronous>, transform_indices = @transform_3, window_bounds = array<i64: 256, 64>}, {pipeline_mode = #tpu.pipeline_mode<synchronous>, transform_indices = @transform_4, window_bounds = array<i64: 16, 16>}, {pipeline_mode = #tpu.pipeline_mode<synchronous>, transform_indices = @transform_5, window_bounds = array<i64: 16, 1>}, {transform_indices = @transform_6, window_bounds = array<i64: 2, 16, 32>}]} {
    %c0 = arith.constant 0 : index
    %c0_0 = arith.constant 0 : index
    %c0_1 = arith.constant 0 : index
    %0 = vector.load %arg1[%c0, %c0_0, %c0_1] : memref<2x16x256xf32, #tpu.memory_space<vmem>>, vector<1x16x128xf32>
    %1 = vector.shape_cast %0 : vector<1x16x128xf32> to vector<16x128xf32>
    %2 = arith.truncf %1 : vector<16x128xf32> to vector<16x128xbf16>
    %c0_2 = arith.constant 0 : index
    %c0_3 = arith.constant 0 : index
    %3 = vector.load %arg8[%c0_2, %c0_3] : memref<1024x256xbf16, #tpu.memory_space<vmem>>, vector<16x128xbf16>
    tpu.vector_store %arg8[%c0_2, %c0_3], %2 {strides = array<i32>} : memref<1024x256xbf16, #tpu.memory_space<vmem>>, vector<16x128xbf16>,
    %c1 = arith.constant 1 : index
    %c0_4 = arith.constant 0 : index
    %c0_5 = arith.constant 0 : index
    %4 = vector.load %arg1[%c1, %c0_4, %c0_5] : memref<2x16x256xf32, #tpu.memory_space<vmem>>, vector<1x16x128xf32>
    %5 = vector.shape_cast %4 : vector<1x16x128xf32> to vector<16x128xf32>
    %6 = arith.truncf %5 : vector<16x128xf32> to vector<16x128xbf16>
    %c0_6 = arith.constant 0 : index
    %c128 = arith.constant 128 : index
    %7 = vector.load %arg8[%c0_6, %c128] : memref<1024x256xbf16, #tpu.memory_space<vmem>>, vector<16x128xbf16>
    tpu.vector_store %arg8[%c0_6, %c128], %6 {strides = array<i32>} : memref<1024x256xbf16, #tpu.memory_space<vmem>>, vector<16x128xbf16>,
    %c0_7 = arith.constant 0 : index
    %c0_8 = arith.constant 0 : index
    %c1_9 = arith.constant 1 : index
    %8 = vector.load %arg1[%c0_7, %c0_8, %c1_9] : memref<2x16x256xf32, #tpu.memory_space<vmem>>, vector<1x16x128xf32>
    %9 = vector.shape_cast %8 : vector<1x16x128xf32> to vector<16x128xf32>
    %10 = arith.truncf %9 : vector<16x128xf32> to vector<16x128xbf16>
    %c16 = arith.constant 16 : index
    %c0_10 = arith.constant 0 : index
    %11 = vector.load %arg8[%c16, %c0_10] : memref<1024x256xbf16, #tpu.memory_space<vmem>>, vector<16x128xbf16>
    tpu.vector_store %arg8[%c16, %c0_10], %10 {strides = array<i32>} : memref<1024x256xbf16, #tpu.memory_space<vmem>>, vector<16x128xbf16>,
    %c1_11 = arith.constant 1 : index
    %c0_12 = arith.constant 0 : index
    %c1_13 = arith.constant 1 : index
    %12 = vector.load %arg1[%c1_11, %c0_12, %c1_13] : memref<2x16x256xf32, #tpu.memory_space<vmem>>, vector<1x16x128xf32>
    %13 = vector.shape_cast %12 : vector<1x16x128xf32> to vector<16x128xf32>
    %14 = arith.truncf %13 : vector<16x128xf32> to vector<16x128xbf16>
    %c16_14 = arith.constant 16 : index
    %c128_15 = arith.constant 128 : index
    %15 = vector.load %arg8[%c16_14, %c128_15] : memref<1024x256xbf16, #tpu.memory_space<vmem>>, vector<16x128xbf16>
    tpu.vector_store %arg8[%c16_14, %c128_15], %14 {strides = array<i32>} : memref<1024x256xbf16, #tpu.memory_space<vmem>>, vector<16x128xbf16>,
    %c0_16 = arith.constant 0 : index
    %c0_17 = arith.constant 0 : index
    %c2 = arith.constant 2 : index
    %16 = vector.load %arg1[%c0_16, %c0_17, %c2] : memref<2x16x256xf32, #tpu.memory_space<vmem>>, vector<1x16x128xf32>
    %17 = vector.shape_cast %16 : vector<1x16x128xf32> to vector<16x128xf32>
    %18 = arith.truncf %17 : vector<16x128xf32> to vector<16x128xbf16>
    %c32 = arith.constant 32 : index
    %c0_18 = arith.constant 0 : index
    %19 = vector.load %arg8[%c32, %c0_18] : memref<1024x256xbf16, #tpu.memory_space<vmem>>, vector<16x128xbf16>
    tpu.vector_store %arg8[%c32, %c0_18], %18 {strides = array<i32>} : memref<1024x256xbf16, #tpu.memory_space<vmem>>, vector<16x128xbf16>,
    %c1_19 = arith.constant 1 : index
    %c0_20 = arith.constant 0 : index
    %c2_21 = arith.constant 2 : index
    %20 = vector.load %arg1[%c1_19, %c0_20, %c2_21] : memref<2x16x256xf32, #tpu.memory_space<vmem>>, vector<1x16x128xf32>
    %21 = vector.shape_cast %20 : vector<1x16x128xf32> to vector<16x128xf32>
    %22 = arith.truncf %21 : vector<16x128xf32> to vector<16x128xbf16>
    %c32_22 = arith.constant 32 : index
    %c128_23 = arith.constant 128 : index
    %23 = vector.load %arg8[%c32_22, %c128_23] : memref<1024x256xbf16, #tpu.memory_space<vmem>>, vector<16x128xbf16>
    tpu.vector_store %arg8[%c32_22, %c128_23], %22 {strides = array<i32>} : memref<1024x256xbf16, #tpu.memory_space<vmem>>, vector<16x128xbf16>,
    %c0_24 = arith.constant 0 : index
    %c0_25 = arith.constant 0 : index
    %c3 = arith.constant 3 : index
    %24 = vector.load %arg1[%c0_24, %c0_25, %c3] : memref<2x16x256xf32, #tpu.memory_space<vmem>>, vector<1x16x128xf32>
    %25 = vector.shape_cast %24 : vector<1x16x128xf32> to vector<16x128xf32>
    %26 = arith.truncf %25 : vector<16x128xf32> to vector<16x128xbf16>
    %c48 = arith.constant 48 : index
    %c0_26 = arith.constant 0 : index
    %27 = vector.load %arg8[%c48, %c0_26] : memref<1024x256xbf16, #tpu.memory_space<vmem>>, vector<16x128xbf16>
    tpu.vector_store %arg8[%c48, %c0_26], %26 {strides = array<i32>} : memref<1024x256xbf16, #tpu.memory_space<vmem>>, vector<16x128xbf16>,
    %c1_27 = arith.constant 1 : index
    %c0_28 = arith.constant 0 : index
    %c3_29 = arith.constant 3 : index
    %28 = vector.load %arg1[%c1_27, %c0_28, %c3_29] : memref<2x16x256xf32, #tpu.memory_space<vmem>>, vector<1x16x128xf32>
    %29 = vector.shape_cast %28 : vector<1x16x128xf32> to vector<16x128xf32>
    %30 = arith.truncf %29 : vector<16x128xf32> to vector<16x128xbf16>
    %c48_30 = arith.constant 48 : index
    %c128_31 = arith.constant 128 : index
    %31 = vector.load %arg8[%c48_30, %c128_31] : memref<1024x256xbf16, #tpu.memory_space<vmem>>, vector<16x128xbf16>
    tpu.vector_store %arg8[%c48_30, %c128_31], %30 {strides = array<i32>} : memref<1024x256xbf16, #tpu.memory_space<vmem>>, vector<16x128xbf16>,
    %c0_32 = arith.constant 0 : index
    %c0_33 = arith.constant 0 : index
    %c4 = arith.constant 4 : index
    %32 = vector.load %arg1[%c0_32, %c0_33, %c4] : memref<2x16x256xf32, #tpu.memory_space<vmem>>, vector<1x16x128xf32>
    %33 = vector.shape_cast %32 : vector<1x16x128xf32> to vector<16x128xf32>
    %34 = arith.truncf %33 : vector<16x128xf32> to vector<16x128xbf16>
    %c64 = arith.constant 64 : index
    %c0_34 = arith.constant 0 : index
    %35 = vector.load %arg8[%c64, %c0_34] : memref<1024x256xbf16, #tpu.memory_space<vmem>>, vector<16x128xbf16>
    tpu.vector_store %arg8[%c64, %c0_34], %34 {strides = array<i32>} : memref<1024x256xbf16, #tpu.memory_space<vmem>>, vector<16x128xbf16>,
    %c1_35 = arith.constant 1 : index
    %c0_36 = arith.constant 0 : index
    %c4_37 = arith.constant 4 : index
    %36 = vector.load %arg1[%c1_35, %c0_36, %c4_37] : memref<2x16x256xf32, #tpu.memory_space<vmem>>, vector<1x16x128xf32>
    %37 = vector.shape_cast %36 : vector<1x16x128xf32> to vector<16x128xf32>
    %38 = arith.truncf %37 : vector<16x128xf32> to vector<16x128xbf16>
    %c64_38 = arith.constant 64 : index
    %c128_39 = arith.constant 128 : index
    %39 = vector.load %arg8[%c64_38, %c128_39] : memref<1024x256xbf16, #tpu.memory_space<vmem>>, vector<16x128xbf16>
    tpu.vector_store %arg8[%c64_38, %c128_39], %38 {strides = array<i32>} : memref<1024x256xbf16, #tpu.memory_space<vmem>>, vector<16x128xbf16>,
    %c0_40 = arith.constant 0 : index
    %c0_41 = arith.constant 0 : index
    %c5 = arith.constant 5 : index
    %40 = vector.load %arg1[%c0_40, %c0_41, %c5] : memref<2x16x256xf32, #tpu.memory_space<vmem>>, vector<1x16x128xf32>
    %41 = vector.shape_cast %40 : vector<1x16x128xf32> to vector<16x128xf32>
    %42 = arith.truncf %41 : vector<16x128xf32> to vector<16x128xbf16>
    %c80 = arith.constant 80 : index
    %c0_42 = arith.constant 0 : index
    %43 = vector.load %arg8[%c80, %c0_42] : memref<1024x256xbf16, #tpu.memory_space<vmem>>, vector<16x128xbf16>
    tpu.vector_store %arg8[%c80, %c0_42], %42 {strides = array<i32>} : memref<1024x256xbf16, #tpu.memory_space<vmem>>, vector<16x128xbf16>,
    %c1_43 = arith.constant 1 : index
    %c0_44 = arith.constant 0 : index
    %c5_45 = arith.constant 5 : index
    %44 = vector.load %arg1[%c1_43, %c0_44, %c5_45] : memref<2x16x256xf32, #tpu.memory_space<vmem>>, vector<1x16x128xf32>
    %45 = vector.shape_cast %44 : vector<1x16x128xf32> to vector<16x128xf32>
    %46 = arith.truncf %45 : vector<16x128xf32> to vector<16x128xbf16>
    %c80_46 = arith.constant 80 : index
    %c128_47 = arith.constant 128 : index
    %47 = vector.load %arg8[%c80_46, %c128_47] : memref<1024x256xbf16, #tpu.memory_space<vmem>>, vector<16x128xbf16>
    tpu.vector_store %arg8[%c80_46, %c128_47], %46 {strides = array<i32>} : memref<1024x256xbf16, #tpu.memory_space<vmem>>, vector<16x128xbf16>,
    %c0_48 = arith.constant 0 : index
    %c0_49 = arith.constant 0 : index
    %c6 = arith.constant 6 : index
    %48 = vector.load %arg1[%c0_48, %c0_49, %c6] : memref<2x16x256xf32, #tpu.memory_space<vmem>>, vector<1x16x128xf32>
    %49 = vector.shape_cast %48 : vector<1x16x128xf32> to vector<16x128xf32>
    %50 = arith.truncf %49 : vector<16x128xf32> to vector<16x128xbf16>
    %c96 = arith.constant 96 : index
    %c0_50 = arith.constant 0 : index
    %51 = vector.load %arg8[%c96, %c0_50] : memref<1024x256xbf16, #tpu.memory_space<vmem>>, vector<16x128xbf16>
    tpu.vector_store %arg8[%c96, %c0_50], %50 {strides = array<i32>} : memref<1024x256xbf16, #tpu.memory_space<vmem>>, vector<16x128xbf16>,
    %c1_51 = arith.constant 1 : index
    %c0_52 = arith.constant 0 : index
    %c6_53 = arith.constant 6 : index
    %52 = vector.load %arg1[%c1_51, %c0_52, %c6_53] : memref<2x16x256xf32, #tpu.memory_space<vmem>>, vector<1x16x128xf32>
    %53 = vector.shape_cast %52 : vector<1x16x128xf32> to vector<16x128xf32>
    %54 = arith.truncf %53 : vector<16x128xf32> to vector<16x128xbf16>
    %c96_54 = arith.constant 96 : index
    %c128_55 = arith.constant 128 : index
    %55 = vector.load %arg8[%c96_54, %c128_55] : memref<1024x256xbf16, #tpu.memory_space<vmem>>, vector<16x128xbf16>
    tpu.vector_store %arg8[%c96_54, %c128_55], %54 {strides = array<i32>} : memref<1024x256xbf16, #tpu.memory_space<vmem>>, vector<16x128xbf16>,
    %c0_56 = arith.constant 0 : index
    %c0_57 = arith.constant 0 : index
    %c7 = arith.constant 7 : index
    %56 = vector.load %arg1[%c0_56, %c0_57, %c7] : memref<2x16x256xf32, #tpu.memory_space<vmem>>, vector<1x16x128xf32>
    %57 = vector.shape_cast %56 : vector<1x16x128xf32> to vector<16x128xf32>
    %58 = arith.truncf %57 : vector<16x128xf32> to vector<16x128xbf16>
    %c112 = arith.constant 112 : index
    %c0_58 = arith.constant 0 : index
    %59 = vector.load %arg8[%c112, %c0_58] : memref<1024x256xbf16, #tpu.memory_space<vmem>>, vector<16x128xbf16>
    tpu.vector_store %arg8[%c112, %c0_58], %58 {strides = array<i32>} : memref<1024x256xbf16, #tpu.memory_space<vmem>>, vector<16x128xbf16>,
    %c1_59 = arith.constant 1 : index
    %c0_60 = arith.constant 0 : index
    %c7_61 = arith.constant 7 : index
    %60 = vector.load %arg1[%c1_59, %c0_60, %c7_61] : memref<2x16x256xf32, #tpu.memory_space<vmem>>, vector<1x16x128xf32>
    %61 = vector.shape_cast %60 : vector<1x16x128xf32> to vector<16x128xf32>
    %62 = arith.truncf %61 : vector<16x128xf32> to vector<16x128xbf16>
    %c112_62 = arith.constant 112 : index
    %c128_63 = arith.constant 128 : index
    %63 = vector.load %arg8[%c112_62, %c128_63] : memref<1024x256xbf16, #tpu.memory_space<vmem>>, vector<16x128xbf16>
    tpu.vector_store %arg8[%c112_62, %c128_63], %62 {strides = array<i32>} : memref<1024x256xbf16, #tpu.memory_space<vmem>>, vector<16x128xbf16>,
    %c0_64 = arith.constant 0 : index
    %c0_65 = arith.constant 0 : index
    %c8 = arith.constant 8 : index
    %64 = vector.load %arg1[%c0_64, %c0_65, %c8] : memref<2x16x256xf32, #tpu.memory_space<vmem>>, vector<1x16x128xf32>
    %65 = vector.shape_cast %64 : vector<1x16x128xf32> to vector<16x128xf32>
    %66 = arith.truncf %65 : vector<16x128xf32> to vector<16x128xbf16>
    %c128_66 = arith.constant 128 : index
    %c0_67 = arith.constant 0 : index
    %67 = vector.load %arg8[%c128_66, %c0_67] : memref<1024x256xbf16, #tpu.memory_space<vmem>>, vector<16x128xbf16>
    tpu.vector_store %arg8[%c128_66, %c0_67], %66 {strides = array<i32>} : memref<1024x256xbf16, #tpu.memory_space<vmem>>, vector<16x128xbf16>,
    %c1_68 = arith.constant 1 : index
    %c0_69 = arith.constant 0 : index
    %c8_70 = arith.constant 8 : index
    %68 = vector.load %arg1[%c1_68, %c0_69, %c8_70] : memref<2x16x256xf32, #tpu.memory_space<vmem>>, vector<1x16x128xf32>
    %69 = vector.shape_cast %68 : vector<1x16x128xf32> to vector<16x128xf32>
    %70 = arith.truncf %69 : vector<16x128xf32> to vector<16x128xbf16>
    %c128_71 = arith.constant 128 : index
    %c128_72 = arith.constant 128 : index
    %71 = vector.load %arg8[%c128_71, %c128_72] : memref<1024x256xbf16, #tpu.memory_space<vmem>>, vector<16x128xbf16>
    tpu.vector_store %arg8[%c128_71, %c128_72], %70 {strides = array<i32>} : memref<1024x256xbf16, #tpu.memory_space<vmem>>, vector<16x128xbf16>,
    %c0_73 = arith.constant 0 : index
    %c0_74 = arith.constant 0 : index
    %c9 = arith.constant 9 : index
    %72 = vector.load %arg1[%c0_73, %c0_74, %c9] : memref<2x16x256xf32, #tpu.memory_space<vmem>>, vector<1x16x128xf32>
    %73 = vector.shape_cast %72 : vector<1x16x128xf32> to vector<16x128xf32>
    %74 = arith.truncf %73 : vector<16x128xf32> to vector<16x128xbf16>
    %c144 = arith.constant 144 : index
    %c0_75 = arith.constant 0 : index
    %75 = vector.load %arg8[%c144, %c0_75] : memref<1024x256xbf16, #tpu.memory_space<vmem>>, vector<16x128xbf16>
    tpu.vector_store %arg8[%c144, %c0_75], %74 {strides = array<i32>} : memref<1024x256xbf16, #tpu.memory_space<vmem>>, vector<16x128xbf16>,
    %c1_76 = arith.constant 1 : index
    %c0_77 = arith.constant 0 : index
    %c9_78 = arith.constant 9 : index
    %76 = vector.load %arg1[%c1_76, %c0_77, %c9_78] : memref<2x16x256xf32, #tpu.memory_space<vmem>>, vector<1x16x128xf32>
    %77 = vector.shape_cast %76 : vector<1x16x128xf32> to vector<16x128xf32>
    %78 = arith.truncf %77 : vector<16x128xf32> to vector<16x128xbf16>
    %c144_79 = arith.constant 144 : index
    %c128_80 = arith.constant 128 : index
    %79 = vector.load %arg8[%c144_79, %c128_80] : memref<1024x256xbf16, #tpu.memory_space<vmem>>, vector<16x128xbf16>
    tpu.vector_store %arg8[%c144_79, %c128_80], %78 {strides = array<i32>} : memref<1024x256xbf16, #tpu.memory_space<vmem>>, vector<16x128xbf16>,
    %c0_81 = arith.constant 0 : index
    %c0_82 = arith.constant 0 : index
    %c10 = arith.constant 10 : index
    %80 = vector.load %arg1[%c0_81, %c0_82, %c10] : memref<2x16x256xf32, #tpu.memory_space<vmem>>, vector<1x16x128xf32>
    %81 = vector.shape_cast %80 : vector<1x16x128xf32> to vector<16x128xf32>
    %82 = arith.truncf %81 : vector<16x128xf32> to vector<16x128xbf16>
    %c160 = arith.constant 160 : index
    %c0_83 = arith.constant 0 : index
    %83 = vector.load %arg8[%c160, %c0_83] : memref<1024x256xbf16, #tpu.memory_space<vmem>>, vector<16x128xbf16>
    tpu.vector_store %arg8[%c160, %c0_83], %82 {strides = array<i32>} : memref<1024x256xbf16, #tpu.memory_space<vmem>>, vector<16x128xbf16>,
    %c1_84 = arith.constant 1 : index
    %c0_85 = arith.constant 0 : index
    %c10_86 = arith.constant 10 : index
    %84 = vector.load %arg1[%c1_84, %c0_85, %c10_86] : memref<2x16x256xf32, #tpu.memory_space<vmem>>, vector<1x16x128xf32>
    %85 = vector.shape_cast %84 : vector<1x16x128xf32> to vector<16x128xf32>
    %86 = arith.truncf %85 : vector<16x128xf32> to vector<16x128xbf16>
    %c160_87 = arith.constant 160 : index
    %c128_88 = arith.constant 128 : index
    %87 = vector.load %arg8[%c160_87, %c128_88] : memref<1024x256xbf16, #tpu.memory_space<vmem>>, vector<16x128xbf16>
    tpu.vector_store %arg8[%c160_87, %c128_88], %86 {strides = array<i32>} : memref<1024x256xbf16, #tpu.memory_space<vmem>>, vector<16x128xbf16>,
    %c0_89 = arith.constant 0 : index
    %c0_90 = arith.constant 0 : index
    %c11 = arith.constant 11 : index
    %88 = vector.load %arg1[%c0_89, %c0_90, %c11] : memref<2x16x256xf32, #tpu.memory_space<vmem>>, vector<1x16x128xf32>
    %89 = vector.shape_cast %88 : vector<1x16x128xf32> to vector<16x128xf32>
    %90 = arith.truncf %89 : vector<16x128xf32> to vector<16x128xbf16>
    %c176 = arith.constant 176 : index
    %c0_91 = arith.constant 0 : index
    %91 = vector.load %arg8[%c176, %c0_91] : memref<1024x256xbf16, #tpu.memory_space<vmem>>, vector<16x128xbf16>
    tpu.vector_store %arg8[%c176, %c0_91], %90 {strides = array<i32>} : memref<1024x256xbf16, #tpu.memory_space<vmem>>, vector<16x128xbf16>,
    %c1_92 = arith.constant 1 : index
    %c0_93 = arith.constant 0 : index
    %c11_94 = arith.constant 11 : index
    %92 = vector.load %arg1[%c1_92, %c0_93, %c11_94] : memref<2x16x256xf32, #tpu.memory_space<vmem>>, vector<1x16x128xf32>
    %93 = vector.shape_cast %92 : vector<1x16x128xf32> to vector<16x128xf32>
    %94 = arith.truncf %93 : vector<16x128xf32> to vector<16x128xbf16>
    %c176_95 = arith.constant 176 : index
    %c128_96 = arith.constant 128 : index
    %95 = vector.load %arg8[%c176_95, %c128_96] : memref<1024x256xbf16, #tpu.memory_space<vmem>>, vector<16x128xbf16>
    tpu.vector_store %arg8[%c176_95, %c128_96], %94 {strides = array<i32>} : memref<1024x256xbf16, #tpu.memory_space<vmem>>, vector<16x128xbf16>,
    %c0_97 = arith.constant 0 : index
    %c0_98 = arith.constant 0 : index
    %c12 = arith.constant 12 : index
    %96 = vector.load %arg1[%c0_97, %c0_98, %c12] : memref<2x16x256xf32, #tpu.memory_space<vmem>>, vector<1x16x128xf32>
    %97 = vector.shape_cast %96 : vector<1x16x128xf32> to vector<16x128xf32>
    %98 = arith.truncf %97 : vector<16x128xf32> to vector<16x128xbf16>
    %c192 = arith.constant 192 : index
    %c0_99 = arith.constant 0 : index
    %99 = vector.load %arg8[%c192, %c0_99] : memref<1024x256xbf16, #tpu.memory_space<vmem>>, vector<16x128xbf16>
    tpu.vector_store %arg8[%c192, %c0_99], %98 {strides = array<i32>} : memref<1024x256xbf16, #tpu.memory_space<vmem>>, vector<16x128xbf16>,
    %c1_100 = arith.constant 1 : index
    %c0_101 = arith.constant 0 : index
    %c12_102 = arith.constant 12 : index
    %100 = vector.load %arg1[%c1_100, %c0_101, %c12_102] : memref<2x16x256xf32, #tpu.memory_space<vmem>>, vector<1x16x128xf32>
    %101 = vector.shape_cast %100 : vector<1x16x128xf32> to vector<16x128xf32>
    %102 = arith.truncf %101 : vector<16x128xf32> to vector<16x128xbf16>
    %c192_103 = arith.constant 192 : index
    %c128_104 = arith.constant 128 : index
    %103 = vector.load %arg8[%c192_103, %c128_104] : memref<1024x256xbf16, #tpu.memory_space<vmem>>, vector<16x128xbf16>
    tpu.vector_store %arg8[%c192_103, %c128_104], %102 {strides = array<i32>} : memref<1024x256xbf16, #tpu.memory_space<vmem>>, vector<16x128xbf16>,
    %c0_105 = arith.constant 0 : index
    %c0_106 = arith.constant 0 : index
    %c13 = arith.constant 13 : index
    %104 = vector.load %arg1[%c0_105, %c0_106, %c13] : memref<2x16x256xf32, #tpu.memory_space<vmem>>, vector<1x16x128xf32>
    %105 = vector.shape_cast %104 : vector<1x16x128xf32> to vector<16x128xf32>
    %106 = arith.truncf %105 : vector<16x128xf32> to vector<16x128xbf16>
    %c208 = arith.constant 208 : index
    %c0_107 = arith.constant 0 : index
    %107 = vector.load %arg8[%c208, %c0_107] : memref<1024x256xbf16, #tpu.memory_space<vmem>>, vector<16x128xbf16>
    tpu.vector_store %arg8[%c208, %c0_107], %106 {strides = array<i32>} : memref<1024x256xbf16, #tpu.memory_space<vmem>>, vector<16x128xbf16>,
    %c1_108 = arith.constant 1 : index
    %c0_109 = arith.constant 0 : index
    %c13_110 = arith.constant 13 : index
    %108 = vector.load %arg1[%c1_108, %c0_109, %c13_110] : memref<2x16x256xf32, #tpu.memory_space<vmem>>, vector<1x16x128xf32>
    %109 = vector.shape_cast %108 : vector<1x16x128xf32> to vector<16x128xf32>
    %110 = arith.truncf %109 : vector<16x128xf32> to vector<16x128xbf16>
    %c208_111 = arith.constant 208 : index
    %c128_112 = arith.constant 128 : index
    %111 = vector.load %arg8[%c208_111, %c128_112] : memref<1024x256xbf16, #tpu.memory_space<vmem>>, vector<16x128xbf16>
    tpu.vector_store %arg8[%c208_111, %c128_112], %110 {strides = array<i32>} : memref<1024x256xbf16, #tpu.memory_space<vmem>>, vector<16x128xbf16>,
    %c0_113 = arith.constant 0 : index
    %c0_114 = arith.constant 0 : index
    %c14 = arith.constant 14 : index
    %112 = vector.load %arg1[%c0_113, %c0_114, %c14] : memref<2x16x256xf32, #tpu.memory_space<vmem>>, vector<1x16x128xf32>
    %113 = vector.shape_cast %112 : vector<1x16x128xf32> to vector<16x128xf32>
    %114 = arith.truncf %113 : vector<16x128xf32> to vector<16x128xbf16>
    %c224 = arith.constant 224 : index
    %c0_115 = arith.constant 0 : index
    %115 = vector.load %arg8[%c224, %c0_115] : memref<1024x256xbf16, #tpu.memory_space<vmem>>, vector<16x128xbf16>
    tpu.vector_store %arg8[%c224, %c0_115], %114 {strides = array<i32>} : memref<1024x256xbf16, #tpu.memory_space<vmem>>, vector<16x128xbf16>,
    %c1_116 = arith.constant 1 : index
    %c0_117 = arith.constant 0 : index
    %c14_118 = arith.constant 14 : index
    %116 = vector.load %arg1[%c1_116, %c0_117, %c14_118] : memref<2x16x256xf32, #tpu.memory_space<vmem>>, vector<1x16x128xf32>
    %117 = vector.shape_cast %116 : vector<1x16x128xf32> to vector<16x128xf32>
    %118 = arith.truncf %117 : vector<16x128xf32> to vector<16x128xbf16>
    %c224_119 = arith.constant 224 : index
    %c128_120 = arith.constant 128 : index
    %119 = vector.load %arg8[%c224_119, %c128_120] : memref<1024x256xbf16, #tpu.memory_space<vmem>>, vector<16x128xbf16>
    tpu.vector_store %arg8[%c224_119, %c128_120], %118 {strides = array<i32>} : memref<1024x256xbf16, #tpu.memory_space<vmem>>, vector<16x128xbf16>,
    %c0_121 = arith.constant 0 : index
    %c0_122 = arith.constant 0 : index
    %c15 = arith.constant 15 : index
    %120 = vector.load %arg1[%c0_121, %c0_122, %c15] : memref<2x16x256xf32, #tpu.memory_space<vmem>>, vector<1x16x128xf32>
    %121 = vector.shape_cast %120 : vector<1x16x128xf32> to vector<16x128xf32>
    %122 = arith.truncf %121 : vector<16x128xf32> to vector<16x128xbf16>
    %c240 = arith.constant 240 : index
    %c0_123 = arith.constant 0 : index
    %123 = vector.load %arg8[%c240, %c0_123] : memref<1024x256xbf16, #tpu.memory_space<vmem>>, vector<16x128xbf16>
    tpu.vector_store %arg8[%c240, %c0_123], %122 {strides = array<i32>} : memref<1024x256xbf16, #tpu.memory_space<vmem>>, vector<16x128xbf16>,
    %c1_124 = arith.constant 1 : index
    %c0_125 = arith.constant 0 : index
    %c15_126 = arith.constant 15 : index
    %124 = vector.load %arg1[%c1_124, %c0_125, %c15_126] : memref<2x16x256xf32, #tpu.memory_space<vmem>>, vector<1x16x128xf32>
    %125 = vector.shape_cast %124 : vector<1x16x128xf32> to vector<16x128xf32>
    %126 = arith.truncf %125 : vector<16x128xf32> to vector<16x128xbf16>
    %c240_127 = arith.constant 240 : index
    %c128_128 = arith.constant 128 : index
    %127 = vector.load %arg8[%c240_127, %c128_128] : memref<1024x256xbf16, #tpu.memory_space<vmem>>, vector<16x128xbf16>
    tpu.vector_store %arg8[%c240_127, %c128_128], %126 {strides = array<i32>} : memref<1024x256xbf16, #tpu.memory_space<vmem>>, vector<16x128xbf16>,
    %c0_129 = arith.constant 0 : index
    %c0_130 = arith.constant 0 : index
    %c16_131 = arith.constant 16 : index
    %128 = vector.load %arg1[%c0_129, %c0_130, %c16_131] : memref<2x16x256xf32, #tpu.memory_space<vmem>>, vector<1x16x128xf32>
    %129 = vector.shape_cast %128 : vector<1x16x128xf32> to vector<16x128xf32>
    %130 = arith.truncf %129 : vector<16x128xf32> to vector<16x128xbf16>
    %c256 = arith.constant 256 : index
    %c0_132 = arith.constant 0 : index
    %131 = vector.load %arg8[%c256, %c0_132] : memref<1024x256xbf16, #tpu.memory_space<vmem>>, vector<16x128xbf16>
    tpu.vector_store %arg8[%c256, %c0_132], %130 {strides = array<i32>} : memref<1024x256xbf16, #tpu.memory_space<vmem>>, vector<16x128xbf16>,
    %c1_133 = arith.constant 1 : index
    %c0_134 = arith.constant 0 : index
    %c16_135 = arith.constant 16 : index
    %132 = vector.load %arg1[%c1_133, %c0_134, %c16_135] : memref<2x16x256xf32, #tpu.memory_space<vmem>>, vector<1x16x128xf32>
    %133 = vector.shape_cast %132 : vector<1x16x128xf32> to vector<16x128xf32>
    %134 = arith.truncf %133 : vector<16x128xf32> to vector<16x128xbf16>
    %c256_136 = arith.constant 256 : index
    %c128_137 = arith.constant 128 : index
    %135 = vector.load %arg8[%c256_136, %c128_137] : memref<1024x256xbf16, #tpu.memory_space<vmem>>, vector<16x128xbf16>
    tpu.vector_store %arg8[%c256_136, %c128_137], %134 {strides = array<i32>} : memref<1024x256xbf16, #tpu.memory_space<vmem>>, vector<16x128xbf16>,
    %c0_138 = arith.constant 0 : index
    %c0_139 = arith.constant 0 : index
    %c17 = arith.constant 17 : index
    %136 = vector.load %arg1[%c0_138, %c0_139, %c17] : memref<2x16x256xf32, #tpu.memory_space<vmem>>, vector<1x16x128xf32>
    %137 = vector.shape_cast %136 : vector<1x16x128xf32> to vector<16x128xf32>
    %138 = arith.truncf %137 : vector<16x128xf32> to vector<16x128xbf16>
    %c272 = arith.constant 272 : index
    %c0_140 = arith.constant 0 : index
    %139 = vector.load %arg8[%c272, %c0_140] : memref<1024x256xbf16, #tpu.memory_space<vmem>>, vector<16x128xbf16>
    tpu.vector_store %arg8[%c272, %c0_140], %138 {strides = array<i32>} : memref<1024x256xbf16, #tpu.memory_space<vmem>>, vector<16x128xbf16>,
    %c1_141 = arith.constant 1 : index
    %c0_142 = arith.constant 0 : index
    %c17_143 = arith.constant 17 : index
    %140 = vector.load %arg1[%c1_141, %c0_142, %c17_143] : memref<2x16x256xf32, #tpu.memory_space<vmem>>, vector<1x16x128xf32>
    %141 = vector.shape_cast %140 : vector<1x16x128xf32> to vector<16x128xf32>
    %142 = arith.truncf %141 : vector<16x128xf32> to vector<16x128xbf16>
    %c272_144 = arith.constant 272 : index
    %c128_145 = arith.constant 128 : index
    %143 = vector.load %arg8[%c272_144, %c128_145] : memref<1024x256xbf16, #tpu.memory_space<vmem>>, vector<16x128xbf16>
    tpu.vector_store %arg8[%c272_144, %c128_145], %142 {strides = array<i32>} : memref<1024x256xbf16, #tpu.memory_space<vmem>>, vector<16x128xbf16>,
    %c0_146 = arith.constant 0 : index
    %c0_147 = arith.constant 0 : index
    %c18 = arith.constant 18 : index
    %144 = vector.load %arg1[%c0_146, %c0_147, %c18] : memref<2x16x256xf32, #tpu.memory_space<vmem>>, vector<1x16x128xf32>
    %145 = vector.shape_cast %144 : vector<1x16x128xf32> to vector<16x128xf32>
    %146 = arith.truncf %145 : vector<16x128xf32> to vector<16x128xbf16>
    %c288 = arith.constant 288 : index
    %c0_148 = arith.constant 0 : index
    %147 = vector.load %arg8[%c288, %c0_148] : memref<1024x256xbf16, #tpu.memory_space<vmem>>, vector<16x128xbf16>
    tpu.vector_store %arg8[%c288, %c0_148], %146 {strides = array<i32>} : memref<1024x256xbf16, #tpu.memory_space<vmem>>, vector<16x128xbf16>,
    %c1_149 = arith.constant 1 : index
    %c0_150 = arith.constant 0 : index
    %c18_151 = arith.constant 18 : index
    %148 = vector.load %arg1[%c1_149, %c0_150, %c18_151] : memref<2x16x256xf32, #tpu.memory_space<vmem>>, vector<1x16x128xf32>
    %149 = vector.shape_cast %148 : vector<1x16x128xf32> to vector<16x128xf32>
    %150 = arith.truncf %149 : vector<16x128xf32> to vector<16x128xbf16>
    %c288_152 = arith.constant 288 : index
    %c128_153 = arith.constant 128 : index
    %151 = vector.load %arg8[%c288_152, %c128_153] : memref<1024x256xbf16, #tpu.memory_space<vmem>>, vector<16x128xbf16>
    tpu.vector_store %arg8[%c288_152, %c128_153], %150 {strides = array<i32>} : memref<1024x256xbf16, #tpu.memory_space<vmem>>, vector<16x128xbf16>,
    %c0_154 = arith.constant 0 : index
    %c0_155 = arith.constant 0 : index
    %c19 = arith.constant 19 : index
    %152 = vector.load %arg1[%c0_154, %c0_155, %c19] : memref<2x16x256xf32, #tpu.memory_space<vmem>>, vector<1x16x128xf32>
    %153 = vector.shape_cast %152 : vector<1x16x128xf32> to vector<16x128xf32>
    %154 = arith.truncf %153 : vector<16x128xf32> to vector<16x128xbf16>
    %c304 = arith.constant 304 : index
    %c0_156 = arith.constant 0 : index
    %155 = vector.load %arg8[%c304, %c0_156] : memref<1024x256xbf16, #tpu.memory_space<vmem>>, vector<16x128xbf16>
    tpu.vector_store %arg8[%c304, %c0_156], %154 {strides = array<i32>} : memref<1024x256xbf16, #tpu.memory_space<vmem>>, vector<16x128xbf16>,
    %c1_157 = arith.constant 1 : index
    %c0_158 = arith.constant 0 : index
    %c19_159 = arith.constant 19 : index
    %156 = vector.load %arg1[%c1_157, %c0_158, %c19_159] : memref<2x16x256xf32, #tpu.memory_space<vmem>>, vector<1x16x128xf32>
    %157 = vector.shape_cast %156 : vector<1x16x128xf32> to vector<16x128xf32>
    %158 = arith.truncf %157 : vector<16x128xf32> to vector<16x128xbf16>
    %c304_160 = arith.constant 304 : index
    %c128_161 = arith.constant 128 : index
    %159 = vector.load %arg8[%c304_160, %c128_161] : memref<1024x256xbf16, #tpu.memory_space<vmem>>, vector<16x128xbf16>
    tpu.vector_store %arg8[%c304_160, %c128_161], %158 {strides = array<i32>} : memref<1024x256xbf16, #tpu.memory_space<vmem>>, vector<16x128xbf16>,
    %c0_162 = arith.constant 0 : index
    %c0_163 = arith.constant 0 : index
    %c20 = arith.constant 20 : index
    %160 = vector.load %arg1[%c0_162, %c0_163, %c20] : memref<2x16x256xf32, #tpu.memory_space<vmem>>, vector<1x16x128xf32>
    %161 = vector.shape_cast %160 : vector<1x16x128xf32> to vector<16x128xf32>
    %162 = arith.truncf %161 : vector<16x128xf32> to vector<16x128xbf16>
    %c320 = arith.constant 320 : index
    %c0_164 = arith.constant 0 : index
    %163 = vector.load %arg8[%c320, %c0_164] : memref<1024x256xbf16, #tpu.memory_space<vmem>>, vector<16x128xbf16>
    tpu.vector_store %arg8[%c320, %c0_164], %162 {strides = array<i32>} : memref<1024x256xbf16, #tpu.memory_space<vmem>>, vector<16x128xbf16>,
    %c1_165 = arith.constant 1 : index
    %c0_166 = arith.constant 0 : index
    %c20_167 = arith.constant 20 : index
    %164 = vector.load %arg1[%c1_165, %c0_166, %c20_167] : memref<2x16x256xf32, #tpu.memory_space<vmem>>, vector<1x16x128xf32>
    %165 = vector.shape_cast %164 : vector<1x16x128xf32> to vector<16x128xf32>
    %166 = arith.truncf %165 : vector<16x128xf32> to vector<16x128xbf16>
    %c320_168 = arith.constant 320 : index
    %c128_169 = arith.constant 128 : index
    %167 = vector.load %arg8[%c320_168, %c128_169] : memref<1024x256xbf16, #tpu.memory_space<vmem>>, vector<16x128xbf16>
    tpu.vector_store %arg8[%c320_168, %c128_169], %166 {strides = array<i32>} : memref<1024x256xbf16, #tpu.memory_space<vmem>>, vector<16x128xbf16>,
    %c0_170 = arith.constant 0 : index
    %c0_171 = arith.constant 0 : index
    %c21 = arith.constant 21 : index
    %168 = vector.load %arg1[%c0_170, %c0_171, %c21] : memref<2x16x256xf32, #tpu.memory_space<vmem>>, vector<1x16x128xf32>
    %169 = vector.shape_cast %168 : vector<1x16x128xf32> to vector<16x128xf32>
    %170 = arith.truncf %169 : vector<16x128xf32> to vector<16x128xbf16>
    %c336 = arith.constant 336 : index
    %c0_172 = arith.constant 0 : index
    %171 = vector.load %arg8[%c336, %c0_172] : memref<1024x256xbf16, #tpu.memory_space<vmem>>, vector<16x128xbf16>
    tpu.vector_store %arg8[%c336, %c0_172], %170 {strides = array<i32>} : memref<1024x256xbf16, #tpu.memory_space<vmem>>, vector<16x128xbf16>,
    %c1_173 = arith.constant 1 : index
    %c0_174 = arith.constant 0 : index
    %c21_175 = arith.constant 21 : index
    %172 = vector.load %arg1[%c1_173, %c0_174, %c21_175] : memref<2x16x256xf32, #tpu.memory_space<vmem>>, vector<1x16x128xf32>
    %173 = vector.shape_cast %172 : vector<1x16x128xf32> to vector<16x128xf32>
    %174 = arith.truncf %173 : vector<16x128xf32> to vector<16x128xbf16>
    %c336_176 = arith.constant 336 : index
    %c128_177 = arith.constant 128 : index
    %175 = vector.load %arg8[%c336_176, %c128_177] : memref<1024x256xbf16, #tpu.memory_space<vmem>>, vector<16x128xbf16>
    tpu.vector_store %arg8[%c336_176, %c128_177], %174 {strides = array<i32>} : memref<1024x256xbf16, #tpu.memory_space<vmem>>, vector<16x128xbf16>,
    %c0_178 = arith.constant 0 : index
    %c0_179 = arith.constant 0 : index
    %c22 = arith.constant 22 : index
    %176 = vector.load %arg1[%c0_178, %c0_179, %c22] : memref<2x16x256xf32, #tpu.memory_space<vmem>>, vector<1x16x128xf32>
    %177 = vector.shape_cast %176 : vector<1x16x128xf32> to vector<16x128xf32>
    %178 = arith.truncf %177 : vector<16x128xf32> to vector<16x128xbf16>
    %c352 = arith.constant 352 : index
    %c0_180 = arith.constant 0 : index
    %179 = vector.load %arg8[%c352, %c0_180] : memref<1024x256xbf16, #tpu.memory_space<vmem>>, vector<16x128xbf16>
    tpu.vector_store %arg8[%c352, %c0_180], %178 {strides = array<i32>} : memref<1024x256xbf16, #tpu.memory_space<vmem>>, vector<16x128xbf16>,
    %c1_181 = arith.constant 1 : index
    %c0_182 = arith.constant 0 : index
    %c22_183 = arith.constant 22 : index
    %180 = vector.load %arg1[%c1_181, %c0_182, %c22_183] : memref<2x16x256xf32, #tpu.memory_space<vmem>>, vector<1x16x128xf32>
    %181 = vector.shape_cast %180 : vector<1x16x128xf32> to vector<16x128xf32>
    %182 = arith.truncf %181 : vector<16x128xf32> to vector<16x128xbf16>
    %c352_184 = arith.constant 352 : index
    %c128_185 = arith.constant 128 : index
    %183 = vector.load %arg8[%c352_184, %c128_185] : memref<1024x256xbf16, #tpu.memory_space<vmem>>, vector<16x128xbf16>
    tpu.vector_store %arg8[%c352_184, %c128_185], %182 {strides = array<i32>} : memref<1024x256xbf16, #tpu.memory_space<vmem>>, vector<16x128xbf16>,
    %c0_186 = arith.constant 0 : index
    %c0_187 = arith.constant 0 : index
    %c23 = arith.constant 23 : index
    %184 = vector.load %arg1[%c0_186, %c0_187, %c23] : memref<2x16x256xf32, #tpu.memory_space<vmem>>, vector<1x16x128xf32>
    %185 = vector.shape_cast %184 : vector<1x16x128xf32> to vector<16x128xf32>
    %186 = arith.truncf %185 : vector<16x128xf32> to vector<16x128xbf16>
    %c368 = arith.constant 368 : index
    %c0_188 = arith.constant 0 : index
    %187 = vector.load %arg8[%c368, %c0_188] : memref<1024x256xbf16, #tpu.memory_space<vmem>>, vector<16x128xbf16>
    tpu.vector_store %arg8[%c368, %c0_188], %186 {strides = array<i32>} : memref<1024x256xbf16, #tpu.memory_space<vmem>>, vector<16x128xbf16>,
    %c1_189 = arith.constant 1 : index
    %c0_190 = arith.constant 0 : index
    %c23_191 = arith.constant 23 : index
    %188 = vector.load %arg1[%c1_189, %c0_190, %c23_191] : memref<2x16x256xf32, #tpu.memory_space<vmem>>, vector<1x16x128xf32>
    %189 = vector.shape_cast %188 : vector<1x16x128xf32> to vector<16x128xf32>
    %190 = arith.truncf %189 : vector<16x128xf32> to vector<16x128xbf16>
    %c368_192 = arith.constant 368 : index
    %c128_193 = arith.constant 128 : index
    %191 = vector.load %arg8[%c368_192, %c128_193] : memref<1024x256xbf16, #tpu.memory_space<vmem>>, vector<16x128xbf16>
    tpu.vector_store %arg8[%c368_192, %c128_193], %190 {strides = array<i32>} : memref<1024x256xbf16, #tpu.memory_space<vmem>>, vector<16x128xbf16>,
    %c0_194 = arith.constant 0 : index
    %c0_195 = arith.constant 0 : index
    %c24 = arith.constant 24 : index
    %192 = vector.load %arg1[%c0_194, %c0_195, %c24] : memref<2x16x256xf32, #tpu.memory_space<vmem>>, vector<1x16x128xf32>
    %193 = vector.shape_cast %192 : vector<1x16x128xf32> to vector<16x128xf32>
    %194 = arith.truncf %193 : vector<16x128xf32> to vector<16x128xbf16>
    %c384 = arith.constant 384 : index
    %c0_196 = arith.constant 0 : index
    %195 = vector.load %arg8[%c384, %c0_196] : memref<1024x256xbf16, #tpu.memory_space<vmem>>, vector<16x128xbf16>
    tpu.vector_store %arg8[%c384, %c0_196], %194 {strides = array<i32>} : memref<1024x256xbf16, #tpu.memory_space<vmem>>, vector<16x128xbf16>,
    %c1_197 = arith.constant 1 : index
    %c0_198 = arith.constant 0 : index
    %c24_199 = arith.constant 24 : index
    %196 = vector.load %arg1[%c1_197, %c0_198, %c24_199] : memref<2x16x256xf32, #tpu.memory_space<vmem>>, vector<1x16x128xf32>
    %197 = vector.shape_cast %196 : vector<1x16x128xf32> to vector<16x128xf32>
    %198 = arith.truncf %197 : vector<16x128xf32> to vector<16x128xbf16>
    %c384_200 = arith.constant 384 : index
    %c128_201 = arith.constant 128 : index
    %199 = vector.load %arg8[%c384_200, %c128_201] : memref<1024x256xbf16, #tpu.memory_space<vmem>>, vector<16x128xbf16>
    tpu.vector_store %arg8[%c384_200, %c128_201], %198 {strides = array<i32>} : memref<1024x256xbf16, #tpu.memory_space<vmem>>, vector<16x128xbf16>,
    %c0_202 = arith.constant 0 : index
    %c0_203 = arith.constant 0 : index
    %c25 = arith.constant 25 : index
    %200 = vector.load %arg1[%c0_202, %c0_203, %c25] : memref<2x16x256xf32, #tpu.memory_space<vmem>>, vector<1x16x128xf32>
    %201 = vector.shape_cast %200 : vector<1x16x128xf32> to vector<16x128xf32>
    %202 = arith.truncf %201 : vector<16x128xf32> to vector<16x128xbf16>
    %c400 = arith.constant 400 : index
    %c0_204 = arith.constant 0 : index
    %203 = vector.load %arg8[%c400, %c0_204] : memref<1024x256xbf16, #tpu.memory_space<vmem>>, vector<16x128xbf16>
    tpu.vector_store %arg8[%c400, %c0_204], %202 {strides = array<i32>} : memref<1024x256xbf16, #tpu.memory_space<vmem>>, vector<16x128xbf16>,
    %c1_205 = arith.constant 1 : index
    %c0_206 = arith.constant 0 : index
    %c25_207 = arith.constant 25 : index
    %204 = vector.load %arg1[%c1_205, %c0_206, %c25_207] : memref<2x16x256xf32, #tpu.memory_space<vmem>>, vector<1x16x128xf32>
    %205 = vector.shape_cast %204 : vector<1x16x128xf32> to vector<16x128xf32>
    %206 = arith.truncf %205 : vector<16x128xf32> to vector<16x128xbf16>
    %c400_208 = arith.constant 400 : index
    %c128_209 = arith.constant 128 : index
    %207 = vector.load %arg8[%c400_208, %c128_209] : memref<1024x256xbf16, #tpu.memory_space<vmem>>, vector<16x128xbf16>
    tpu.vector_store %arg8[%c400_208, %c128_209], %206 {strides = array<i32>} : memref<1024x256xbf16, #tpu.memory_space<vmem>>, vector<16x128xbf16>,
    %c0_210 = arith.constant 0 : index
    %c0_211 = arith.constant 0 : index
    %c26 = arith.constant 26 : index
    %208 = vector.load %arg1[%c0_210, %c0_211, %c26] : memref<2x16x256xf32, #tpu.memory_space<vmem>>, vector<1x16x128xf32>
    %209 = vector.shape_cast %208 : vector<1x16x128xf32> to vector<16x128xf32>
    %210 = arith.truncf %209 : vector<16x128xf32> to vector<16x128xbf16>
    %c416 = arith.constant 416 : index
    %c0_212 = arith.constant 0 : index
    %211 = vector.load %arg8[%c416, %c0_212] : memref<1024x256xbf16, #tpu.memory_space<vmem>>, vector<16x128xbf16>
    tpu.vector_store %arg8[%c416, %c0_212], %210 {strides = array<i32>} : memref<1024x256xbf16, #tpu.memory_space<vmem>>, vector<16x128xbf16>,
    %c1_213 = arith.constant 1 : index
    %c0_214 = arith.constant 0 : index
    %c26_215 = arith.constant 26 : index
    %212 = vector.load %arg1[%c1_213, %c0_214, %c26_215] : memref<2x16x256xf32, #tpu.memory_space<vmem>>, vector<1x16x128xf32>
    %213 = vector.shape_cast %212 : vector<1x16x128xf32> to vector<16x128xf32>
    %214 = arith.truncf %213 : vector<16x128xf32> to vector<16x128xbf16>
    %c416_216 = arith.constant 416 : index
    %c128_217 = arith.constant 128 : index
    %215 = vector.load %arg8[%c416_216, %c128_217] : memref<1024x256xbf16, #tpu.memory_space<vmem>>, vector<16x128xbf16>
    tpu.vector_store %arg8[%c416_216, %c128_217], %214 {strides = array<i32>} : memref<1024x256xbf16, #tpu.memory_space<vmem>>, vector<16x128xbf16>,
    %c0_218 = arith.constant 0 : index
    %c0_219 = arith.constant 0 : index
    %c27 = arith.constant 27 : index
    %216 = vector.load %arg1[%c0_218, %c0_219, %c27] : memref<2x16x256xf32, #tpu.memory_space<vmem>>, vector<1x16x128xf32>
    %217 = vector.shape_cast %216 : vector<1x16x128xf32> to vector<16x128xf32>
    %218 = arith.truncf %217 : vector<16x128xf32> to vector<16x128xbf16>
    %c432 = arith.constant 432 : index
    %c0_220 = arith.constant 0 : index
    %219 = vector.load %arg8[%c432, %c0_220] : memref<1024x256xbf16, #tpu.memory_space<vmem>>, vector<16x128xbf16>
    tpu.vector_store %arg8[%c432, %c0_220], %218 {strides = array<i32>} : memref<1024x256xbf16, #tpu.memory_space<vmem>>, vector<16x128xbf16>,
    %c1_221 = arith.constant 1 : index
    %c0_222 = arith.constant 0 : index
    %c27_223 = arith.constant 27 : index
    %220 = vector.load %arg1[%c1_221, %c0_222, %c27_223] : memref<2x16x256xf32, #tpu.memory_space<vmem>>, vector<1x16x128xf32>
    %221 = vector.shape_cast %220 : vector<1x16x128xf32> to vector<16x128xf32>
    %222 = arith.truncf %221 : vector<16x128xf32> to vector<16x128xbf16>
    %c432_224 = arith.constant 432 : index
    %c128_225 = arith.constant 128 : index
    %223 = vector.load %arg8[%c432_224, %c128_225] : memref<1024x256xbf16, #tpu.memory_space<vmem>>, vector<16x128xbf16>
    tpu.vector_store %arg8[%c432_224, %c128_225], %222 {strides = array<i32>} : memref<1024x256xbf16, #tpu.memory_space<vmem>>, vector<16x128xbf16>,
    %c0_226 = arith.constant 0 : index
    %c0_227 = arith.constant 0 : index
    %c28 = arith.constant 28 : index
    %224 = vector.load %arg1[%c0_226, %c0_227, %c28] : memref<2x16x256xf32, #tpu.memory_space<vmem>>, vector<1x16x128xf32>
    %225 = vector.shape_cast %224 : vector<1x16x128xf32> to vector<16x128xf32>
    %226 = arith.truncf %225 : vector<16x128xf32> to vector<16x128xbf16>
    %c448 = arith.constant 448 : index
    %c0_228 = arith.constant 0 : index
    %227 = vector.load %arg8[%c448, %c0_228] : memref<1024x256xbf16, #tpu.memory_space<vmem>>, vector<16x128xbf16>
    tpu.vector_store %arg8[%c448, %c0_228], %226 {strides = array<i32>} : memref<1024x256xbf16, #tpu.memory_space<vmem>>, vector<16x128xbf16>,
    %c1_229 = arith.constant 1 : index
    %c0_230 = arith.constant 0 : index
    %c28_231 = arith.constant 28 : index
    %228 = vector.load %arg1[%c1_229, %c0_230, %c28_231] : memref<2x16x256xf32, #tpu.memory_space<vmem>>, vector<1x16x128xf32>
    %229 = vector.shape_cast %228 : vector<1x16x128xf32> to vector<16x128xf32>
    %230 = arith.truncf %229 : vector<16x128xf32> to vector<16x128xbf16>
    %c448_232 = arith.constant 448 : index
    %c128_233 = arith.constant 128 : index
    %231 = vector.load %arg8[%c448_232, %c128_233] : memref<1024x256xbf16, #tpu.memory_space<vmem>>, vector<16x128xbf16>
    tpu.vector_store %arg8[%c448_232, %c128_233], %230 {strides = array<i32>} : memref<1024x256xbf16, #tpu.memory_space<vmem>>, vector<16x128xbf16>,
    %c0_234 = arith.constant 0 : index
    %c0_235 = arith.constant 0 : index
    %c29 = arith.constant 29 : index
    %232 = vector.load %arg1[%c0_234, %c0_235, %c29] : memref<2x16x256xf32, #tpu.memory_space<vmem>>, vector<1x16x128xf32>
    %233 = vector.shape_cast %232 : vector<1x16x128xf32> to vector<16x128xf32>
    %234 = arith.truncf %233 : vector<16x128xf32> to vector<16x128xbf16>
    %c464 = arith.constant 464 : index
    %c0_236 = arith.constant 0 : index
    %235 = vector.load %arg8[%c464, %c0_236] : memref<1024x256xbf16, #tpu.memory_space<vmem>>, vector<16x128xbf16>
    tpu.vector_store %arg8[%c464, %c0_236], %234 {strides = array<i32>} : memref<1024x256xbf16, #tpu.memory_space<vmem>>, vector<16x128xbf16>,
    %c1_237 = arith.constant 1 : index
    %c0_238 = arith.constant 0 : index
    %c29_239 = arith.constant 29 : index
    %236 = vector.load %arg1[%c1_237, %c0_238, %c29_239] : memref<2x16x256xf32, #tpu.memory_space<vmem>>, vector<1x16x128xf32>
    %237 = vector.shape_cast %236 : vector<1x16x128xf32> to vector<16x128xf32>
    %238 = arith.truncf %237 : vector<16x128xf32> to vector<16x128xbf16>
    %c464_240 = arith.constant 464 : index
    %c128_241 = arith.constant 128 : index
    %239 = vector.load %arg8[%c464_240, %c128_241] : memref<1024x256xbf16, #tpu.memory_space<vmem>>, vector<16x128xbf16>
    tpu.vector_store %arg8[%c464_240, %c128_241], %238 {strides = array<i32>} : memref<1024x256xbf16, #tpu.memory_space<vmem>>, vector<16x128xbf16>,
    %c0_242 = arith.constant 0 : index
    %c0_243 = arith.constant 0 : index
    %c30 = arith.constant 30 : index
    %240 = vector.load %arg1[%c0_242, %c0_243, %c30] : memref<2x16x256xf32, #tpu.memory_space<vmem>>, vector<1x16x128xf32>
    %241 = vector.shape_cast %240 : vector<1x16x128xf32> to vector<16x128xf32>
    %242 = arith.truncf %241 : vector<16x128xf32> to vector<16x128xbf16>
    %c480 = arith.constant 480 : index
    %c0_244 = arith.constant 0 : index
    %243 = vector.load %arg8[%c480, %c0_244] : memref<1024x256xbf16, #tpu.memory_space<vmem>>, vector<16x128xbf16>
    tpu.vector_store %arg8[%c480, %c0_244], %242 {strides = array<i32>} : memref<1024x256xbf16, #tpu.memory_space<vmem>>, vector<16x128xbf16>,
    %c1_245 = arith.constant 1 : index
    %c0_246 = arith.constant 0 : index
    %c30_247 = arith.constant 30 : index
    %244 = vector.load %arg1[%c1_245, %c0_246, %c30_247] : memref<2x16x256xf32, #tpu.memory_space<vmem>>, vector<1x16x128xf32>
    %245 = vector.shape_cast %244 : vector<1x16x128xf32> to vector<16x128xf32>
    %246 = arith.truncf %245 : vector<16x128xf32> to vector<16x128xbf16>
    %c480_248 = arith.constant 480 : index
    %c128_249 = arith.constant 128 : index
    %247 = vector.load %arg8[%c480_248, %c128_249] : memref<1024x256xbf16, #tpu.memory_space<vmem>>, vector<16x128xbf16>
    tpu.vector_store %arg8[%c480_248, %c128_249], %246 {strides = array<i32>} : memref<1024x256xbf16, #tpu.memory_space<vmem>>, vector<16x128xbf16>,
    %c0_250 = arith.constant 0 : index
    %c0_251 = arith.constant 0 : index
    %c31 = arith.constant 31 : index
    %248 = vector.load %arg1[%c0_250, %c0_251, %c31] : memref<2x16x256xf32, #tpu.memory_space<vmem>>, vector<1x16x128xf32>
    %249 = vector.shape_cast %248 : vector<1x16x128xf32> to vector<16x128xf32>
    %250 = arith.truncf %249 : vector<16x128xf32> to vector<16x128xbf16>
    %c496 = arith.constant 496 : index
    %c0_252 = arith.constant 0 : index
    %251 = vector.load %arg8[%c496, %c0_252] : memref<1024x256xbf16, #tpu.memory_space<vmem>>, vector<16x128xbf16>
    tpu.vector_store %arg8[%c496, %c0_252], %250 {strides = array<i32>} : memref<1024x256xbf16, #tpu.memory_space<vmem>>, vector<16x128xbf16>,
    %c1_253 = arith.constant 1 : index
    %c0_254 = arith.constant 0 : index
    %c31_255 = arith.constant 31 : index
    %252 = vector.load %arg1[%c1_253, %c0_254, %c31_255] : memref<2x16x256xf32, #tpu.memory_space<vmem>>, vector<1x16x128xf32>
    %253 = vector.shape_cast %252 : vector<1x16x128xf32> to vector<16x128xf32>
    %254 = arith.truncf %253 : vector<16x128xf32> to vector<16x128xbf16>
    %c496_256 = arith.constant 496 : index
    %c128_257 = arith.constant 128 : index
    %255 = vector.load %arg8[%c496_256, %c128_257] : memref<1024x256xbf16, #tpu.memory_space<vmem>>, vector<16x128xbf16>
    tpu.vector_store %arg8[%c496_256, %c128_257], %254 {strides = array<i32>} : memref<1024x256xbf16, #tpu.memory_space<vmem>>, vector<16x128xbf16>,
    %c0_258 = arith.constant 0 : index
    %c0_259 = arith.constant 0 : index
    %c32_260 = arith.constant 32 : index
    %256 = vector.load %arg1[%c0_258, %c0_259, %c32_260] : memref<2x16x256xf32, #tpu.memory_space<vmem>>, vector<1x16x128xf32>
    %257 = vector.shape_cast %256 : vector<1x16x128xf32> to vector<16x128xf32>
    %258 = arith.truncf %257 : vector<16x128xf32> to vector<16x128xbf16>
    %c512 = arith.constant 512 : index
    %c0_261 = arith.constant 0 : index
    %259 = vector.load %arg8[%c512, %c0_261] : memref<1024x256xbf16, #tpu.memory_space<vmem>>, vector<16x128xbf16>
    tpu.vector_store %arg8[%c512, %c0_261], %258 {strides = array<i32>} : memref<1024x256xbf16, #tpu.memory_space<vmem>>, vector<16x128xbf16>,
    %c1_262 = arith.constant 1 : index
    %c0_263 = arith.constant 0 : index
    %c32_264 = arith.constant 32 : index
    %260 = vector.load %arg1[%c1_262, %c0_263, %c32_264] : memref<2x16x256xf32, #tpu.memory_space<vmem>>, vector<1x16x128xf32>
    %261 = vector.shape_cast %260 : vector<1x16x128xf32> to vector<16x128xf32>
    %262 = arith.truncf %261 : vector<16x128xf32> to vector<16x128xbf16>
    %c512_265 = arith.constant 512 : index
    %c128_266 = arith.constant 128 : index
    %263 = vector.load %arg8[%c512_265, %c128_266] : memref<1024x256xbf16, #tpu.memory_space<vmem>>, vector<16x128xbf16>
    tpu.vector_store %arg8[%c512_265, %c128_266], %262 {strides = array<i32>} : memref<1024x256xbf16, #tpu.memory_space<vmem>>, vector<16x128xbf16>,
    %c0_267 = arith.constant 0 : index
    %c0_268 = arith.constant 0 : index
    %c33 = arith.constant 33 : index
    %264 = vector.load %arg1[%c0_267, %c0_268, %c33] : memref<2x16x256xf32, #tpu.memory_space<vmem>>, vector<1x16x128xf32>
    %265 = vector.shape_cast %264 : vector<1x16x128xf32> to vector<16x128xf32>
    %266 = arith.truncf %265 : vector<16x128xf32> to vector<16x128xbf16>
    %c528 = arith.constant 528 : index
    %c0_269 = arith.constant 0 : index
    %267 = vector.load %arg8[%c528, %c0_269] : memref<1024x256xbf16, #tpu.memory_space<vmem>>, vector<16x128xbf16>
    tpu.vector_store %arg8[%c528, %c0_269], %266 {strides = array<i32>} : memref<1024x256xbf16, #tpu.memory_space<vmem>>, vector<16x128xbf16>,
    %c1_270 = arith.constant 1 : index
    %c0_271 = arith.constant 0 : index
    %c33_272 = arith.constant 33 : index
    %268 = vector.load %arg1[%c1_270, %c0_271, %c33_272] : memref<2x16x256xf32, #tpu.memory_space<vmem>>, vector<1x16x128xf32>
    %269 = vector.shape_cast %268 : vector<1x16x128xf32> to vector<16x128xf32>
    %270 = arith.truncf %269 : vector<16x128xf32> to vector<16x128xbf16>
    %c528_273 = arith.constant 528 : index
    %c128_274 = arith.constant 128 : index
    %271 = vector.load %arg8[%c528_273, %c128_274] : memref<1024x256xbf16, #tpu.memory_space<vmem>>, vector<16x128xbf16>
    tpu.vector_store %arg8[%c528_273, %c128_274], %270 {strides = array<i32>} : memref<1024x256xbf16, #tpu.memory_space<vmem>>, vector<16x128xbf16>,
    %c0_275 = arith.constant 0 : index
    %c0_276 = arith.constant 0 : index
    %c34 = arith.constant 34 : index
    %272 = vector.load %arg1[%c0_275, %c0_276, %c34] : memref<2x16x256xf32, #tpu.memory_space<vmem>>, vector<1x16x128xf32>
    %273 = vector.shape_cast %272 : vector<1x16x128xf32> to vector<16x128xf32>
    %274 = arith.truncf %273 : vector<16x128xf32> to vector<16x128xbf16>
    %c544 = arith.constant 544 : index
    %c0_277 = arith.constant 0 : index
    %275 = vector.load %arg8[%c544, %c0_277] : memref<1024x256xbf16, #tpu.memory_space<vmem>>, vector<16x128xbf16>
    tpu.vector_store %arg8[%c544, %c0_277], %274 {strides = array<i32>} : memref<1024x256xbf16, #tpu.memory_space<vmem>>, vector<16x128xbf16>,
    %c1_278 = arith.constant 1 : index
    %c0_279 = arith.constant 0 : index
    %c34_280 = arith.constant 34 : index
    %276 = vector.load %arg1[%c1_278, %c0_279, %c34_280] : memref<2x16x256xf32, #tpu.memory_space<vmem>>, vector<1x16x128xf32>
    %277 = vector.shape_cast %276 : vector<1x16x128xf32> to vector<16x128xf32>
    %278 = arith.truncf %277 : vector<16x128xf32> to vector<16x128xbf16>
    %c544_281 = arith.constant 544 : index
    %c128_282 = arith.constant 128 : index
    %279 = vector.load %arg8[%c544_281, %c128_282] : memref<1024x256xbf16, #tpu.memory_space<vmem>>, vector<16x128xbf16>
    tpu.vector_store %arg8[%c544_281, %c128_282], %278 {strides = array<i32>} : memref<1024x256xbf16, #tpu.memory_space<vmem>>, vector<16x128xbf16>,
    %c0_283 = arith.constant 0 : index
    %c0_284 = arith.constant 0 : index
    %c35 = arith.constant 35 : index
    %280 = vector.load %arg1[%c0_283, %c0_284, %c35] : memref<2x16x256xf32, #tpu.memory_space<vmem>>, vector<1x16x128xf32>
    %281 = vector.shape_cast %280 : vector<1x16x128xf32> to vector<16x128xf32>
    %282 = arith.truncf %281 : vector<16x128xf32> to vector<16x128xbf16>
    %c560 = arith.constant 560 : index
    %c0_285 = arith.constant 0 : index
    %283 = vector.load %arg8[%c560, %c0_285] : memref<1024x256xbf16, #tpu.memory_space<vmem>>, vector<16x128xbf16>
    tpu.vector_store %arg8[%c560, %c0_285], %282 {strides = array<i32>} : memref<1024x256xbf16, #tpu.memory_space<vmem>>, vector<16x128xbf16>,
    %c1_286 = arith.constant 1 : index
    %c0_287 = arith.constant 0 : index
    %c35_288 = arith.constant 35 : index
    %284 = vector.load %arg1[%c1_286, %c0_287, %c35_288] : memref<2x16x256xf32, #tpu.memory_space<vmem>>, vector<1x16x128xf32>
    %285 = vector.shape_cast %284 : vector<1x16x128xf32> to vector<16x128xf32>
    %286 = arith.truncf %285 : vector<16x128xf32> to vector<16x128xbf16>
    %c560_289 = arith.constant 560 : index
    %c128_290 = arith.constant 128 : index
    %287 = vector.load %arg8[%c560_289, %c128_290] : memref<1024x256xbf16, #tpu.memory_space<vmem>>, vector<16x128xbf16>
    tpu.vector_store %arg8[%c560_289, %c128_290], %286 {strides = array<i32>} : memref<1024x256xbf16, #tpu.memory_space<vmem>>, vector<16x128xbf16>,
    %c0_291 = arith.constant 0 : index
    %c0_292 = arith.constant 0 : index
    %c36 = arith.constant 36 : index
    %288 = vector.load %arg1[%c0_291, %c0_292, %c36] : memref<2x16x256xf32, #tpu.memory_space<vmem>>, vector<1x16x128xf32>
    %289 = vector.shape_cast %288 : vector<1x16x128xf32> to vector<16x128xf32>
    %290 = arith.truncf %289 : vector<16x128xf32> to vector<16x128xbf16>
    %c576 = arith.constant 576 : index
    %c0_293 = arith.constant 0 : index
    %291 = vector.load %arg8[%c576, %c0_293] : memref<1024x256xbf16, #tpu.memory_space<vmem>>, vector<16x128xbf16>
    tpu.vector_store %arg8[%c576, %c0_293], %290 {strides = array<i32>} : memref<1024x256xbf16, #tpu.memory_space<vmem>>, vector<16x128xbf16>,
    %c1_294 = arith.constant 1 : index
    %c0_295 = arith.constant 0 : index
    %c36_296 = arith.constant 36 : index
    %292 = vector.load %arg1[%c1_294, %c0_295, %c36_296] : memref<2x16x256xf32, #tpu.memory_space<vmem>>, vector<1x16x128xf32>
    %293 = vector.shape_cast %292 : vector<1x16x128xf32> to vector<16x128xf32>
    %294 = arith.truncf %293 : vector<16x128xf32> to vector<16x128xbf16>
    %c576_297 = arith.constant 576 : index
    %c128_298 = arith.constant 128 : index
    %295 = vector.load %arg8[%c576_297, %c128_298] : memref<1024x256xbf16, #tpu.memory_space<vmem>>, vector<16x128xbf16>
    tpu.vector_store %arg8[%c576_297, %c128_298], %294 {strides = array<i32>} : memref<1024x256xbf16, #tpu.memory_space<vmem>>, vector<16x128xbf16>,
    %c0_299 = arith.constant 0 : index
    %c0_300 = arith.constant 0 : index
    %c37 = arith.constant 37 : index
    %296 = vector.load %arg1[%c0_299, %c0_300, %c37] : memref<2x16x256xf32, #tpu.memory_space<vmem>>, vector<1x16x128xf32>
    %297 = vector.shape_cast %296 : vector<1x16x128xf32> to vector<16x128xf32>
    %298 = arith.truncf %297 : vector<16x128xf32> to vector<16x128xbf16>
    %c592 = arith.constant 592 : index
    %c0_301 = arith.constant 0 : index
    %299 = vector.load %arg8[%c592, %c0_301] : memref<1024x256xbf16, #tpu.memory_space<vmem>>, vector<16x128xbf16>
    tpu.vector_store %arg8[%c592, %c0_301], %298 {strides = array<i32>} : memref<1024x256xbf16, #tpu.memory_space<vmem>>, vector<16x128xbf16>,
    %c1_302 = arith.constant 1 : index
    %c0_303 = arith.constant 0 : index
    %c37_304 = arith.constant 37 : index
    %300 = vector.load %arg1[%c1_302, %c0_303, %c37_304] : memref<2x16x256xf32, #tpu.memory_space<vmem>>, vector<1x16x128xf32>
    %301 = vector.shape_cast %300 : vector<1x16x128xf32> to vector<16x128xf32>
    %302 = arith.truncf %301 : vector<16x128xf32> to vector<16x128xbf16>
    %c592_305 = arith.constant 592 : index
    %c128_306 = arith.constant 128 : index
    %303 = vector.load %arg8[%c592_305, %c128_306] : memref<1024x256xbf16, #tpu.memory_space<vmem>>, vector<16x128xbf16>
    tpu.vector_store %arg8[%c592_305, %c128_306], %302 {strides = array<i32>} : memref<1024x256xbf16, #tpu.memory_space<vmem>>, vector<16x128xbf16>,
    %c0_307 = arith.constant 0 : index
    %c0_308 = arith.constant 0 : index
    %c38 = arith.constant 38 : index
    %304 = vector.load %arg1[%c0_307, %c0_308, %c38] : memref<2x16x256xf32, #tpu.memory_space<vmem>>, vector<1x16x128xf32>
    %305 = vector.shape_cast %304 : vector<1x16x128xf32> to vector<16x128xf32>
    %306 = arith.truncf %305 : vector<16x128xf32> to vector<16x128xbf16>
    %c608 = arith.constant 608 : index
    %c0_309 = arith.constant 0 : index
    %307 = vector.load %arg8[%c608, %c0_309] : memref<1024x256xbf16, #tpu.memory_space<vmem>>, vector<16x128xbf16>
    tpu.vector_store %arg8[%c608, %c0_309], %306 {strides = array<i32>} : memref<1024x256xbf16, #tpu.memory_space<vmem>>, vector<16x128xbf16>,
    %c1_310 = arith.constant 1 : index
    %c0_311 = arith.constant 0 : index
    %c38_312 = arith.constant 38 : index
    %308 = vector.load %arg1[%c1_310, %c0_311, %c38_312] : memref<2x16x256xf32, #tpu.memory_space<vmem>>, vector<1x16x128xf32>
    %309 = vector.shape_cast %308 : vector<1x16x128xf32> to vector<16x128xf32>
    %310 = arith.truncf %309 : vector<16x128xf32> to vector<16x128xbf16>
    %c608_313 = arith.constant 608 : index
    %c128_314 = arith.constant 128 : index
    %311 = vector.load %arg8[%c608_313, %c128_314] : memref<1024x256xbf16, #tpu.memory_space<vmem>>, vector<16x128xbf16>
    tpu.vector_store %arg8[%c608_313, %c128_314], %310 {strides = array<i32>} : memref<1024x256xbf16, #tpu.memory_space<vmem>>, vector<16x128xbf16>,
    %c0_315 = arith.constant 0 : index
    %c0_316 = arith.constant 0 : index
    %c39 = arith.constant 39 : index
    %312 = vector.load %arg1[%c0_315, %c0_316, %c39] : memref<2x16x256xf32, #tpu.memory_space<vmem>>, vector<1x16x128xf32>
    %313 = vector.shape_cast %312 : vector<1x16x128xf32> to vector<16x128xf32>
    %314 = arith.truncf %313 : vector<16x128xf32> to vector<16x128xbf16>
    %c624 = arith.constant 624 : index
    %c0_317 = arith.constant 0 : index
    %315 = vector.load %arg8[%c624, %c0_317] : memref<1024x256xbf16, #tpu.memory_space<vmem>>, vector<16x128xbf16>
    tpu.vector_store %arg8[%c624, %c0_317], %314 {strides = array<i32>} : memref<1024x256xbf16, #tpu.memory_space<vmem>>, vector<16x128xbf16>,
    %c1_318 = arith.constant 1 : index
    %c0_319 = arith.constant 0 : index
    %c39_320 = arith.constant 39 : index
    %316 = vector.load %arg1[%c1_318, %c0_319, %c39_320] : memref<2x16x256xf32, #tpu.memory_space<vmem>>, vector<1x16x128xf32>
    %317 = vector.shape_cast %316 : vector<1x16x128xf32> to vector<16x128xf32>
    %318 = arith.truncf %317 : vector<16x128xf32> to vector<16x128xbf16>
    %c624_321 = arith.constant 624 : index
    %c128_322 = arith.constant 128 : index
    %319 = vector.load %arg8[%c624_321, %c128_322] : memref<1024x256xbf16, #tpu.memory_space<vmem>>, vector<16x128xbf16>
    tpu.vector_store %arg8[%c624_321, %c128_322], %318 {strides = array<i32>} : memref<1024x256xbf16, #tpu.memory_space<vmem>>, vector<16x128xbf16>,
    %c0_323 = arith.constant 0 : index
    %c0_324 = arith.constant 0 : index
    %c40 = arith.constant 40 : index
    %320 = vector.load %arg1[%c0_323, %c0_324, %c40] : memref<2x16x256xf32, #tpu.memory_space<vmem>>, vector<1x16x128xf32>
    %321 = vector.shape_cast %320 : vector<1x16x128xf32> to vector<16x128xf32>
    %322 = arith.truncf %321 : vector<16x128xf32> to vector<16x128xbf16>
    %c640 = arith.constant 640 : index
    %c0_325 = arith.constant 0 : index
    %323 = vector.load %arg8[%c640, %c0_325] : memref<1024x256xbf16, #tpu.memory_space<vmem>>, vector<16x128xbf16>
    tpu.vector_store %arg8[%c640, %c0_325], %322 {strides = array<i32>} : memref<1024x256xbf16, #tpu.memory_space<vmem>>, vector<16x128xbf16>,
    %c1_326 = arith.constant 1 : index
    %c0_327 = arith.constant 0 : index
    %c40_328 = arith.constant 40 : index
    %324 = vector.load %arg1[%c1_326, %c0_327, %c40_328] : memref<2x16x256xf32, #tpu.memory_space<vmem>>, vector<1x16x128xf32>
    %325 = vector.shape_cast %324 : vector<1x16x128xf32> to vector<16x128xf32>
    %326 = arith.truncf %325 : vector<16x128xf32> to vector<16x128xbf16>
    %c640_329 = arith.constant 640 : index
    %c128_330 = arith.constant 128 : index
    %327 = vector.load %arg8[%c640_329, %c128_330] : memref<1024x256xbf16, #tpu.memory_space<vmem>>, vector<16x128xbf16>
    tpu.vector_store %arg8[%c640_329, %c128_330], %326 {strides = array<i32>} : memref<1024x256xbf16, #tpu.memory_space<vmem>>, vector<16x128xbf16>,
    %c0_331 = arith.constant 0 : index
    %c0_332 = arith.constant 0 : index
    %c41 = arith.constant 41 : index
    %328 = vector.load %arg1[%c0_331, %c0_332, %c41] : memref<2x16x256xf32, #tpu.memory_space<vmem>>, vector<1x16x128xf32>
    %329 = vector.shape_cast %328 : vector<1x16x128xf32> to vector<16x128xf32>
    %330 = arith.truncf %329 : vector<16x128xf32> to vector<16x128xbf16>
    %c656 = arith.constant 656 : index
    %c0_333 = arith.constant 0 : index
    %331 = vector.load %arg8[%c656, %c0_333] : memref<1024x256xbf16, #tpu.memory_space<vmem>>, vector<16x128xbf16>
    tpu.vector_store %arg8[%c656, %c0_333], %330 {strides = array<i32>} : memref<1024x256xbf16, #tpu.memory_space<vmem>>, vector<16x128xbf16>,
    %c1_334 = arith.constant 1 : index
    %c0_335 = arith.constant 0 : index
    %c41_336 = arith.constant 41 : index
    %332 = vector.load %arg1[%c1_334, %c0_335, %c41_336] : memref<2x16x256xf32, #tpu.memory_space<vmem>>, vector<1x16x128xf32>
    %333 = vector.shape_cast %332 : vector<1x16x128xf32> to vector<16x128xf32>
    %334 = arith.truncf %333 : vector<16x128xf32> to vector<16x128xbf16>
    %c656_337 = arith.constant 656 : index
    %c128_338 = arith.constant 128 : index
    %335 = vector.load %arg8[%c656_337, %c128_338] : memref<1024x256xbf16, #tpu.memory_space<vmem>>, vector<16x128xbf16>
    tpu.vector_store %arg8[%c656_337, %c128_338], %334 {strides = array<i32>} : memref<1024x256xbf16, #tpu.memory_space<vmem>>, vector<16x128xbf16>,
    %c0_339 = arith.constant 0 : index
    %c0_340 = arith.constant 0 : index
    %c42 = arith.constant 42 : index
    %336 = vector.load %arg1[%c0_339, %c0_340, %c42] : memref<2x16x256xf32, #tpu.memory_space<vmem>>, vector<1x16x128xf32>
    %337 = vector.shape_cast %336 : vector<1x16x128xf32> to vector<16x128xf32>
    %338 = arith.truncf %337 : vector<16x128xf32> to vector<16x128xbf16>
    %c672 = arith.constant 672 : index
    %c0_341 = arith.constant 0 : index
    %339 = vector.load %arg8[%c672, %c0_341] : memref<1024x256xbf16, #tpu.memory_space<vmem>>, vector<16x128xbf16>
    tpu.vector_store %arg8[%c672, %c0_341], %338 {strides = array<i32>} : memref<1024x256xbf16, #tpu.memory_space<vmem>>, vector<16x128xbf16>,
    %c1_342 = arith.constant 1 : index
    %c0_343 = arith.constant 0 : index
    %c42_344 = arith.constant 42 : index
    %340 = vector.load %arg1[%c1_342, %c0_343, %c42_344] : memref<2x16x256xf32, #tpu.memory_space<vmem>>, vector<1x16x128xf32>
    %341 = vector.shape_cast %340 : vector<1x16x128xf32> to vector<16x128xf32>
    %342 = arith.truncf %341 : vector<16x128xf32> to vector<16x128xbf16>
    %c672_345 = arith.constant 672 : index
    %c128_346 = arith.constant 128 : index
    %343 = vector.load %arg8[%c672_345, %c128_346] : memref<1024x256xbf16, #tpu.memory_space<vmem>>, vector<16x128xbf16>
    tpu.vector_store %arg8[%c672_345, %c128_346], %342 {strides = array<i32>} : memref<1024x256xbf16, #tpu.memory_space<vmem>>, vector<16x128xbf16>,
    %c0_347 = arith.constant 0 : index
    %c0_348 = arith.constant 0 : index
    %c43 = arith.constant 43 : index
    %344 = vector.load %arg1[%c0_347, %c0_348, %c43] : memref<2x16x256xf32, #tpu.memory_space<vmem>>, vector<1x16x128xf32>
    %345 = vector.shape_cast %344 : vector<1x16x128xf32> to vector<16x128xf32>
    %346 = arith.truncf %345 : vector<16x128xf32> to vector<16x128xbf16>
    %c688 = arith.constant 688 : index
    %c0_349 = arith.constant 0 : index
    %347 = vector.load %arg8[%c688, %c0_349] : memref<1024x256xbf16, #tpu.memory_space<vmem>>, vector<16x128xbf16>
    tpu.vector_store %arg8[%c688, %c0_349], %346 {strides = array<i32>} : memref<1024x256xbf16, #tpu.memory_space<vmem>>, vector<16x128xbf16>,
    %c1_350 = arith.constant 1 : index
    %c0_351 = arith.constant 0 : index
    %c43_352 = arith.constant 43 : index
    %348 = vector.load %arg1[%c1_350, %c0_351, %c43_352] : memref<2x16x256xf32, #tpu.memory_space<vmem>>, vector<1x16x128xf32>
    %349 = vector.shape_cast %348 : vector<1x16x128xf32> to vector<16x128xf32>
    %350 = arith.truncf %349 : vector<16x128xf32> to vector<16x128xbf16>
    %c688_353 = arith.constant 688 : index
    %c128_354 = arith.constant 128 : index
    %351 = vector.load %arg8[%c688_353, %c128_354] : memref<1024x256xbf16, #tpu.memory_space<vmem>>, vector<16x128xbf16>
    tpu.vector_store %arg8[%c688_353, %c128_354], %350 {strides = array<i32>} : memref<1024x256xbf16, #tpu.memory_space<vmem>>, vector<16x128xbf16>,
    %c0_355 = arith.constant 0 : index
    %c0_356 = arith.constant 0 : index
    %c44 = arith.constant 44 : index
    %352 = vector.load %arg1[%c0_355, %c0_356, %c44] : memref<2x16x256xf32, #tpu.memory_space<vmem>>, vector<1x16x128xf32>
    %353 = vector.shape_cast %352 : vector<1x16x128xf32> to vector<16x128xf32>
    %354 = arith.truncf %353 : vector<16x128xf32> to vector<16x128xbf16>
    %c704 = arith.constant 704 : index
    %c0_357 = arith.constant 0 : index
    %355 = vector.load %arg8[%c704, %c0_357] : memref<1024x256xbf16, #tpu.memory_space<vmem>>, vector<16x128xbf16>
    tpu.vector_store %arg8[%c704, %c0_357], %354 {strides = array<i32>} : memref<1024x256xbf16, #tpu.memory_space<vmem>>, vector<16x128xbf16>,
    %c1_358 = arith.constant 1 : index
    %c0_359 = arith.constant 0 : index
    %c44_360 = arith.constant 44 : index
    %356 = vector.load %arg1[%c1_358, %c0_359, %c44_360] : memref<2x16x256xf32, #tpu.memory_space<vmem>>, vector<1x16x128xf32>
    %357 = vector.shape_cast %356 : vector<1x16x128xf32> to vector<16x128xf32>
    %358 = arith.truncf %357 : vector<16x128xf32> to vector<16x128xbf16>
    %c704_361 = arith.constant 704 : index
    %c128_362 = arith.constant 128 : index
    %359 = vector.load %arg8[%c704_361, %c128_362] : memref<1024x256xbf16, #tpu.memory_space<vmem>>, vector<16x128xbf16>
    tpu.vector_store %arg8[%c704_361, %c128_362], %358 {strides = array<i32>} : memref<1024x256xbf16, #tpu.memory_space<vmem>>, vector<16x128xbf16>,
    %c0_363 = arith.constant 0 : index
    %c0_364 = arith.constant 0 : index
    %c45 = arith.constant 45 : index
    %360 = vector.load %arg1[%c0_363, %c0_364, %c45] : memref<2x16x256xf32, #tpu.memory_space<vmem>>, vector<1x16x128xf32>
    %361 = vector.shape_cast %360 : vector<1x16x128xf32> to vector<16x128xf32>
    %362 = arith.truncf %361 : vector<16x128xf32> to vector<16x128xbf16>
    %c720 = arith.constant 720 : index
    %c0_365 = arith.constant 0 : index
    %363 = vector.load %arg8[%c720, %c0_365] : memref<1024x256xbf16, #tpu.memory_space<vmem>>, vector<16x128xbf16>
    tpu.vector_store %arg8[%c720, %c0_365], %362 {strides = array<i32>} : memref<1024x256xbf16, #tpu.memory_space<vmem>>, vector<16x128xbf16>,
    %c1_366 = arith.constant 1 : index
    %c0_367 = arith.constant 0 : index
    %c45_368 = arith.constant 45 : index
    %364 = vector.load %arg1[%c1_366, %c0_367, %c45_368] : memref<2x16x256xf32, #tpu.memory_space<vmem>>, vector<1x16x128xf32>
    %365 = vector.shape_cast %364 : vector<1x16x128xf32> to vector<16x128xf32>
    %366 = arith.truncf %365 : vector<16x128xf32> to vector<16x128xbf16>
    %c720_369 = arith.constant 720 : index
    %c128_370 = arith.constant 128 : index
    %367 = vector.load %arg8[%c720_369, %c128_370] : memref<1024x256xbf16, #tpu.memory_space<vmem>>, vector<16x128xbf16>
    tpu.vector_store %arg8[%c720_369, %c128_370], %366 {strides = array<i32>} : memref<1024x256xbf16, #tpu.memory_space<vmem>>, vector<16x128xbf16>,
    %c0_371 = arith.constant 0 : index
    %c0_372 = arith.constant 0 : index
    %c46 = arith.constant 46 : index
    %368 = vector.load %arg1[%c0_371, %c0_372, %c46] : memref<2x16x256xf32, #tpu.memory_space<vmem>>, vector<1x16x128xf32>
    %369 = vector.shape_cast %368 : vector<1x16x128xf32> to vector<16x128xf32>
    %370 = arith.truncf %369 : vector<16x128xf32> to vector<16x128xbf16>
    %c736 = arith.constant 736 : index
    %c0_373 = arith.constant 0 : index
    %371 = vector.load %arg8[%c736, %c0_373] : memref<1024x256xbf16, #tpu.memory_space<vmem>>, vector<16x128xbf16>
    tpu.vector_store %arg8[%c736, %c0_373], %370 {strides = array<i32>} : memref<1024x256xbf16, #tpu.memory_space<vmem>>, vector<16x128xbf16>,
    %c1_374 = arith.constant 1 : index
    %c0_375 = arith.constant 0 : index
    %c46_376 = arith.constant 46 : index
    %372 = vector.load %arg1[%c1_374, %c0_375, %c46_376] : memref<2x16x256xf32, #tpu.memory_space<vmem>>, vector<1x16x128xf32>
    %373 = vector.shape_cast %372 : vector<1x16x128xf32> to vector<16x128xf32>
    %374 = arith.truncf %373 : vector<16x128xf32> to vector<16x128xbf16>
    %c736_377 = arith.constant 736 : index
    %c128_378 = arith.constant 128 : index
    %375 = vector.load %arg8[%c736_377, %c128_378] : memref<1024x256xbf16, #tpu.memory_space<vmem>>, vector<16x128xbf16>
    tpu.vector_store %arg8[%c736_377, %c128_378], %374 {strides = array<i32>} : memref<1024x256xbf16, #tpu.memory_space<vmem>>, vector<16x128xbf16>,
    %c0_379 = arith.constant 0 : index
    %c0_380 = arith.constant 0 : index
    %c47 = arith.constant 47 : index
    %376 = vector.load %arg1[%c0_379, %c0_380, %c47] : memref<2x16x256xf32, #tpu.memory_space<vmem>>, vector<1x16x128xf32>
    %377 = vector.shape_cast %376 : vector<1x16x128xf32> to vector<16x128xf32>
    %378 = arith.truncf %377 : vector<16x128xf32> to vector<16x128xbf16>
    %c752 = arith.constant 752 : index
    %c0_381 = arith.constant 0 : index
    %379 = vector.load %arg8[%c752, %c0_381] : memref<1024x256xbf16, #tpu.memory_space<vmem>>, vector<16x128xbf16>
    tpu.vector_store %arg8[%c752, %c0_381], %378 {strides = array<i32>} : memref<1024x256xbf16, #tpu.memory_space<vmem>>, vector<16x128xbf16>,
    %c1_382 = arith.constant 1 : index
    %c0_383 = arith.constant 0 : index
    %c47_384 = arith.constant 47 : index
    %380 = vector.load %arg1[%c1_382, %c0_383, %c47_384] : memref<2x16x256xf32, #tpu.memory_space<vmem>>, vector<1x16x128xf32>
    %381 = vector.shape_cast %380 : vector<1x16x128xf32> to vector<16x128xf32>
    %382 = arith.truncf %381 : vector<16x128xf32> to vector<16x128xbf16>
    %c752_385 = arith.constant 752 : index
    %c128_386 = arith.constant 128 : index
    %383 = vector.load %arg8[%c752_385, %c128_386] : memref<1024x256xbf16, #tpu.memory_space<vmem>>, vector<16x128xbf16>
    tpu.vector_store %arg8[%c752_385, %c128_386], %382 {strides = array<i32>} : memref<1024x256xbf16, #tpu.memory_space<vmem>>, vector<16x128xbf16>,
    %c0_387 = arith.constant 0 : index
    %c0_388 = arith.constant 0 : index
    %c48_389 = arith.constant 48 : index
    %384 = vector.load %arg1[%c0_387, %c0_388, %c48_389] : memref<2x16x256xf32, #tpu.memory_space<vmem>>, vector<1x16x128xf32>
    %385 = vector.shape_cast %384 : vector<1x16x128xf32> to vector<16x128xf32>
    %386 = arith.truncf %385 : vector<16x128xf32> to vector<16x128xbf16>
    %c768 = arith.constant 768 : index
    %c0_390 = arith.constant 0 : index
    %387 = vector.load %arg8[%c768, %c0_390] : memref<1024x256xbf16, #tpu.memory_space<vmem>>, vector<16x128xbf16>
    tpu.vector_store %arg8[%c768, %c0_390], %386 {strides = array<i32>} : memref<1024x256xbf16, #tpu.memory_space<vmem>>, vector<16x128xbf16>,
    %c1_391 = arith.constant 1 : index
    %c0_392 = arith.constant 0 : index
    %c48_393 = arith.constant 48 : index
    %388 = vector.load %arg1[%c1_391, %c0_392, %c48_393] : memref<2x16x256xf32, #tpu.memory_space<vmem>>, vector<1x16x128xf32>
    %389 = vector.shape_cast %388 : vector<1x16x128xf32> to vector<16x128xf32>
    %390 = arith.truncf %389 : vector<16x128xf32> to vector<16x128xbf16>
    %c768_394 = arith.constant 768 : index
    %c128_395 = arith.constant 128 : index
    %391 = vector.load %arg8[%c768_394, %c128_395] : memref<1024x256xbf16, #tpu.memory_space<vmem>>, vector<16x128xbf16>
    tpu.vector_store %arg8[%c768_394, %c128_395], %390 {strides = array<i32>} : memref<1024x256xbf16, #tpu.memory_space<vmem>>, vector<16x128xbf16>,
    %c0_396 = arith.constant 0 : index
    %c0_397 = arith.constant 0 : index
    %c49 = arith.constant 49 : index
    %392 = vector.load %arg1[%c0_396, %c0_397, %c49] : memref<2x16x256xf32, #tpu.memory_space<vmem>>, vector<1x16x128xf32>
    %393 = vector.shape_cast %392 : vector<1x16x128xf32> to vector<16x128xf32>
    %394 = arith.truncf %393 : vector<16x128xf32> to vector<16x128xbf16>
    %c784 = arith.constant 784 : index
    %c0_398 = arith.constant 0 : index
    %395 = vector.load %arg8[%c784, %c0_398] : memref<1024x256xbf16, #tpu.memory_space<vmem>>, vector<16x128xbf16>
    tpu.vector_store %arg8[%c784, %c0_398], %394 {strides = array<i32>} : memref<1024x256xbf16, #tpu.memory_space<vmem>>, vector<16x128xbf16>,
    %c1_399 = arith.constant 1 : index
    %c0_400 = arith.constant 0 : index
    %c49_401 = arith.constant 49 : index
    %396 = vector.load %arg1[%c1_399, %c0_400, %c49_401] : memref<2x16x256xf32, #tpu.memory_space<vmem>>, vector<1x16x128xf32>
    %397 = vector.shape_cast %396 : vector<1x16x128xf32> to vector<16x128xf32>
    %398 = arith.truncf %397 : vector<16x128xf32> to vector<16x128xbf16>
    %c784_402 = arith.constant 784 : index
    %c128_403 = arith.constant 128 : index
    %399 = vector.load %arg8[%c784_402, %c128_403] : memref<1024x256xbf16, #tpu.memory_space<vmem>>, vector<16x128xbf16>
    tpu.vector_store %arg8[%c784_402, %c128_403], %398 {strides = array<i32>} : memref<1024x256xbf16, #tpu.memory_space<vmem>>, vector<16x128xbf16>,
    %c0_404 = arith.constant 0 : index
    %c0_405 = arith.constant 0 : index
    %c50 = arith.constant 50 : index
    %400 = vector.load %arg1[%c0_404, %c0_405, %c50] : memref<2x16x256xf32, #tpu.memory_space<vmem>>, vector<1x16x128xf32>
    %401 = vector.shape_cast %400 : vector<1x16x128xf32> to vector<16x128xf32>
    %402 = arith.truncf %401 : vector<16x128xf32> to vector<16x128xbf16>
    %c800 = arith.constant 800 : index
    %c0_406 = arith.constant 0 : index
    %403 = vector.load %arg8[%c800, %c0_406] : memref<1024x256xbf16, #tpu.memory_space<vmem>>, vector<16x128xbf16>
    tpu.vector_store %arg8[%c800, %c0_406], %402 {strides = array<i32>} : memref<1024x256xbf16, #tpu.memory_space<vmem>>, vector<16x128xbf16>,
    %c1_407 = arith.constant 1 : index
    %c0_408 = arith.constant 0 : index
    %c50_409 = arith.constant 50 : index
    %404 = vector.load %arg1[%c1_407, %c0_408, %c50_409] : memref<2x16x256xf32, #tpu.memory_space<vmem>>, vector<1x16x128xf32>
    %405 = vector.shape_cast %404 : vector<1x16x128xf32> to vector<16x128xf32>
    %406 = arith.truncf %405 : vector<16x128xf32> to vector<16x128xbf16>
    %c800_410 = arith.constant 800 : index
    %c128_411 = arith.constant 128 : index
    %407 = vector.load %arg8[%c800_410, %c128_411] : memref<1024x256xbf16, #tpu.memory_space<vmem>>, vector<16x128xbf16>
    tpu.vector_store %arg8[%c800_410, %c128_411], %406 {strides = array<i32>} : memref<1024x256xbf16, #tpu.memory_space<vmem>>, vector<16x128xbf16>,
    %c0_412 = arith.constant 0 : index
    %c0_413 = arith.constant 0 : index
    %c51 = arith.constant 51 : index
    %408 = vector.load %arg1[%c0_412, %c0_413, %c51] : memref<2x16x256xf32, #tpu.memory_space<vmem>>, vector<1x16x128xf32>
    %409 = vector.shape_cast %408 : vector<1x16x128xf32> to vector<16x128xf32>
    %410 = arith.truncf %409 : vector<16x128xf32> to vector<16x128xbf16>
    %c816 = arith.constant 816 : index
    %c0_414 = arith.constant 0 : index
    %411 = vector.load %arg8[%c816, %c0_414] : memref<1024x256xbf16, #tpu.memory_space<vmem>>, vector<16x128xbf16>
    tpu.vector_store %arg8[%c816, %c0_414], %410 {strides = array<i32>} : memref<1024x256xbf16, #tpu.memory_space<vmem>>, vector<16x128xbf16>,
    %c1_415 = arith.constant 1 : index
    %c0_416 = arith.constant 0 : index
    %c51_417 = arith.constant 51 : index
    %412 = vector.load %arg1[%c1_415, %c0_416, %c51_417] : memref<2x16x256xf32, #tpu.memory_space<vmem>>, vector<1x16x128xf32>
    %413 = vector.shape_cast %412 : vector<1x16x128xf32> to vector<16x128xf32>
    %414 = arith.truncf %413 : vector<16x128xf32> to vector<16x128xbf16>
    %c816_418 = arith.constant 816 : index
    %c128_419 = arith.constant 128 : index
    %415 = vector.load %arg8[%c816_418, %c128_419] : memref<1024x256xbf16, #tpu.memory_space<vmem>>, vector<16x128xbf16>
    tpu.vector_store %arg8[%c816_418, %c128_419], %414 {strides = array<i32>} : memref<1024x256xbf16, #tpu.memory_space<vmem>>, vector<16x128xbf16>,
    %c0_420 = arith.constant 0 : index
    %c0_421 = arith.constant 0 : index
    %c52 = arith.constant 52 : index
    %416 = vector.load %arg1[%c0_420, %c0_421, %c52] : memref<2x16x256xf32, #tpu.memory_space<vmem>>, vector<1x16x128xf32>
    %417 = vector.shape_cast %416 : vector<1x16x128xf32> to vector<16x128xf32>
    %418 = arith.truncf %417 : vector<16x128xf32> to vector<16x128xbf16>
    %c832 = arith.constant 832 : index
    %c0_422 = arith.constant 0 : index
    %419 = vector.load %arg8[%c832, %c0_422] : memref<1024x256xbf16, #tpu.memory_space<vmem>>, vector<16x128xbf16>
    tpu.vector_store %arg8[%c832, %c0_422], %418 {strides = array<i32>} : memref<1024x256xbf16, #tpu.memory_space<vmem>>, vector<16x128xbf16>,
    %c1_423 = arith.constant 1 : index
    %c0_424 = arith.constant 0 : index
    %c52_425 = arith.constant 52 : index
    %420 = vector.load %arg1[%c1_423, %c0_424, %c52_425] : memref<2x16x256xf32, #tpu.memory_space<vmem>>, vector<1x16x128xf32>
    %421 = vector.shape_cast %420 : vector<1x16x128xf32> to vector<16x128xf32>
    %422 = arith.truncf %421 : vector<16x128xf32> to vector<16x128xbf16>
    %c832_426 = arith.constant 832 : index
    %c128_427 = arith.constant 128 : index
    %423 = vector.load %arg8[%c832_426, %c128_427] : memref<1024x256xbf16, #tpu.memory_space<vmem>>, vector<16x128xbf16>
    tpu.vector_store %arg8[%c832_426, %c128_427], %422 {strides = array<i32>} : memref<1024x256xbf16, #tpu.memory_space<vmem>>, vector<16x128xbf16>,
    %c0_428 = arith.constant 0 : index
    %c0_429 = arith.constant 0 : index
    %c53 = arith.constant 53 : index
    %424 = vector.load %arg1[%c0_428, %c0_429, %c53] : memref<2x16x256xf32, #tpu.memory_space<vmem>>, vector<1x16x128xf32>
    %425 = vector.shape_cast %424 : vector<1x16x128xf32> to vector<16x128xf32>
    %426 = arith.truncf %425 : vector<16x128xf32> to vector<16x128xbf16>
    %c848 = arith.constant 848 : index
    %c0_430 = arith.constant 0 : index
    %427 = vector.load %arg8[%c848, %c0_430] : memref<1024x256xbf16, #tpu.memory_space<vmem>>, vector<16x128xbf16>
    tpu.vector_store %arg8[%c848, %c0_430], %426 {strides = array<i32>} : memref<1024x256xbf16, #tpu.memory_space<vmem>>, vector<16x128xbf16>,
    %c1_431 = arith.constant 1 : index
    %c0_432 = arith.constant 0 : index
    %c53_433 = arith.constant 53 : index
    %428 = vector.load %arg1[%c1_431, %c0_432, %c53_433] : memref<2x16x256xf32, #tpu.memory_space<vmem>>, vector<1x16x128xf32>
    %429 = vector.shape_cast %428 : vector<1x16x128xf32> to vector<16x128xf32>
    %430 = arith.truncf %429 : vector<16x128xf32> to vector<16x128xbf16>
    %c848_434 = arith.constant 848 : index
    %c128_435 = arith.constant 128 : index
    %431 = vector.load %arg8[%c848_434, %c128_435] : memref<1024x256xbf16, #tpu.memory_space<vmem>>, vector<16x128xbf16>
    tpu.vector_store %arg8[%c848_434, %c128_435], %430 {strides = array<i32>} : memref<1024x256xbf16, #tpu.memory_space<vmem>>, vector<16x128xbf16>,
    %c0_436 = arith.constant 0 : index
    %c0_437 = arith.constant 0 : index
    %c54 = arith.constant 54 : index
    %432 = vector.load %arg1[%c0_436, %c0_437, %c54] : memref<2x16x256xf32, #tpu.memory_space<vmem>>, vector<1x16x128xf32>
    %433 = vector.shape_cast %432 : vector<1x16x128xf32> to vector<16x128xf32>
    %434 = arith.truncf %433 : vector<16x128xf32> to vector<16x128xbf16>
    %c864 = arith.constant 864 : index
    %c0_438 = arith.constant 0 : index
    %435 = vector.load %arg8[%c864, %c0_438] : memref<1024x256xbf16, #tpu.memory_space<vmem>>, vector<16x128xbf16>
    tpu.vector_store %arg8[%c864, %c0_438], %434 {strides = array<i32>} : memref<1024x256xbf16, #tpu.memory_space<vmem>>, vector<16x128xbf16>,
    %c1_439 = arith.constant 1 : index
    %c0_440 = arith.constant 0 : index
    %c54_441 = arith.constant 54 : index
    %436 = vector.load %arg1[%c1_439, %c0_440, %c54_441] : memref<2x16x256xf32, #tpu.memory_space<vmem>>, vector<1x16x128xf32>
    %437 = vector.shape_cast %436 : vector<1x16x128xf32> to vector<16x128xf32>
    %438 = arith.truncf %437 : vector<16x128xf32> to vector<16x128xbf16>
    %c864_442 = arith.constant 864 : index
    %c128_443 = arith.constant 128 : index
    %439 = vector.load %arg8[%c864_442, %c128_443] : memref<1024x256xbf16, #tpu.memory_space<vmem>>, vector<16x128xbf16>
    tpu.vector_store %arg8[%c864_442, %c128_443], %438 {strides = array<i32>} : memref<1024x256xbf16, #tpu.memory_space<vmem>>, vector<16x128xbf16>,
    %c0_444 = arith.constant 0 : index
    %c0_445 = arith.constant 0 : index
    %c55 = arith.constant 55 : index
    %440 = vector.load %arg1[%c0_444, %c0_445, %c55] : memref<2x16x256xf32, #tpu.memory_space<vmem>>, vector<1x16x128xf32>
    %441 = vector.shape_cast %440 : vector<1x16x128xf32> to vector<16x128xf32>
    %442 = arith.truncf %441 : vector<16x128xf32> to vector<16x128xbf16>
    %c880 = arith.constant 880 : index
    %c0_446 = arith.constant 0 : index
    %443 = vector.load %arg8[%c880, %c0_446] : memref<1024x256xbf16, #tpu.memory_space<vmem>>, vector<16x128xbf16>
    tpu.vector_store %arg8[%c880, %c0_446], %442 {strides = array<i32>} : memref<1024x256xbf16, #tpu.memory_space<vmem>>, vector<16x128xbf16>,
    %c1_447 = arith.constant 1 : index
    %c0_448 = arith.constant 0 : index
    %c55_449 = arith.constant 55 : index
    %444 = vector.load %arg1[%c1_447, %c0_448, %c55_449] : memref<2x16x256xf32, #tpu.memory_space<vmem>>, vector<1x16x128xf32>
    %445 = vector.shape_cast %444 : vector<1x16x128xf32> to vector<16x128xf32>
    %446 = arith.truncf %445 : vector<16x128xf32> to vector<16x128xbf16>
    %c880_450 = arith.constant 880 : index
    %c128_451 = arith.constant 128 : index
    %447 = vector.load %arg8[%c880_450, %c128_451] : memref<1024x256xbf16, #tpu.memory_space<vmem>>, vector<16x128xbf16>
    tpu.vector_store %arg8[%c880_450, %c128_451], %446 {strides = array<i32>} : memref<1024x256xbf16, #tpu.memory_space<vmem>>, vector<16x128xbf16>,
    %c0_452 = arith.constant 0 : index
    %c0_453 = arith.constant 0 : index
    %c56 = arith.constant 56 : index
    %448 = vector.load %arg1[%c0_452, %c0_453, %c56] : memref<2x16x256xf32, #tpu.memory_space<vmem>>, vector<1x16x128xf32>
    %449 = vector.shape_cast %448 : vector<1x16x128xf32> to vector<16x128xf32>
    %450 = arith.truncf %449 : vector<16x128xf32> to vector<16x128xbf16>
    %c896 = arith.constant 896 : index
    %c0_454 = arith.constant 0 : index
    %451 = vector.load %arg8[%c896, %c0_454] : memref<1024x256xbf16, #tpu.memory_space<vmem>>, vector<16x128xbf16>
    tpu.vector_store %arg8[%c896, %c0_454], %450 {strides = array<i32>} : memref<1024x256xbf16, #tpu.memory_space<vmem>>, vector<16x128xbf16>,
    %c1_455 = arith.constant 1 : index
    %c0_456 = arith.constant 0 : index
    %c56_457 = arith.constant 56 : index
    %452 = vector.load %arg1[%c1_455, %c0_456, %c56_457] : memref<2x16x256xf32, #tpu.memory_space<vmem>>, vector<1x16x128xf32>
    %453 = vector.shape_cast %452 : vector<1x16x128xf32> to vector<16x128xf32>
    %454 = arith.truncf %453 : vector<16x128xf32> to vector<16x128xbf16>
    %c896_458 = arith.constant 896 : index
    %c128_459 = arith.constant 128 : index
    %455 = vector.load %arg8[%c896_458, %c128_459] : memref<1024x256xbf16, #tpu.memory_space<vmem>>, vector<16x128xbf16>
    tpu.vector_store %arg8[%c896_458, %c128_459], %454 {strides = array<i32>} : memref<1024x256xbf16, #tpu.memory_space<vmem>>, vector<16x128xbf16>,
    %c0_460 = arith.constant 0 : index
    %c0_461 = arith.constant 0 : index
    %c57 = arith.constant 57 : index
    %456 = vector.load %arg1[%c0_460, %c0_461, %c57] : memref<2x16x256xf32, #tpu.memory_space<vmem>>, vector<1x16x128xf32>
    %457 = vector.shape_cast %456 : vector<1x16x128xf32> to vector<16x128xf32>
    %458 = arith.truncf %457 : vector<16x128xf32> to vector<16x128xbf16>
    %c912 = arith.constant 912 : index
    %c0_462 = arith.constant 0 : index
    %459 = vector.load %arg8[%c912, %c0_462] : memref<1024x256xbf16, #tpu.memory_space<vmem>>, vector<16x128xbf16>
    tpu.vector_store %arg8[%c912, %c0_462], %458 {strides = array<i32>} : memref<1024x256xbf16, #tpu.memory_space<vmem>>, vector<16x128xbf16>,
    %c1_463 = arith.constant 1 : index
    %c0_464 = arith.constant 0 : index
    %c57_465 = arith.constant 57 : index
    %460 = vector.load %arg1[%c1_463, %c0_464, %c57_465] : memref<2x16x256xf32, #tpu.memory_space<vmem>>, vector<1x16x128xf32>
    %461 = vector.shape_cast %460 : vector<1x16x128xf32> to vector<16x128xf32>
    %462 = arith.truncf %461 : vector<16x128xf32> to vector<16x128xbf16>
    %c912_466 = arith.constant 912 : index
    %c128_467 = arith.constant 128 : index
    %463 = vector.load %arg8[%c912_466, %c128_467] : memref<1024x256xbf16, #tpu.memory_space<vmem>>, vector<16x128xbf16>
    tpu.vector_store %arg8[%c912_466, %c128_467], %462 {strides = array<i32>} : memref<1024x256xbf16, #tpu.memory_space<vmem>>, vector<16x128xbf16>,
    %c0_468 = arith.constant 0 : index
    %c0_469 = arith.constant 0 : index
    %c58 = arith.constant 58 : index
    %464 = vector.load %arg1[%c0_468, %c0_469, %c58] : memref<2x16x256xf32, #tpu.memory_space<vmem>>, vector<1x16x128xf32>
    %465 = vector.shape_cast %464 : vector<1x16x128xf32> to vector<16x128xf32>
    %466 = arith.truncf %465 : vector<16x128xf32> to vector<16x128xbf16>
    %c928 = arith.constant 928 : index
    %c0_470 = arith.constant 0 : index
    %467 = vector.load %arg8[%c928, %c0_470] : memref<1024x256xbf16, #tpu.memory_space<vmem>>, vector<16x128xbf16>
    tpu.vector_store %arg8[%c928, %c0_470], %466 {strides = array<i32>} : memref<1024x256xbf16, #tpu.memory_space<vmem>>, vector<16x128xbf16>,
    %c1_471 = arith.constant 1 : index
    %c0_472 = arith.constant 0 : index
    %c58_473 = arith.constant 58 : index
    %468 = vector.load %arg1[%c1_471, %c0_472, %c58_473] : memref<2x16x256xf32, #tpu.memory_space<vmem>>, vector<1x16x128xf32>
    %469 = vector.shape_cast %468 : vector<1x16x128xf32> to vector<16x128xf32>
    %470 = arith.truncf %469 : vector<16x128xf32> to vector<16x128xbf16>
    %c928_474 = arith.constant 928 : index
    %c128_475 = arith.constant 128 : index
    %471 = vector.load %arg8[%c928_474, %c128_475] : memref<1024x256xbf16, #tpu.memory_space<vmem>>, vector<16x128xbf16>
    tpu.vector_store %arg8[%c928_474, %c128_475], %470 {strides = array<i32>} : memref<1024x256xbf16, #tpu.memory_space<vmem>>, vector<16x128xbf16>,
    %c0_476 = arith.constant 0 : index
    %c0_477 = arith.constant 0 : index
    %c59 = arith.constant 59 : index
    %472 = vector.load %arg1[%c0_476, %c0_477, %c59] : memref<2x16x256xf32, #tpu.memory_space<vmem>>, vector<1x16x128xf32>
    %473 = vector.shape_cast %472 : vector<1x16x128xf32> to vector<16x128xf32>
    %474 = arith.truncf %473 : vector<16x128xf32> to vector<16x128xbf16>
    %c944 = arith.constant 944 : index
    %c0_478 = arith.constant 0 : index
    %475 = vector.load %arg8[%c944, %c0_478] : memref<1024x256xbf16, #tpu.memory_space<vmem>>, vector<16x128xbf16>
    tpu.vector_store %arg8[%c944, %c0_478], %474 {strides = array<i32>} : memref<1024x256xbf16, #tpu.memory_space<vmem>>, vector<16x128xbf16>,
    %c1_479 = arith.constant 1 : index
    %c0_480 = arith.constant 0 : index
    %c59_481 = arith.constant 59 : index
    %476 = vector.load %arg1[%c1_479, %c0_480, %c59_481] : memref<2x16x256xf32, #tpu.memory_space<vmem>>, vector<1x16x128xf32>
    %477 = vector.shape_cast %476 : vector<1x16x128xf32> to vector<16x128xf32>
    %478 = arith.truncf %477 : vector<16x128xf32> to vector<16x128xbf16>
    %c944_482 = arith.constant 944 : index
    %c128_483 = arith.constant 128 : index
    %479 = vector.load %arg8[%c944_482, %c128_483] : memref<1024x256xbf16, #tpu.memory_space<vmem>>, vector<16x128xbf16>
    tpu.vector_store %arg8[%c944_482, %c128_483], %478 {strides = array<i32>} : memref<1024x256xbf16, #tpu.memory_space<vmem>>, vector<16x128xbf16>,
    %c0_484 = arith.constant 0 : index
    %c0_485 = arith.constant 0 : index
    %c60 = arith.constant 60 : index
    %480 = vector.load %arg1[%c0_484, %c0_485, %c60] : memref<2x16x256xf32, #tpu.memory_space<vmem>>, vector<1x16x128xf32>
    %481 = vector.shape_cast %480 : vector<1x16x128xf32> to vector<16x128xf32>
    %482 = arith.truncf %481 : vector<16x128xf32> to vector<16x128xbf16>
    %c960 = arith.constant 960 : index
    %c0_486 = arith.constant 0 : index
    %483 = vector.load %arg8[%c960, %c0_486] : memref<1024x256xbf16, #tpu.memory_space<vmem>>, vector<16x128xbf16>
    tpu.vector_store %arg8[%c960, %c0_486], %482 {strides = array<i32>} : memref<1024x256xbf16, #tpu.memory_space<vmem>>, vector<16x128xbf16>,
    %c1_487 = arith.constant 1 : index
    %c0_488 = arith.constant 0 : index
    %c60_489 = arith.constant 60 : index
    %484 = vector.load %arg1[%c1_487, %c0_488, %c60_489] : memref<2x16x256xf32, #tpu.memory_space<vmem>>, vector<1x16x128xf32>
    %485 = vector.shape_cast %484 : vector<1x16x128xf32> to vector<16x128xf32>
    %486 = arith.truncf %485 : vector<16x128xf32> to vector<16x128xbf16>
    %c960_490 = arith.constant 960 : index
    %c128_491 = arith.constant 128 : index
    %487 = vector.load %arg8[%c960_490, %c128_491] : memref<1024x256xbf16, #tpu.memory_space<vmem>>, vector<16x128xbf16>
    tpu.vector_store %arg8[%c960_490, %c128_491], %486 {strides = array<i32>} : memref<1024x256xbf16, #tpu.memory_space<vmem>>, vector<16x128xbf16>,
    %c0_492 = arith.constant 0 : index
    %c0_493 = arith.constant 0 : index
    %c61 = arith.constant 61 : index
    %488 = vector.load %arg1[%c0_492, %c0_493, %c61] : memref<2x16x256xf32, #tpu.memory_space<vmem>>, vector<1x16x128xf32>
    %489 = vector.shape_cast %488 : vector<1x16x128xf32> to vector<16x128xf32>
    %490 = arith.truncf %489 : vector<16x128xf32> to vector<16x128xbf16>
    %c976 = arith.constant 976 : index
    %c0_494 = arith.constant 0 : index
    %491 = vector.load %arg8[%c976, %c0_494] : memref<1024x256xbf16, #tpu.memory_space<vmem>>, vector<16x128xbf16>
    tpu.vector_store %arg8[%c976, %c0_494], %490 {strides = array<i32>} : memref<1024x256xbf16, #tpu.memory_space<vmem>>, vector<16x128xbf16>,
    %c1_495 = arith.constant 1 : index
    %c0_496 = arith.constant 0 : index
    %c61_497 = arith.constant 61 : index
    %492 = vector.load %arg1[%c1_495, %c0_496, %c61_497] : memref<2x16x256xf32, #tpu.memory_space<vmem>>, vector<1x16x128xf32>
    %493 = vector.shape_cast %492 : vector<1x16x128xf32> to vector<16x128xf32>
    %494 = arith.truncf %493 : vector<16x128xf32> to vector<16x128xbf16>
    %c976_498 = arith.constant 976 : index
    %c128_499 = arith.constant 128 : index
    %495 = vector.load %arg8[%c976_498, %c128_499] : memref<1024x256xbf16, #tpu.memory_space<vmem>>, vector<16x128xbf16>
    tpu.vector_store %arg8[%c976_498, %c128_499], %494 {strides = array<i32>} : memref<1024x256xbf16, #tpu.memory_space<vmem>>, vector<16x128xbf16>,
    %c0_500 = arith.constant 0 : index
    %c0_501 = arith.constant 0 : index
    %c62 = arith.constant 62 : index
    %496 = vector.load %arg1[%c0_500, %c0_501, %c62] : memref<2x16x256xf32, #tpu.memory_space<vmem>>, vector<1x16x128xf32>
    %497 = vector.shape_cast %496 : vector<1x16x128xf32> to vector<16x128xf32>
    %498 = arith.truncf %497 : vector<16x128xf32> to vector<16x128xbf16>
    %c992 = arith.constant 992 : index
    %c0_502 = arith.constant 0 : index
    %499 = vector.load %arg8[%c992, %c0_502] : memref<1024x256xbf16, #tpu.memory_space<vmem>>, vector<16x128xbf16>
    tpu.vector_store %arg8[%c992, %c0_502], %498 {strides = array<i32>} : memref<1024x256xbf16, #tpu.memory_space<vmem>>, vector<16x128xbf16>,
    %c1_503 = arith.constant 1 : index
    %c0_504 = arith.constant 0 : index
    %c62_505 = arith.constant 62 : index
    %500 = vector.load %arg1[%c1_503, %c0_504, %c62_505] : memref<2x16x256xf32, #tpu.memory_space<vmem>>, vector<1x16x128xf32>
    %501 = vector.shape_cast %500 : vector<1x16x128xf32> to vector<16x128xf32>
    %502 = arith.truncf %501 : vector<16x128xf32> to vector<16x128xbf16>
    %c992_506 = arith.constant 992 : index
    %c128_507 = arith.constant 128 : index
    %503 = vector.load %arg8[%c992_506, %c128_507] : memref<1024x256xbf16, #tpu.memory_space<vmem>>, vector<16x128xbf16>
    tpu.vector_store %arg8[%c992_506, %c128_507], %502 {strides = array<i32>} : memref<1024x256xbf16, #tpu.memory_space<vmem>>, vector<16x128xbf16>,
    %c0_508 = arith.constant 0 : index
    %c0_509 = arith.constant 0 : index
    %c63 = arith.constant 63 : index
    %504 = vector.load %arg1[%c0_508, %c0_509, %c63] : memref<2x16x256xf32, #tpu.memory_space<vmem>>, vector<1x16x128xf32>
    %505 = vector.shape_cast %504 : vector<1x16x128xf32> to vector<16x128xf32>
    %506 = arith.truncf %505 : vector<16x128xf32> to vector<16x128xbf16>
    %c1008 = arith.constant 1008 : index
    %c0_510 = arith.constant 0 : index
    %507 = vector.load %arg8[%c1008, %c0_510] : memref<1024x256xbf16, #tpu.memory_space<vmem>>, vector<16x128xbf16>
    tpu.vector_store %arg8[%c1008, %c0_510], %506 {strides = array<i32>} : memref<1024x256xbf16, #tpu.memory_space<vmem>>, vector<16x128xbf16>,
    %c1_511 = arith.constant 1 : index
    %c0_512 = arith.constant 0 : index
    %c63_513 = arith.constant 63 : index
    %508 = vector.load %arg1[%c1_511, %c0_512, %c63_513] : memref<2x16x256xf32, #tpu.memory_space<vmem>>, vector<1x16x128xf32>
    %509 = vector.shape_cast %508 : vector<1x16x128xf32> to vector<16x128xf32>
    %510 = arith.truncf %509 : vector<16x128xf32> to vector<16x128xbf16>
    %c1008_514 = arith.constant 1008 : index
    %c128_515 = arith.constant 128 : index
    %511 = vector.load %arg8[%c1008_514, %c128_515] : memref<1024x256xbf16, #tpu.memory_space<vmem>>, vector<16x128xbf16>
    tpu.vector_store %arg8[%c1008_514, %c128_515], %510 {strides = array<i32>} : memref<1024x256xbf16, #tpu.memory_space<vmem>>, vector<16x128xbf16>,
    %c0_516 = arith.constant 0 : index
    %c0_517 = arith.constant 0 : index
    %512 = vector.load %arg2[%c0_516, %c0_517] : memref<16x1024xbf16, #tpu.memory_space<vmem>>, vector<16x1024xbf16>
    %c0_518 = arith.constant 0 : index
    %c0_519 = arith.constant 0 : index
    %513 = vector.load %arg8[%c0_518, %c0_519] : memref<1024x256xbf16, #tpu.memory_space<vmem>>, vector<1024x256xbf16>
    %cst = arith.constant dense<0.000000e+00> : vector<16x256xf32>
    %514 = tpu.matmul %512, %513, %cst {dimension_numbers = #tpu.dot_dimension_numbers<[1], [0], [0], [1], [0, 0, 1, 1], [], []>} : vector<16x1024xbf16>, vector<1024x256xbf16>, vector<16x256xf32> -> vector<16x256xf32>
    %c0_520 = arith.constant 0 : index
    %c0_521 = arith.constant 0 : index
    %515 = vector.load %arg3[%c0_520, %c0_521] : memref<16x1xf32, #tpu.memory_space<vmem>>, vector<16x1xf32>
    %516 = vector.broadcast %515 : vector<16x1xf32> to vector<16x256xf32>
    %517 = arith.addf %514, %516 : vector<16x256xf32>
    %cst_522 = arith.constant 0.000000e+00 : f32
    %518 = vector.broadcast %cst_522 : f32 to vector<16x256xf32>
    %519 = arith.cmpf ogt, %517, %518 : vector<16x256xf32>
    %cst_523 = arith.constant 0.000000e+00 : f32
    %520 = vector.broadcast %cst_523 : f32 to vector<16x256xf32>
    %521 = arith.minimumf %517, %520 : vector<16x256xf32>
    %522 = math.exp %521 : vector<16x256xf32>
    %cst_524 = arith.constant 1.000000e+00 : f32
    %523 = vector.broadcast %cst_524 : f32 to vector<16x256xf32>
    %524 = arith.subf %522, %523 : vector<16x256xf32>
    %525 = arith.select %519, %517, %524 : vector<16x256xi1>, vector<16x256xf32>
    %526 = arith.truncf %525 : vector<16x256xf32> to vector<16x256xbf16>
    %c0_525 = arith.constant 0 : index
    %c0_526 = arith.constant 0 : index
    %527 = vector.load %arg4[%c0_525, %c0_526] : memref<256x64xbf16, #tpu.memory_space<vmem>>, vector<256x64xbf16>
    %cst_527 = arith.constant dense<0.000000e+00> : vector<16x64xf32>
    %528 = tpu.matmul %526, %527, %cst_527 {dimension_numbers = #tpu.dot_dimension_numbers<[1], [0], [0], [1], [0, 0, 1, 1], [], []>} : vector<16x256xbf16>, vector<256x64xbf16>, vector<16x64xf32> -> vector<16x64xf32>
    %c0_528 = arith.constant 0 : index
    %c0_529 = arith.constant 0 : index
    %529 = vector.load %arg9[%c0_528, %c0_529] : memref<16x64xf32, #tpu.memory_space<vmem>>, vector<16x64xf32>
    tpu.vector_store %arg9[%c0_528, %c0_529], %528 {strides = array<i32>} : memref<16x64xf32, #tpu.memory_space<vmem>>, vector<16x64xf32>,
    %cst_530 = arith.constant 0.000000e+00 : f32
    %530 = vector.broadcast %cst_530 : f32 to vector<16x48xf32>
    %c0_531 = arith.constant 0 : index
    %c0_532 = arith.constant 0 : index
    %531 = vector.load %arg10[%c0_531, %c0_532] : memref<16x48xf32, #tpu.memory_space<vmem>>, vector<16x48xf32>
    tpu.vector_store %arg10[%c0_531, %c0_532], %530 {strides = array<i32>} : memref<16x48xf32, #tpu.memory_space<vmem>>, vector<16x48xf32>,
    %c0_533 = arith.constant 0 : index
    %c0_534 = arith.constant 0 : index
    %532 = vector.load %arg5[%c0_533, %c0_534] : memref<16x16xf32, #tpu.memory_space<vmem>>, vector<16x16xf32>
    %c0_535 = arith.constant 0 : index
    %c0_536 = arith.constant 0 : index
    %533 = vector.load %arg6[%c0_535, %c0_536] : memref<16x1xf32, #tpu.memory_space<vmem>>, vector<16x1xf32>
    %c0_537 = arith.constant 0 : index
    %c0_538 = arith.constant 0 : index
    %534 = vector.load %arg9[%c0_537, %c0_538] : memref<16x64xf32, #tpu.memory_space<vmem>>, vector<16x4xf32>
    %c0_539 = arith.constant 0 : index
    %c7_540 = arith.constant 7 : index
    %535 = vector.load %arg10[%c0_539, %c7_540] : memref<16x48xf32, #tpu.memory_space<vmem>>, vector<16x4xf32>
    tpu.vector_store %arg10[%c0_539, %c7_540], %534 {strides = array<i32>} : memref<16x48xf32, #tpu.memory_space<vmem>>, vector<16x4xf32>,
    %cst_541 = arith.constant 0.000000e+00 : f32
    %536 = vector.broadcast %cst_541 : f32 to vector<16x32xf32>
    %537 = vector.extract_strided_slice %532 {offsets = [0, 0], sizes = [16, 1], strides = [1, 1]} : vector<16x16xf32> to vector<16x1xf32>
    %c0_542 = arith.constant 0 : index
    %c0_543 = arith.constant 0 : index
    %538 = vector.load %arg10[%c0_542, %c0_543] : memref<16x48xf32, #tpu.memory_space<vmem>>, vector<16x32xf32>
    %539 = vector.broadcast %537 : vector<16x1xf32> to vector<16x32xf32>
    %540 = arith.mulf %539, %538 : vector<16x32xf32>
    %541 = arith.addf %536, %540 : vector<16x32xf32>
    %542 = vector.extract_strided_slice %532 {offsets = [0, 1], sizes = [16, 1], strides = [1, 1]} : vector<16x16xf32> to vector<16x1xf32>
    %c0_544 = arith.constant 0 : index
    %c1_545 = arith.constant 1 : index
    %543 = vector.load %arg10[%c0_544, %c1_545] : memref<16x48xf32, #tpu.memory_space<vmem>>, vector<16x32xf32>
    %544 = vector.broadcast %542 : vector<16x1xf32> to vector<16x32xf32>
    %545 = arith.mulf %544, %543 : vector<16x32xf32>
    %546 = arith.addf %541, %545 : vector<16x32xf32>
    %547 = vector.extract_strided_slice %532 {offsets = [0, 2], sizes = [16, 1], strides = [1, 1]} : vector<16x16xf32> to vector<16x1xf32>
    %c0_546 = arith.constant 0 : index
    %c2_547 = arith.constant 2 : index
    %548 = vector.load %arg10[%c0_546, %c2_547] : memref<16x48xf32, #tpu.memory_space<vmem>>, vector<16x32xf32>
    %549 = vector.broadcast %547 : vector<16x1xf32> to vector<16x32xf32>
    %550 = arith.mulf %549, %548 : vector<16x32xf32>
    %551 = arith.addf %546, %550 : vector<16x32xf32>
    %552 = vector.extract_strided_slice %532 {offsets = [0, 3], sizes = [16, 1], strides = [1, 1]} : vector<16x16xf32> to vector<16x1xf32>
    %c0_548 = arith.constant 0 : index
    %c3_549 = arith.constant 3 : index
    %553 = vector.load %arg10[%c0_548, %c3_549] : memref<16x48xf32, #tpu.memory_space<vmem>>, vector<16x32xf32>
    %554 = vector.broadcast %552 : vector<16x1xf32> to vector<16x32xf32>
    %555 = arith.mulf %554, %553 : vector<16x32xf32>
    %556 = arith.addf %551, %555 : vector<16x32xf32>
    %557 = vector.extract_strided_slice %532 {offsets = [0, 4], sizes = [16, 1], strides = [1, 1]} : vector<16x16xf32> to vector<16x1xf32>
    %c0_550 = arith.constant 0 : index
    %c4_551 = arith.constant 4 : index
    %558 = vector.load %arg10[%c0_550, %c4_551] : memref<16x48xf32, #tpu.memory_space<vmem>>, vector<16x32xf32>
    %559 = vector.broadcast %557 : vector<16x1xf32> to vector<16x32xf32>
    %560 = arith.mulf %559, %558 : vector<16x32xf32>
    %561 = arith.addf %556, %560 : vector<16x32xf32>
    %562 = vector.extract_strided_slice %532 {offsets = [0, 5], sizes = [16, 1], strides = [1, 1]} : vector<16x16xf32> to vector<16x1xf32>
    %c0_552 = arith.constant 0 : index
    %c5_553 = arith.constant 5 : index
    %563 = vector.load %arg10[%c0_552, %c5_553] : memref<16x48xf32, #tpu.memory_space<vmem>>, vector<16x32xf32>
    %564 = vector.broadcast %562 : vector<16x1xf32> to vector<16x32xf32>
    %565 = arith.mulf %564, %563 : vector<16x32xf32>
    %566 = arith.addf %561, %565 : vector<16x32xf32>
    %567 = vector.extract_strided_slice %532 {offsets = [0, 6], sizes = [16, 1], strides = [1, 1]} : vector<16x16xf32> to vector<16x1xf32>
    %c0_554 = arith.constant 0 : index
    %c6_555 = arith.constant 6 : index
    %568 = vector.load %arg10[%c0_554, %c6_555] : memref<16x48xf32, #tpu.memory_space<vmem>>, vector<16x32xf32>
    %569 = vector.broadcast %567 : vector<16x1xf32> to vector<16x32xf32>
    %570 = arith.mulf %569, %568 : vector<16x32xf32>
    %571 = arith.addf %566, %570 : vector<16x32xf32>
    %572 = vector.extract_strided_slice %532 {offsets = [0, 7], sizes = [16, 1], strides = [1, 1]} : vector<16x16xf32> to vector<16x1xf32>
    %c0_556 = arith.constant 0 : index
    %c7_557 = arith.constant 7 : index
    %573 = vector.load %arg10[%c0_556, %c7_557] : memref<16x48xf32, #tpu.memory_space<vmem>>, vector<16x32xf32>
    %574 = vector.broadcast %572 : vector<16x1xf32> to vector<16x32xf32>
    %575 = arith.mulf %574, %573 : vector<16x32xf32>
    %576 = arith.addf %571, %575 : vector<16x32xf32>
    %577 = vector.extract_strided_slice %532 {offsets = [0, 8], sizes = [16, 1], strides = [1, 1]} : vector<16x16xf32> to vector<16x1xf32>
    %c0_558 = arith.constant 0 : index
    %c8_559 = arith.constant 8 : index
    %578 = vector.load %arg10[%c0_558, %c8_559] : memref<16x48xf32, #tpu.memory_space<vmem>>, vector<16x32xf32>
    %579 = vector.broadcast %577 : vector<16x1xf32> to vector<16x32xf32>
    %580 = arith.mulf %579, %578 : vector<16x32xf32>
    %581 = arith.addf %576, %580 : vector<16x32xf32>
    %582 = vector.extract_strided_slice %532 {offsets = [0, 9], sizes = [16, 1], strides = [1, 1]} : vector<16x16xf32> to vector<16x1xf32>
    %c0_560 = arith.constant 0 : index
    %c9_561 = arith.constant 9 : index
    %583 = vector.load %arg10[%c0_560, %c9_561] : memref<16x48xf32, #tpu.memory_space<vmem>>, vector<16x32xf32>
    %584 = vector.broadcast %582 : vector<16x1xf32> to vector<16x32xf32>
    %585 = arith.mulf %584, %583 : vector<16x32xf32>
    %586 = arith.addf %581, %585 : vector<16x32xf32>
    %587 = vector.extract_strided_slice %532 {offsets = [0, 10], sizes = [16, 1], strides = [1, 1]} : vector<16x16xf32> to vector<16x1xf32>
    %c0_562 = arith.constant 0 : index
    %c10_563 = arith.constant 10 : index
    %588 = vector.load %arg10[%c0_562, %c10_563] : memref<16x48xf32, #tpu.memory_space<vmem>>, vector<16x32xf32>
    %589 = vector.broadcast %587 : vector<16x1xf32> to vector<16x32xf32>
    %590 = arith.mulf %589, %588 : vector<16x32xf32>
    %591 = arith.addf %586, %590 : vector<16x32xf32>
    %592 = vector.extract_strided_slice %532 {offsets = [0, 11], sizes = [16, 1], strides = [1, 1]} : vector<16x16xf32> to vector<16x1xf32>
    %c0_564 = arith.constant 0 : index
    %c11_565 = arith.constant 11 : index
    %593 = vector.load %arg10[%c0_564, %c11_565] : memref<16x48xf32, #tpu.memory_space<vmem>>, vector<16x32xf32>
    %594 = vector.broadcast %592 : vector<16x1xf32> to vector<16x32xf32>
    %595 = arith.mulf %594, %593 : vector<16x32xf32>
    %596 = arith.addf %591, %595 : vector<16x32xf32>
    %597 = vector.extract_strided_slice %532 {offsets = [0, 12], sizes = [16, 1], strides = [1, 1]} : vector<16x16xf32> to vector<16x1xf32>
    %c0_566 = arith.constant 0 : index
    %c12_567 = arith.constant 12 : index
    %598 = vector.load %arg10[%c0_566, %c12_567] : memref<16x48xf32, #tpu.memory_space<vmem>>, vector<16x32xf32>
    %599 = vector.broadcast %597 : vector<16x1xf32> to vector<16x32xf32>
    %600 = arith.mulf %599, %598 : vector<16x32xf32>
    %601 = arith.addf %596, %600 : vector<16x32xf32>
    %602 = vector.extract_strided_slice %532 {offsets = [0, 13], sizes = [16, 1], strides = [1, 1]} : vector<16x16xf32> to vector<16x1xf32>
    %c0_568 = arith.constant 0 : index
    %c13_569 = arith.constant 13 : index
    %603 = vector.load %arg10[%c0_568, %c13_569] : memref<16x48xf32, #tpu.memory_space<vmem>>, vector<16x32xf32>
    %604 = vector.broadcast %602 : vector<16x1xf32> to vector<16x32xf32>
    %605 = arith.mulf %604, %603 : vector<16x32xf32>
    %606 = arith.addf %601, %605 : vector<16x32xf32>
    %607 = vector.extract_strided_slice %532 {offsets = [0, 14], sizes = [16, 1], strides = [1, 1]} : vector<16x16xf32> to vector<16x1xf32>
    %c0_570 = arith.constant 0 : index
    %c14_571 = arith.constant 14 : index
    %608 = vector.load %arg10[%c0_570, %c14_571] : memref<16x48xf32, #tpu.memory_space<vmem>>, vector<16x32xf32>
    %609 = vector.broadcast %607 : vector<16x1xf32> to vector<16x32xf32>
    %610 = arith.mulf %609, %608 : vector<16x32xf32>
    %611 = arith.addf %606, %610 : vector<16x32xf32>
    %612 = vector.extract_strided_slice %532 {offsets = [0, 15], sizes = [16, 1], strides = [1, 1]} : vector<16x16xf32> to vector<16x1xf32>
    %c0_572 = arith.constant 0 : index
    %c15_573 = arith.constant 15 : index
    %613 = vector.load %arg10[%c0_572, %c15_573] : memref<16x48xf32, #tpu.memory_space<vmem>>, vector<16x32xf32>
    %614 = vector.broadcast %612 : vector<16x1xf32> to vector<16x32xf32>
    %615 = arith.mulf %614, %613 : vector<16x32xf32>
    %616 = arith.addf %611, %615 : vector<16x32xf32>
    %617 = vector.broadcast %533 : vector<16x1xf32> to vector<16x32xf32>
    %618 = arith.addf %616, %617 : vector<16x32xf32>
    %cst_574 = arith.constant 0.000000e+00 : f32
    %619 = vector.broadcast %cst_574 : f32 to vector<16x32xf32>
    %620 = arith.cmpf ogt, %618, %619 : vector<16x32xf32>
    %cst_575 = arith.constant 0.000000e+00 : f32
    %621 = vector.broadcast %cst_575 : f32 to vector<16x32xf32>
    %622 = arith.minimumf %618, %621 : vector<16x32xf32>
    %623 = math.exp %622 : vector<16x32xf32>
    %cst_576 = arith.constant 1.000000e+00 : f32
    %624 = vector.broadcast %cst_576 : f32 to vector<16x32xf32>
    %625 = arith.subf %623, %624 : vector<16x32xf32>
    %626 = arith.select %620, %618, %625 : vector<16x32xi1>, vector<16x32xf32>
    %c0_577 = arith.constant 0 : index
    %c0_578 = arith.constant 0 : index
    %c0_579 = arith.constant 0 : index
    %627 = vector.load %arg7[%c0_577, %c0_578, %c0_579] : memref<2x16x32xf32, #tpu.memory_space<vmem>>, vector<1x16x32xf32>
    %628 = vector.shape_cast %627 : vector<1x16x32xf32> to vector<16x32xf32>
    %629 = vector.shape_cast %626 : vector<16x32xf32> to vector<1x16x32xf32>
    tpu.vector_store %arg7[%c0_577, %c0_578, %c0_579], %629 {strides = array<i32>} : memref<2x16x32xf32, #tpu.memory_space<vmem>>, vector<1x16x32xf32>,
    %c0_580 = arith.constant 0 : index
    %c32_581 = arith.constant 32 : index
    %630 = vector.load %arg9[%c0_580, %c32_581] : memref<16x64xf32, #tpu.memory_space<vmem>>, vector<16x4xf32>
    %c0_582 = arith.constant 0 : index
    %c7_583 = arith.constant 7 : index
    %631 = vector.load %arg10[%c0_582, %c7_583] : memref<16x48xf32, #tpu.memory_space<vmem>>, vector<16x4xf32>
    tpu.vector_store %arg10[%c0_582, %c7_583], %630 {strides = array<i32>} : memref<16x48xf32, #tpu.memory_space<vmem>>, vector<16x4xf32>,
    %cst_584 = arith.constant 0.000000e+00 : f32
    %632 = vector.broadcast %cst_584 : f32 to vector<16x32xf32>
    %633 = vector.extract_strided_slice %532 {offsets = [0, 0], sizes = [16, 1], strides = [1, 1]} : vector<16x16xf32> to vector<16x1xf32>
    %c0_585 = arith.constant 0 : index
    %c0_586 = arith.constant 0 : index
    %634 = vector.load %arg10[%c0_585, %c0_586] : memref<16x48xf32, #tpu.memory_space<vmem>>, vector<16x32xf32>
    %635 = vector.broadcast %633 : vector<16x1xf32> to vector<16x32xf32>
    %636 = arith.mulf %635, %634 : vector<16x32xf32>
    %637 = arith.addf %632, %636 : vector<16x32xf32>
    %638 = vector.extract_strided_slice %532 {offsets = [0, 1], sizes = [16, 1], strides = [1, 1]} : vector<16x16xf32> to vector<16x1xf32>
    %c0_587 = arith.constant 0 : index
    %c1_588 = arith.constant 1 : index
    %639 = vector.load %arg10[%c0_587, %c1_588] : memref<16x48xf32, #tpu.memory_space<vmem>>, vector<16x32xf32>
    %640 = vector.broadcast %638 : vector<16x1xf32> to vector<16x32xf32>
    %641 = arith.mulf %640, %639 : vector<16x32xf32>
    %642 = arith.addf %637, %641 : vector<16x32xf32>
    %643 = vector.extract_strided_slice %532 {offsets = [0, 2], sizes = [16, 1], strides = [1, 1]} : vector<16x16xf32> to vector<16x1xf32>
    %c0_589 = arith.constant 0 : index
    %c2_590 = arith.constant 2 : index
    %644 = vector.load %arg10[%c0_589, %c2_590] : memref<16x48xf32, #tpu.memory_space<vmem>>, vector<16x32xf32>
    %645 = vector.broadcast %643 : vector<16x1xf32> to vector<16x32xf32>
    %646 = arith.mulf %645, %644 : vector<16x32xf32>
    %647 = arith.addf %642, %646 : vector<16x32xf32>
    %648 = vector.extract_strided_slice %532 {offsets = [0, 3], sizes = [16, 1], strides = [1, 1]} : vector<16x16xf32> to vector<16x1xf32>
    %c0_591 = arith.constant 0 : index
    %c3_592 = arith.constant 3 : index
    %649 = vector.load %arg10[%c0_591, %c3_592] : memref<16x48xf32, #tpu.memory_space<vmem>>, vector<16x32xf32>
    %650 = vector.broadcast %648 : vector<16x1xf32> to vector<16x32xf32>
    %651 = arith.mulf %650, %649 : vector<16x32xf32>
    %652 = arith.addf %647, %651 : vector<16x32xf32>
    %653 = vector.extract_strided_slice %532 {offsets = [0, 4], sizes = [16, 1], strides = [1, 1]} : vector<16x16xf32> to vector<16x1xf32>
    %c0_593 = arith.constant 0 : index
    %c4_594 = arith.constant 4 : index
    %654 = vector.load %arg10[%c0_593, %c4_594] : memref<16x48xf32, #tpu.memory_space<vmem>>, vector<16x32xf32>
    %655 = vector.broadcast %653 : vector<16x1xf32> to vector<16x32xf32>
    %656 = arith.mulf %655, %654 : vector<16x32xf32>
    %657 = arith.addf %652, %656 : vector<16x32xf32>
    %658 = vector.extract_strided_slice %532 {offsets = [0, 5], sizes = [16, 1], strides = [1, 1]} : vector<16x16xf32> to vector<16x1xf32>
    %c0_595 = arith.constant 0 : index
    %c5_596 = arith.constant 5 : index
    %659 = vector.load %arg10[%c0_595, %c5_596] : memref<16x48xf32, #tpu.memory_space<vmem>>, vector<16x32xf32>
    %660 = vector.broadcast %658 : vector<16x1xf32> to vector<16x32xf32>
    %661 = arith.mulf %660, %659 : vector<16x32xf32>
    %662 = arith.addf %657, %661 : vector<16x32xf32>
    %663 = vector.extract_strided_slice %532 {offsets = [0, 6], sizes = [16, 1], strides = [1, 1]} : vector<16x16xf32> to vector<16x1xf32>
    %c0_597 = arith.constant 0 : index
    %c6_598 = arith.constant 6 : index
    %664 = vector.load %arg10[%c0_597, %c6_598] : memref<16x48xf32, #tpu.memory_space<vmem>>, vector<16x32xf32>
    %665 = vector.broadcast %663 : vector<16x1xf32> to vector<16x32xf32>
    %666 = arith.mulf %665, %664 : vector<16x32xf32>
    %667 = arith.addf %662, %666 : vector<16x32xf32>
    %668 = vector.extract_strided_slice %532 {offsets = [0, 7], sizes = [16, 1], strides = [1, 1]} : vector<16x16xf32> to vector<16x1xf32>
    %c0_599 = arith.constant 0 : index
    %c7_600 = arith.constant 7 : index
    %669 = vector.load %arg10[%c0_599, %c7_600] : memref<16x48xf32, #tpu.memory_space<vmem>>, vector<16x32xf32>
    %670 = vector.broadcast %668 : vector<16x1xf32> to vector<16x32xf32>
    %671 = arith.mulf %670, %669 : vector<16x32xf32>
    %672 = arith.addf %667, %671 : vector<16x32xf32>
    %673 = vector.extract_strided_slice %532 {offsets = [0, 8], sizes = [16, 1], strides = [1, 1]} : vector<16x16xf32> to vector<16x1xf32>
    %c0_601 = arith.constant 0 : index
    %c8_602 = arith.constant 8 : index
    %674 = vector.load %arg10[%c0_601, %c8_602] : memref<16x48xf32, #tpu.memory_space<vmem>>, vector<16x32xf32>
    %675 = vector.broadcast %673 : vector<16x1xf32> to vector<16x32xf32>
    %676 = arith.mulf %675, %674 : vector<16x32xf32>
    %677 = arith.addf %672, %676 : vector<16x32xf32>
    %678 = vector.extract_strided_slice %532 {offsets = [0, 9], sizes = [16, 1], strides = [1, 1]} : vector<16x16xf32> to vector<16x1xf32>
    %c0_603 = arith.constant 0 : index
    %c9_604 = arith.constant 9 : index
    %679 = vector.load %arg10[%c0_603, %c9_604] : memref<16x48xf32, #tpu.memory_space<vmem>>, vector<16x32xf32>
    %680 = vector.broadcast %678 : vector<16x1xf32> to vector<16x32xf32>
    %681 = arith.mulf %680, %679 : vector<16x32xf32>
    %682 = arith.addf %677, %681 : vector<16x32xf32>
    %683 = vector.extract_strided_slice %532 {offsets = [0, 10], sizes = [16, 1], strides = [1, 1]} : vector<16x16xf32> to vector<16x1xf32>
    %c0_605 = arith.constant 0 : index
    %c10_606 = arith.constant 10 : index
    %684 = vector.load %arg10[%c0_605, %c10_606] : memref<16x48xf32, #tpu.memory_space<vmem>>, vector<16x32xf32>
    %685 = vector.broadcast %683 : vector<16x1xf32> to vector<16x32xf32>
    %686 = arith.mulf %685, %684 : vector<16x32xf32>
    %687 = arith.addf %682, %686 : vector<16x32xf32>
    %688 = vector.extract_strided_slice %532 {offsets = [0, 11], sizes = [16, 1], strides = [1, 1]} : vector<16x16xf32> to vector<16x1xf32>
    %c0_607 = arith.constant 0 : index
    %c11_608 = arith.constant 11 : index
    %689 = vector.load %arg10[%c0_607, %c11_608] : memref<16x48xf32, #tpu.memory_space<vmem>>, vector<16x32xf32>
    %690 = vector.broadcast %688 : vector<16x1xf32> to vector<16x32xf32>
    %691 = arith.mulf %690, %689 : vector<16x32xf32>
    %692 = arith.addf %687, %691 : vector<16x32xf32>
    %693 = vector.extract_strided_slice %532 {offsets = [0, 12], sizes = [16, 1], strides = [1, 1]} : vector<16x16xf32> to vector<16x1xf32>
    %c0_609 = arith.constant 0 : index
    %c12_610 = arith.constant 12 : index
    %694 = vector.load %arg10[%c0_609, %c12_610] : memref<16x48xf32, #tpu.memory_space<vmem>>, vector<16x32xf32>
    %695 = vector.broadcast %693 : vector<16x1xf32> to vector<16x32xf32>
    %696 = arith.mulf %695, %694 : vector<16x32xf32>
    %697 = arith.addf %692, %696 : vector<16x32xf32>
    %698 = vector.extract_strided_slice %532 {offsets = [0, 13], sizes = [16, 1], strides = [1, 1]} : vector<16x16xf32> to vector<16x1xf32>
    %c0_611 = arith.constant 0 : index
    %c13_612 = arith.constant 13 : index
    %699 = vector.load %arg10[%c0_611, %c13_612] : memref<16x48xf32, #tpu.memory_space<vmem>>, vector<16x32xf32>
    %700 = vector.broadcast %698 : vector<16x1xf32> to vector<16x32xf32>
    %701 = arith.mulf %700, %699 : vector<16x32xf32>
    %702 = arith.addf %697, %701 : vector<16x32xf32>
    %703 = vector.extract_strided_slice %532 {offsets = [0, 14], sizes = [16, 1], strides = [1, 1]} : vector<16x16xf32> to vector<16x1xf32>
    %c0_613 = arith.constant 0 : index
    %c14_614 = arith.constant 14 : index
    %704 = vector.load %arg10[%c0_613, %c14_614] : memref<16x48xf32, #tpu.memory_space<vmem>>, vector<16x32xf32>
    %705 = vector.broadcast %703 : vector<16x1xf32> to vector<16x32xf32>
    %706 = arith.mulf %705, %704 : vector<16x32xf32>
    %707 = arith.addf %702, %706 : vector<16x32xf32>
    %708 = vector.extract_strided_slice %532 {offsets = [0, 15], sizes = [16, 1], strides = [1, 1]} : vector<16x16xf32> to vector<16x1xf32>
    %c0_615 = arith.constant 0 : index
    %c15_616 = arith.constant 15 : index
    %709 = vector.load %arg10[%c0_615, %c15_616] : memref<16x48xf32, #tpu.memory_space<vmem>>, vector<16x32xf32>
    %710 = vector.broadcast %708 : vector<16x1xf32> to vector<16x32xf32>
    %711 = arith.mulf %710, %709 : vector<16x32xf32>
    %712 = arith.addf %707, %711 : vector<16x32xf32>
    %713 = vector.broadcast %533 : vector<16x1xf32> to vector<16x32xf32>
    %714 = arith.addf %712, %713 : vector<16x32xf32>
    %cst_617 = arith.constant 0.000000e+00 : f32
    %715 = vector.broadcast %cst_617 : f32 to vector<16x32xf32>
    %716 = arith.cmpf ogt, %714, %715 : vector<16x32xf32>
    %cst_618 = arith.constant 0.000000e+00 : f32
    %717 = vector.broadcast %cst_618 : f32 to vector<16x32xf32>
    %718 = arith.minimumf %714, %717 : vector<16x32xf32>
    %719 = math.exp %718 : vector<16x32xf32>
    %cst_619 = arith.constant 1.000000e+00 : f32
    %720 = vector.broadcast %cst_619 : f32 to vector<16x32xf32>
    %721 = arith.subf %719, %720 : vector<16x32xf32>
    %722 = arith.select %716, %714, %721 : vector<16x32xi1>, vector<16x32xf32>
    %c1_620 = arith.constant 1 : index
    %c0_621 = arith.constant 0 : index
    %c0_622 = arith.constant 0 : index
    %723 = vector.load %arg7[%c1_620, %c0_621, %c0_622] : memref<2x16x32xf32, #tpu.memory_space<vmem>>, vector<1x16x32xf32>
    %724 = vector.shape_cast %723 : vector<1x16x32xf32> to vector<16x32xf32>
    %725 = vector.shape_cast %722 : vector<16x32xf32> to vector<1x16x32xf32>
    tpu.vector_store %arg7[%c1_620, %c0_621, %c0_622], %725 {strides = array<i32>} : memref<2x16x32xf32, #tpu.memory_space<vmem>>, vector<1x16x32xf32>,
    return
  }
  func.func @transform_0(%arg0: i32) -> (i32, i32, i32) {
    %c0_i32 = arith.constant 0 : i32
    %c0_i32_0 = arith.constant 0 : i32
    %c0_i32_1 = arith.constant 0 : i32
    return %arg0, %c0_i32, %c0_i32_0 : i32, i32, i32
  }
  func.func @transform_1(%arg0: i32) -> (i32, i32) {
    %c0_i32 = arith.constant 0 : i32
    %c0_i32_0 = arith.constant 0 : i32
    %c0_i32_1 = arith.constant 0 : i32
    return %c0_i32, %c0_i32_0 : i32, i32
  }
  func.func @transform_2(%arg0: i32) -> (i32, i32) {
    %c0_i32 = arith.constant 0 : i32
    %c0_i32_0 = arith.constant 0 : i32
    %c0_i32_1 = arith.constant 0 : i32
    return %c0_i32, %c0_i32_0 : i32, i32
  }
  func.func @transform_3(%arg0: i32) -> (i32, i32) {
    %c0_i32 = arith.constant 0 : i32
    %c0_i32_0 = arith.constant 0 : i32
    %c0_i32_1 = arith.constant 0 : i32
    return %c0_i32, %c0_i32_0 : i32, i32
  }
  func.func @transform_4(%arg0: i32) -> (i32, i32) {
    %c0_i32 = arith.constant 0 : i32
    %c0_i32_0 = arith.constant 0 : i32
    %c0_i32_1 = arith.constant 0 : i32
    return %c0_i32, %c0_i32_0 : i32, i32
  }
  func.func @transform_5(%arg0: i32) -> (i32, i32) {
    %c0_i32 = arith.constant 0 : i32
    %c0_i32_0 = arith.constant 0 : i32
    %c0_i32_1 = arith.constant 0 : i32
    return %c0_i32, %c0_i32_0 : i32, i32
  }
  func.func @transform_6(%arg0: i32) -> (i32, i32, i32) {
    %c0_i32 = arith.constant 0 : i32
    %c0_i32_0 = arith.constant 0 : i32
    %c0_i32_1 = arith.constant 0 : i32
    return %arg0, %c0_i32, %c0_i32_0 : i32, i32, i32
  }
}

</mosaic_0001>

<llo_original>
// kernel: mul.2
$region0: #{mul.2}
  #allocation0 [shape = 's32[1]{0}', space=sflag, size = 0x4, scoped, tag = 'scoped memory for mul.2']
  %s0 = inlined_call_operand.vmem [shape: f32[16,1], index: 0, kind: input, shape index: {}]
  %s1 = inlined_call_operand.vmem [shape: f32[16,1], index: 1, kind: input, shape index: {}]
  %s2 = inlined_call_operand.vmem [shape: f32[16,1], index: 2, kind: output, shape index: {}]
  %v3 = vld [vmem:[%s0] sm:$0x1]
  %v4 = vld [vmem:[%s1] sm:$0x1]
  %5 = xla_tuple %v3, %v4
  %6 = xla_tuple %5
  %v7 = vmul.f32 %v3, %v4
  %8 = xla_tuple %v7
  %9 = vst [vmem:[%s2] sm:$0x1] %v7

// kernel: patch_embedding_forward.1
$region0: #{patch_embedding_forward.1}
  #allocation0 [shape = 'u32[]', space=smem, size = 0x4, offset = 0x4, fixed_abs, tag = 'smem constant byte address 0x4 - core index']
  #allocation1 [shape = 'u32[72,128]{1,0:T(1,128)}', space=vmem, size = 0x9000, scoped, tag = 'internal scratch']
  #allocation2 [shape = 'bf16[1024,256]{1,0:T(8,128)(2,1)}', space=vmem, size = 0x80000, scoped, tag = 'scratch operand']
  #allocation3 [shape = 'f32[16,64]{1,0:T(8,128)}', space=vmem, size = 0x2000, scoped, tag = 'scratch operand']
  #allocation4 [shape = 'f32[16,48]{1,0:T(8,128)}', space=vmem, size = 0x2000, scoped, tag = 'scratch operand']
  %s0 = inlined_call_operand.vmem [shape: f32[2,16,256], index: 0, kind: input, shape index: {}]
  %s1 = inlined_call_operand.vmem [shape: bf16[16,1024], index: 1, kind: input, shape index: {}]
  %s2 = inlined_call_operand.vmem [shape: f32[16,1], index: 2, kind: input, shape index: {}]
  %s3 = inlined_call_operand.vmem [shape: bf16[256,64], index: 3, kind: input, shape index: {}]
  %s4 = inlined_call_operand.vmem [shape: f32[16,16], index: 4, kind: input, shape index: {}]
  %s5 = inlined_call_operand.vmem [shape: f32[16,1], index: 5, kind: input, shape index: {}]
  %s6 = inlined_call_operand.vmem [shape: f32[2,16,32], index: 6, kind: output, shape index: {}]
  %s7 = sld [smem:[#allocation0]]
  $region34: #{patch_embedding_forward.1} parent=0
    _
  %s9 = ssub.s32 1, %s7
  %s10 = scalar_select 0, %s9, %s7
  // Predicated region
  $region2: #{patch_embedding_forward.1} parent=0 // pred_check
    _
  $region3: #{patch_embedding_forward.1} parent=0 // pred_check_branch
    %12 = sbr.rel (0) target = $region5
  $region4: #{patch_embedding_forward.1} parent=0 // pred_region
    _
  $region5: #{patch_embedding_forward.1} parent=0 // pred_fallthru
    _
  // Predicated region
  $region6: #{patch_embedding_forward.1} parent=0 // pred_check
    _
  $region7: #{patch_embedding_forward.1} parent=0 // pred_check_branch
    %14 = sbr.rel (0) target = $region9
  $region8: #{patch_embedding_forward.1} parent=0 // pred_region
    _
  $region9: #{patch_embedding_forward.1} parent=0 // pred_fallthru
    _
  // Predicated region
  $region10: #{patch_embedding_forward.1} parent=0 // pred_check
    _
  $region11: #{patch_embedding_forward.1} parent=0 // pred_check_branch
    %16 = sbr.rel (0) target = $region13
  $region12: #{patch_embedding_forward.1} parent=0 // pred_region
    _
  $region13: #{patch_embedding_forward.1} parent=0 // pred_fallthru
    _
  // Predicated region
  $region14: #{patch_embedding_forward.1} parent=0 // pred_check
    _
  $region15: #{patch_embedding_forward.1} parent=0 // pred_check_branch
    %18 = sbr.rel (0) target = $region17
  $region16: #{patch_embedding_forward.1} parent=0 // pred_region
    _
  $region17: #{patch_embedding_forward.1} parent=0 // pred_fallthru
    _
  // Predicated region
  $region18: #{patch_embedding_forward.1} parent=0 // pred_check
    _
  $region19: #{patch_embedding_forward.1} parent=0 // pred_check_branch
    %20 = sbr.rel (0) target = $region21
  $region20: #{patch_embedding_forward.1} parent=0 // pred_region
    _
  $region21: #{patch_embedding_forward.1} parent=0 // pred_fallthru
    _
  // Predicated region
  $region22: #{patch_embedding_forward.1} parent=0 // pred_check
    _
  $region23: #{patch_embedding_forward.1} parent=0 // pred_check_branch
    %22 = sbr.rel (0) target = $region25
  $region24: #{patch_embedding_forward.1} parent=0 // pred_region
    _
  $region25: #{patch_embedding_forward.1} parent=0 // pred_fallthru
    _
  %v23 = vld [vmem:[%s0] sm:$0xff]
  %v24 = vld [vmem:[%s0 + $0x10] sm:$0xff]
  %v25 = vpack.c.bf16 %v23, %v23
  %v26 = vpack.c.bf16 %v24, %v24
  %27 = vst [vmem:[#allocation2] sm:$0xf] %v25
  %28 = vst [vmem:[#allocation2 + $0x8] sm:$0xf] %v26
  %s29 = scalar_lea.vmem %s0, 32
  %v30 = vld [vmem:[%s29] sm:$0xff]
  %v31 = vld [vmem:[%s29 + $0x10] sm:$0xff]
  %v32 = vpack.c.bf16 %v30, %v30
  %v33 = vpack.c.bf16 %v31, %v31
  %34 = vst [vmem:[#allocation2 + $0x4] sm:$0xf] %v32
  %35 = vst [vmem:[#allocation2 + $0xc] sm:$0xf] %v33
  %v36 = vld [vmem:[%s0] sm:$0xff]
  %v37 = vld [vmem:[%s0 + $0x8] sm:$0xff]
  %v38 = vld [vmem:[%s0 + $0x10] sm:$0xff]
  %v39 = vld [vmem:[%s0 + $0x18] sm:$0xff]
  %v40 = vpack.c.bf16 %v37, %v36
  %v41 = vpack.c.bf16 %v39, %v38
  %44 = vrot.lane.b32.xlu0 %v40, 127
  %v45 = vpop.permute.xlu0 %44
  %46 = vrot.lane.b32.xlu0 %v41, 127
  %v47 = vpop.permute.xlu0 %46
  %v48 = vrot.slane %v45, 4
  %v49 = vrot.slane %v47, 4
  %vm50 = vcmask 1039360
  %v51 = vsel %vm50, %v45, %v48
  %v52 = vsel %vm50, %v47, %v49
  %55 = vst [vmem:[#allocation2 + $0x10] sm:$0xf] %v51
  %56 = vst [vmem:[#allocation2 + $0x18] sm:$0xf] %v52
  %v57 = vld [vmem:[%s29] sm:$0xff]
  %v58 = vld [vmem:[%s29 + $0x8] sm:$0xff]
  %v59 = vld [vmem:[%s29 + $0x10] sm:$0xff]
  %v60 = vld [vmem:[%s29 + $0x18] sm:$0xff]
  %v61 = vpack.c.bf16 %v58, %v57
  %v62 = vpack.c.bf16 %v60, %v59
  %65 = vrot.lane.b32.xlu0 %v61, 127
  %v66 = vpop.permute.xlu0 %65
  %67 = vrot.lane.b32.xlu0 %v62, 127
  %v68 = vpop.permute.xlu0 %67
  %v69 = vrot.slane %v66, 4
  %v70 = vrot.slane %v68, 4
  %v71 = vsel %vm50, %v66, %v69
  %v72 = vsel %vm50, %v68, %v70
  %75 = vst [vmem:[#allocation2 + $0x14] sm:$0xf] %v71
  %76 = vst [vmem:[#allocation2 + $0x1c] sm:$0xf] %v72
  %v77 = vld [vmem:[%s0] sm:$0xff]
  %v78 = vld [vmem:[%s0 + $0x8] sm:$0xff]
  %v79 = vld [vmem:[%s0 + $0x10] sm:$0xff]
  %v80 = vld [vmem:[%s0 + $0x18] sm:$0xff]
  %v81 = vpack.c.bf16 %v78, %v77
  %v82 = vpack.c.bf16 %v80, %v79
  %85 = vrot.lane.b32.xlu0 %v81, 126
  %v86 = vpop.permute.xlu0 %85
  %87 = vrot.lane.b32.xlu0 %v82, 126
  %v88 = vpop.permute.xlu0 %87
  %v89 = vrot.slane %v86, 4
  %v90 = vrot.slane %v88, 4
  %vm91 = vcmask 1031168
  %v92 = vsel %vm91, %v86, %v89
  %v93 = vsel %vm91, %v88, %v90
  %96 = vst [vmem:[#allocation2 + $0x20] sm:$0xf] %v92
  %97 = vst [vmem:[#allocation2 + $0x28] sm:$0xf] %v93
  %v98 = vld [vmem:[%s29] sm:$0xff]
  %v99 = vld [vmem:[%s29 + $0x8] sm:$0xff]
  %v100 = vld [vmem:[%s29 + $0x10] sm:$0xff]
  %v101 = vld [vmem:[%s29 + $0x18] sm:$0xff]
  %v102 = vpack.c.bf16 %v99, %v98
  %v103 = vpack.c.bf16 %v101, %v100
  %106 = vrot.lane.b32.xlu0 %v102, 126
  %v107 = vpop.permute.xlu0 %106
  %108 = vrot.lane.b32.xlu0 %v103, 126
  %v109 = vpop.permute.xlu0 %108
  %v110 = vrot.slane %v107, 4
  %v111 = vrot.slane %v109, 4
  %v112 = vsel %vm91, %v107, %v110
  %v113 = vsel %vm91, %v109, %v111
  %116 = vst [vmem:[#allocation2 + $0x24] sm:$0xf] %v112
  %117 = vst [vmem:[#allocation2 + $0x2c] sm:$0xf] %v113
  %v118 = vld [vmem:[%s0] sm:$0xff]
  %v119 = vld [vmem:[%s0 + $0x8] sm:$0xff]
  %v120 = vld [vmem:[%s0 + $0x10] sm:$0xff]
  %v121 = vld [vmem:[%s0 + $0x18] sm:$0xff]
  %v122 = vpack.c.bf16 %v119, %v118
  %v123 = vpack.c.bf16 %v121, %v120
  %126 = vrot.lane.b32.xlu0 %v122, 125
  %v127 = vpop.permute.xlu0 %126
  %128 = vrot.lane.b32.xlu0 %v123, 125
  %v129 = vpop.permute.xlu0 %128
  %v130 = vrot.slane %v127, 4
  %v131 = vrot.slane %v129, 4
  %vm132 = vcmask 1022976
  %v133 = vsel %vm132, %v127, %v130
  %v134 = vsel %vm132, %v129, %v131
  %137 = vst [vmem:[#allocation2 + $0x30] sm:$0xf] %v133
  %138 = vst [vmem:[#allocation2 + $0x38] sm:$0xf] %v134
  %v139 = vld [vmem:[%s29] sm:$0xff]
  %v140 = vld [vmem:[%s29 + $0x8] sm:$0xff]
  %v141 = vld [vmem:[%s29 + $0x10] sm:$0xff]
  %v142 = vld [vmem:[%s29 + $0x18] sm:$0xff]
  %v143 = vpack.c.bf16 %v140, %v139
  %v144 = vpack.c.bf16 %v142, %v141
  %147 = vrot.lane.b32.xlu0 %v143, 125
  %v148 = vpop.permute.xlu0 %147
  %149 = vrot.lane.b32.xlu0 %v144, 125
  %v150 = vpop.permute.xlu0 %149
  %v151 = vrot.slane %v148, 4
  %v152 = vrot.slane %v150, 4
  %v153 = vsel %vm132, %v148, %v151
  %v154 = vsel %vm132, %v150, %v152
  %157 = vst [vmem:[#allocation2 + $0x34] sm:$0xf] %v153
  %158 = vst [vmem:[#allocation2 + $0x3c] sm:$0xf] %v154
  %v159 = vld [vmem:[%s0] sm:$0xff]
  %v160 = vld [vmem:[%s0 + $0x8] sm:$0xff]
  %v161 = vld [vmem:[%s0 + $0x10] sm:$0xff]
  %v162 = vld [vmem:[%s0 + $0x18] sm:$0xff]
  %v163 = vpack.c.bf16 %v160, %v159
  %v164 = vpack.c.bf16 %v162, %v161
  %167 = vrot.lane.b32.xlu0 %v163, 124
  %v168 = vpop.permute.xlu0 %167
  %169 = vrot.lane.b32.xlu0 %v164, 124
  %v170 = vpop.permute.xlu0 %169
  %v171 = vrot.slane %v168, 4
  %v172 = vrot.slane %v170, 4
  %vm173 = vcmask 1014784
  %v174 = vsel %vm173, %v168, %v171
  %v175 = vsel %vm173, %v170, %v172
  %178 = vst [vmem:[#allocation2 + $0x40] sm:$0xf] %v174
  %179 = vst [vmem:[#allocation2 + $0x48] sm:$0xf] %v175
  %v180 = vld [vmem:[%s29] sm:$0xff]
  %v181 = vld [vmem:[%s29 + $0x8] sm:$0xff]
  %v182 = vld [vmem:[%s29 + $0x10] sm:$0xff]
  %v183 = vld [vmem:[%s29 + $0x18] sm:$0xff]
  %v184 = vpack.c.bf16 %v181, %v180
  %v185 = vpack.c.bf16 %v183, %v182
  %188 = vrot.lane.b32.xlu0 %v184, 124
  %v189 = vpop.permute.xlu0 %188
  %190 = vrot.lane.b32.xlu0 %v185, 124
  %v191 = vpop.permute.xlu0 %190
  %v192 = vrot.slane %v189, 4
  %v193 = vrot.slane %v191, 4
  %v194 = vsel %vm173, %v189, %v192
  %v195 = vsel %vm173, %v191, %v193
  %198 = vst [vmem:[#allocation2 + $0x44] sm:$0xf] %v194
  %199 = vst [vmem:[#allocation2 + $0x4c] sm:$0xf] %v195
  %v200 = vld [vmem:[%s0] sm:$0xff]
  %v201 = vld [vmem:[%s0 + $0x8] sm:$0xff]
  %v202 = vld [vmem:[%s0 + $0x10] sm:$0xff]
  %v203 = vld [vmem:[%s0 + $0x18] sm:$0xff]
  %v204 = vpack.c.bf16 %v201, %v200
  %v205 = vpack.c.bf16 %v203, %v202
  %208 = vrot.lane.b32.xlu0 %v204, 123
  %v209 = vpop.permute.xlu0 %208
  %210 = vrot.lane.b32.xlu0 %v205, 123
  %v211 = vpop.permute.xlu0 %210
  %v212 = vrot.slane %v209, 4
  %v213 = vrot.slane %v211, 4
  %vm214 = vcmask 1006592
  %v215 = vsel %vm214, %v209, %v212
  %v216 = vsel %vm214, %v211, %v213
  %219 = vst [vmem:[#allocation2 + $0x50] sm:$0xf] %v215
  %220 = vst [vmem:[#allocation2 + $0x58] sm:$0xf] %v216
  %v221 = vld [vmem:[%s29] sm:$0xff]
  %v222 = vld [vmem:[%s29 + $0x8] sm:$0xff]
  %v223 = vld [vmem:[%s29 + $0x10] sm:$0xff]
  %v224 = vld [vmem:[%s29 + $0x18] sm:$0xff]
  %v225 = vpack.c.bf16 %v222, %v221
  %v226 = vpack.c.bf16 %v224, %v223
  %229 = vrot.lane.b32.xlu0 %v225, 123
  %v230 = vpop.permute.xlu0 %229
  %231 = vrot.lane.b32.xlu0 %v226, 123
  %v232 = vpop.permute.xlu0 %231
  %v233 = vrot.slane %v230, 4
  %v234 = vrot.slane %v232, 4
  %v235 = vsel %vm214, %v230, %v233
  %v236 = vsel %vm214, %v232, %v234
  %239 = vst [vmem:[#allocation2 + $0x54] sm:$0xf] %v235
  %240 = vst [vmem:[#allocation2 + $0x5c] sm:$0xf] %v236
  %v241 = vld [vmem:[%s0] sm:$0xff]
  %v242 = vld [vmem:[%s0 + $0x8] sm:$0xff]
  %v243 = vld [vmem:[%s0 + $0x10] sm:$0xff]
  %v244 = vld [vmem:[%s0 + $0x18] sm:$0xff]
  %v245 = vpack.c.bf16 %v242, %v241
  %v246 = vpack.c.bf16 %v244, %v243
  %249 = vrot.lane.b32.xlu0 %v245, 122
  %v250 = vpop.permute.xlu0 %249
  %251 = vrot.lane.b32.xlu0 %v246, 122
  %v252 = vpop.permute.xlu0 %251
  %v253 = vrot.slane %v250, 4
  %v254 = vrot.slane %v252, 4
  %vm255 = vcmask 998400
  %v256 = vsel %vm255, %v250, %v253
  %v257 = vsel %vm255, %v252, %v254
  %260 = vst [vmem:[#allocation2 + $0x60] sm:$0xf] %v256
  %261 = vst [vmem:[#allocation2 + $0x68] sm:$0xf] %v257
  %v262 = vld [vmem:[%s29] sm:$0xff]
  %v263 = vld [vmem:[%s29 + $0x8] sm:$0xff]
  %v264 = vld [vmem:[%s29 + $0x10] sm:$0xff]
  %v265 = vld [vmem:[%s29 + $0x18] sm:$0xff]
  %v266 = vpack.c.bf16 %v263, %v262
  %v267 = vpack.c.bf16 %v265, %v264
  %270 = vrot.lane.b32.xlu0 %v266, 122
  %v271 = vpop.permute.xlu0 %270
  %272 = vrot.lane.b32.xlu0 %v267, 122
  %v273 = vpop.permute.xlu0 %272
  %v274 = vrot.slane %v271, 4
  %v275 = vrot.slane %v273, 4
  %v276 = vsel %vm255, %v271, %v274
  %v277 = vsel %vm255, %v273, %v275
  %280 = vst [vmem:[#allocation2 + $0x64] sm:$0xf] %v276
  %281 = vst [vmem:[#allocation2 + $0x6c] sm:$0xf] %v277
  %v282 = vld [vmem:[%s0] sm:$0xff]
  %v283 = vld [vmem:[%s0 + $0x8] sm:$0xff]
  %v284 = vld [vmem:[%s0 + $0x10] sm:$0xff]
  %v285 = vld [vmem:[%s0 + $0x18] sm:$0xff]
  %v286 = vpack.c.bf16 %v283, %v282
  %v287 = vpack.c.bf16 %v285, %v284
  %290 = vrot.lane.b32.xlu0 %v286, 121
  %v291 = vpop.permute.xlu0 %290
  %292 = vrot.lane.b32.xlu0 %v287, 121
  %v293 = vpop.permute.xlu0 %292
  %v294 = vrot.slane %v291, 4
  %v295 = vrot.slane %v293, 4
  %vm296 = vcmask 990208
  %v297 = vsel %vm296, %v291, %v294
  %v298 = vsel %vm296, %v293, %v295
  %301 = vst [vmem:[#allocation2 + $0x70] sm:$0xf] %v297
  %302 = vst [vmem:[#allocation2 + $0x78] sm:$0xf] %v298
  %v303 = vld [vmem:[%s29] sm:$0xff]
  %v304 = vld [vmem:[%s29 + $0x8] sm:$0xff]
  %v305 = vld [vmem:[%s29 + $0x10] sm:$0xff]
  %v306 = vld [vmem:[%s29 + $0x18] sm:$0xff]
  %v307 = vpack.c.bf16 %v304, %v303
  %v308 = vpack.c.bf16 %v306, %v305
  %311 = vrot.lane.b32.xlu0 %v307, 121
  %v312 = vpop.permute.xlu0 %311
  %313 = vrot.lane.b32.xlu0 %v308, 121
  %v314 = vpop.permute.xlu0 %313
  %v315 = vrot.slane %v312, 4
  %v316 = vrot.slane %v314, 4
  %v317 = vsel %vm296, %v312, %v315
  %v318 = vsel %vm296, %v314, %v316
  %321 = vst [vmem:[#allocation2 + $0x74] sm:$0xf] %v317
  %322 = vst [vmem:[#allocation2 + $0x7c] sm:$0xf] %v318
  %v323 = vld [vmem:[%s0] sm:$0xff]
  %v324 = vld [vmem:[%s0 + $0x8] sm:$0xff]
  %v325 = vld [vmem:[%s0 + $0x10] sm:$0xff]
  %v326 = vld [vmem:[%s0 + $0x18] sm:$0xff]
  %v327 = vpack.c.bf16 %v324, %v323
  %v328 = vpack.c.bf16 %v326, %v325
  %331 = vrot.lane.b32.xlu0 %v327, 120
  %v332 = vpop.permute.xlu0 %331
  %333 = vrot.lane.b32.xlu0 %v328, 120
  %v334 = vpop.permute.xlu0 %333
  %v335 = vrot.slane %v332, 4
  %v336 = vrot.slane %v334, 4
  %vm337 = vcmask 982016
  %v338 = vsel %vm337, %v332, %v335
  %v339 = vsel %vm337, %v334, %v336
  %342 = vst [vmem:[#allocation2 + $0x80] sm:$0xf] %v338
  %343 = vst [vmem:[#allocation2 + $0x88] sm:$0xf] %v339
  %v344 = vld [vmem:[%s29] sm:$0xff]
  %v345 = vld [vmem:[%s29 + $0x8] sm:$0xff]
  %v346 = vld [vmem:[%s29 + $0x10] sm:$0xff]
  %v347 = vld [vmem:[%s29 + $0x18] sm:$0xff]
  %v348 = vpack.c.bf16 %v345, %v344
  %v349 = vpack.c.bf16 %v347, %v346
  %352 = vrot.lane.b32.xlu0 %v348, 120
  %v353 = vpop.permute.xlu0 %352
  %354 = vrot.lane.b32.xlu0 %v349, 120
  %v355 = vpop.permute.xlu0 %354
  %v356 = vrot.slane %v353, 4
  %v357 = vrot.slane %v355, 4
  %v358 = vsel %vm337, %v353, %v356
  %v359 = vsel %vm337, %v355, %v357
  %362 = vst [vmem:[#allocation2 + $0x84] sm:$0xf] %v358
  %363 = vst [vmem:[#allocation2 + $0x8c] sm:$0xf] %v359
  %v364 = vld [vmem:[%s0] sm:$0xff]
  %v365 = vld [vmem:[%s0 + $0x8] sm:$0xff]
  %v366 = vld [vmem:[%s0 + $0x10] sm:$0xff]
  %v367 = vld [vmem:[%s0 + $0x18] sm:$0xff]
  %v368 = vpack.c.bf16 %v365, %v364
  %v369 = vpack.c.bf16 %v367, %v366
  %372 = vrot.lane.b32.xlu0 %v368, 119
  %v373 = vpop.permute.xlu0 %372
  %374 = vrot.lane.b32.xlu0 %v369, 119
  %v375 = vpop.permute.xlu0 %374
  %v376 = vrot.slane %v373, 4
  %v377 = vrot.slane %v375, 4
  %vm378 = vcmask 973824
  %v379 = vsel %vm378, %v373, %v376
  %v380 = vsel %vm378, %v375, %v377
  %383 = vst [vmem:[#allocation2 + $0x90] sm:$0xf] %v379
  %384 = vst [vmem:[#allocation2 + $0x98] sm:$0xf] %v380
  %v385 = vld [vmem:[%s29] sm:$0xff]
  %v386 = vld [vmem:[%s29 + $0x8] sm:$0xff]
  %v387 = vld [vmem:[%s29 + $0x10] sm:$0xff]
  %v388 = vld [vmem:[%s29 + $0x18] sm:$0xff]
  %v389 = vpack.c.bf16 %v386, %v385
  %v390 = vpack.c.bf16 %v388, %v387
  %393 = vrot.lane.b32.xlu0 %v389, 119
  %v394 = vpop.permute.xlu0 %393
  %395 = vrot.lane.b32.xlu0 %v390, 119
  %v396 = vpop.permute.xlu0 %395
  %v397 = vrot.slane %v394, 4
  %v398 = vrot.slane %v396, 4
  %v399 = vsel %vm378, %v394, %v397
  %v400 = vsel %vm378, %v396, %v398
  %403 = vst [vmem:[#allocation2 + $0x94] sm:$0xf] %v399
  %404 = vst [vmem:[#allocation2 + $0x9c] sm:$0xf] %v400
  %v405 = vld [vmem:[%s0] sm:$0xff]
  %v406 = vld [vmem:[%s0 + $0x8] sm:$0xff]
  %v407 = vld [vmem:[%s0 + $0x10] sm:$0xff]
  %v408 = vld [vmem:[%s0 + $0x18] sm:$0xff]
  %v409 = vpack.c.bf16 %v406, %v405
  %v410 = vpack.c.bf16 %v408, %v407
  %413 = vrot.lane.b32.xlu0 %v409, 118
  %v414 = vpop.permute.xlu0 %413
  %415 = vrot.lane.b32.xlu0 %v410, 118
  %v416 = vpop.permute.xlu0 %415
  %v417 = vrot.slane %v414, 4
  %v418 = vrot.slane %v416, 4
  %vm419 = vcmask 965632
  %v420 = vsel %vm419, %v414, %v417
  %v421 = vsel %vm419, %v416, %v418
  %424 = vst [vmem:[#allocation2 + $0xa0] sm:$0xf] %v420
  %425 = vst [vmem:[#allocation2 + $0xa8] sm:$0xf] %v421
  %v426 = vld [vmem:[%s29] sm:$0xff]
  %v427 = vld [vmem:[%s29 + $0x8] sm:$0xff]
  %v428 = vld [vmem:[%s29 + $0x10] sm:$0xff]
  %v429 = vld [vmem:[%s29 + $0x18] sm:$0xff]
  %v430 = vpack.c.bf16 %v427, %v426
  %v431 = vpack.c.bf16 %v429, %v428
  %434 = vrot.lane.b32.xlu0 %v430, 118
  %v435 = vpop.permute.xlu0 %434
  %436 = vrot.lane.b32.xlu0 %v431, 118
  %v437 = vpop.permute.xlu0 %436
  %v438 = vrot.slane %v435, 4
  %v439 = vrot.slane %v437, 4
  %v440 = vsel %vm419, %v435, %v438
  %v441 = vsel %vm419, %v437, %v439
  %444 = vst [vmem:[#allocation2 + $0xa4] sm:$0xf] %v440
  %445 = vst [vmem:[#allocation2 + $0xac] sm:$0xf] %v441
  %v446 = vld [vmem:[%s0] sm:$0xff]
  %v447 = vld [vmem:[%s0 + $0x8] sm:$0xff]
  %v448 = vld [vmem:[%s0 + $0x10] sm:$0xff]
  %v449 = vld [vmem:[%s0 + $0x18] sm:$0xff]
  %v450 = vpack.c.bf16 %v447, %v446
  %v451 = vpack.c.bf16 %v449, %v448
  %454 = vrot.lane.b32.xlu0 %v450, 117
  %v455 = vpop.permute.xlu0 %454
  %456 = vrot.lane.b32.xlu0 %v451, 117
  %v457 = vpop.permute.xlu0 %456
  %v458 = vrot.slane %v455, 4
  %v459 = vrot.slane %v457, 4
  %vm460 = vcmask 957440
  %v461 = vsel %vm460, %v455, %v458
  %v462 = vsel %vm460, %v457, %v459
  %465 = vst [vmem:[#allocation2 + $0xb0] sm:$0xf] %v461
  %466 = vst [vmem:[#allocation2 + $0xb8] sm:$0xf] %v462
  %v467 = vld [vmem:[%s29] sm:$0xff]
  %v468 = vld [vmem:[%s29 + $0x8] sm:$0xff]
  %v469 = vld [vmem:[%s29 + $0x10] sm:$0xff]
  %v470 = vld [vmem:[%s29 + $0x18] sm:$0xff]
  %v471 = vpack.c.bf16 %v468, %v467
  %v472 = vpack.c.bf16 %v470, %v469
  %475 = vrot.lane.b32.xlu0 %v471, 117
  %v476 = vpop.permute.xlu0 %475
  %477 = vrot.lane.b32.xlu0 %v472, 117
  %v478 = vpop.permute.xlu0 %477
  %v479 = vrot.slane %v476, 4
  %v480 = vrot.slane %v478, 4
  %v481 = vsel %vm460, %v476, %v479
  %v482 = vsel %vm460, %v478, %v480
  %485 = vst [vmem:[#allocation2 + $0xb4] sm:$0xf] %v481
  %486 = vst [vmem:[#allocation2 + $0xbc] sm:$0xf] %v482
  %v487 = vld [vmem:[%s0] sm:$0xff]
  %v488 = vld [vmem:[%s0 + $0x8] sm:$0xff]
  %v489 = vld [vmem:[%s0 + $0x10] sm:$0xff]
  %v490 = vld [vmem:[%s0 + $0x18] sm:$0xff]
  %v491 = vpack.c.bf16 %v488, %v487
  %v492 = vpack.c.bf16 %v490, %v489
  %495 = vrot.lane.b32.xlu0 %v491, 116
  %v496 = vpop.permute.xlu0 %495
  %497 = vrot.lane.b32.xlu0 %v492, 116
  %v498 = vpop.permute.xlu0 %497
  %v499 = vrot.slane %v496, 4
  %v500 = vrot.slane %v498, 4
  %vm501 = vcmask 949248
  %v502 = vsel %vm501, %v496, %v499
  %v503 = vsel %vm501, %v498, %v500
  %506 = vst [vmem:[#allocation2 + $0xc0] sm:$0xf] %v502
  %507 = vst [vmem:[#allocation2 + $0xc8] sm:$0xf] %v503
  %v508 = vld [vmem:[%s29] sm:$0xff]
  %v509 = vld [vmem:[%s29 + $0x8] sm:$0xff]
  %v510 = vld [vmem:[%s29 + $0x10] sm:$0xff]
  %v511 = vld [vmem:[%s29 + $0x18] sm:$0xff]
  %v512 = vpack.c.bf16 %v509, %v508
  %v513 = vpack.c.bf16 %v511, %v510
  %516 = vrot.lane.b32.xlu0 %v512, 116
  %v517 = vpop.permute.xlu0 %516
  %518 = vrot.lane.b32.xlu0 %v513, 116
  %v519 = vpop.permute.xlu0 %518
  %v520 = vrot.slane %v517, 4
  %v521 = vrot.slane %v519, 4
  %v522 = vsel %vm501, %v517, %v520
  %v523 = vsel %vm501, %v519, %v521
  %526 = vst [vmem:[#allocation2 + $0xc4] sm:$0xf] %v522
  %527 = vst [vmem:[#allocation2 + $0xcc] sm:$0xf] %v523
  %v528 = vld [vmem:[%s0] sm:$0xff]
  %v529 = vld [vmem:[%s0 + $0x8] sm:$0xff]
  %v530 = vld [vmem:[%s0 + $0x10] sm:$0xff]
  %v531 = vld [vmem:[%s0 + $0x18] sm:$0xff]
  %v532 = vpack.c.bf16 %v529, %v528
  %v533 = vpack.c.bf16 %v531, %v530
  %536 = vrot.lane.b32.xlu0 %v532, 115
  %v537 = vpop.permute.xlu0 %536
  %538 = vrot.lane.b32.xlu0 %v533, 115
  %v539 = vpop.permute.xlu0 %538
  %v540 = vrot.slane %v537, 4
  %v541 = vrot.slane %v539, 4
  %vm542 = vcmask 941056
  %v543 = vsel %vm542, %v537, %v540
  %v544 = vsel %vm542, %v539, %v541
  %547 = vst [vmem:[#allocation2 + $0xd0] sm:$0xf] %v543
  %548 = vst [vmem:[#allocation2 + $0xd8] sm:$0xf] %v544
  %v549 = vld [vmem:[%s29] sm:$0xff]
  %v550 = vld [vmem:[%s29 + $0x8] sm:$0xff]
  %v551 = vld [vmem:[%s29 + $0x10] sm:$0xff]
  %v552 = vld [vmem:[%s29 + $0x18] sm:$0xff]
  %v553 = vpack.c.bf16 %v550, %v549
  %v554 = vpack.c.bf16 %v552, %v551
  %557 = vrot.lane.b32.xlu0 %v553, 115
  %v558 = vpop.permute.xlu0 %557
  %559 = vrot.lane.b32.xlu0 %v554, 115
  %v560 = vpop.permute.xlu0 %559
  %v561 = vrot.slane %v558, 4
  %v562 = vrot.slane %v560, 4
  %v563 = vsel %vm542, %v558, %v561
  %v564 = vsel %vm542, %v560, %v562
  %567 = vst [vmem:[#allocation2 + $0xd4] sm:$0xf] %v563
  %568 = vst [vmem:[#allocation2 + $0xdc] sm:$0xf] %v564
  %v569 = vld [vmem:[%s0] sm:$0xff]
  %v570 = vld [vmem:[%s0 + $0x8] sm:$0xff]
  %v571 = vld [vmem:[%s0 + $0x10] sm:$0xff]
  %v572 = vld [vmem:[%s0 + $0x18] sm:$0xff]
  %v573 = vpack.c.bf16 %v570, %v569
  %v574 = vpack.c.bf16 %v572, %v571
  %577 = vrot.lane.b32.xlu0 %v573, 114
  %v578 = vpop.permute.xlu0 %577
  %579 = vrot.lane.b32.xlu0 %v574, 114
  %v580 = vpop.permute.xlu0 %579
  %v581 = vrot.slane %v578, 4
  %v582 = vrot.slane %v580, 4
  %vm583 = vcmask 932864
  %v584 = vsel %vm583, %v578, %v581
  %v585 = vsel %vm583, %v580, %v582
  %588 = vst [vmem:[#allocation2 + $0xe0] sm:$0xf] %v584
  %589 = vst [vmem:[#allocation2 + $0xe8] sm:$0xf] %v585
  %v590 = vld [vmem:[%s29] sm:$0xff]
  %v591 = vld [vmem:[%s29 + $0x8] sm:$0xff]
  %v592 = vld [vmem:[%s29 + $0x10] sm:$0xff]
  %v593 = vld [vmem:[%s29 + $0x18] sm:$0xff]
  %v594 = vpack.c.bf16 %v591, %v590
  %v595 = vpack.c.bf16 %v593, %v592
  %598 = vrot.lane.b32.xlu0 %v594, 114
  %v599 = vpop.permute.xlu0 %598
  %600 = vrot.lane.b32.xlu0 %v595, 114
  %v601 = vpop.permute.xlu0 %600
  %v602 = vrot.slane %v599, 4
  %v603 = vrot.slane %v601, 4
  %v604 = vsel %vm583, %v599, %v602
  %v605 = vsel %vm583, %v601, %v603
  %608 = vst [vmem:[#allocation2 + $0xe4] sm:$0xf] %v604
  %609 = vst [vmem:[#allocation2 + $0xec] sm:$0xf] %v605
  %v610 = vld [vmem:[%s0] sm:$0xff]
  %v611 = vld [vmem:[%s0 + $0x8] sm:$0xff]
  %v612 = vld [vmem:[%s0 + $0x10] sm:$0xff]
  %v613 = vld [vmem:[%s0 + $0x18] sm:$0xff]
  %v614 = vpack.c.bf16 %v611, %v610
  %v615 = vpack.c.bf16 %v613, %v612
  %618 = vrot.lane.b32.xlu0 %v614, 113
  %v619 = vpop.permute.xlu0 %618
  %620 = vrot.lane.b32.xlu0 %v615, 113
  %v621 = vpop.permute.xlu0 %620
  %v622 = vrot.slane %v619, 4
  %v623 = vrot.slane %v621, 4
  %vm624 = vcmask 924672
  %v625 = vsel %vm624, %v619, %v622
  %v626 = vsel %vm624, %v621, %v623
  %629 = vst [vmem:[#allocation2 + $0xf0] sm:$0xf] %v625
  %630 = vst [vmem:[#allocation2 + $0xf8] sm:$0xf] %v626
  %v631 = vld [vmem:[%s29] sm:$0xff]
  %v632 = vld [vmem:[%s29 + $0x8] sm:$0xff]
  %v633 = vld [vmem:[%s29 + $0x10] sm:$0xff]
  %v634 = vld [vmem:[%s29 + $0x18] sm:$0xff]
  %v635 = vpack.c.bf16 %v632, %v631
  %v636 = vpack.c.bf16 %v634, %v633
  %639 = vrot.lane.b32.xlu0 %v635, 113
  %v640 = vpop.permute.xlu0 %639
  %641 = vrot.lane.b32.xlu0 %v636, 113
  %v642 = vpop.permute.xlu0 %641
  %v643 = vrot.slane %v640, 4
  %v644 = vrot.slane %v642, 4
  %v645 = vsel %vm624, %v640, %v643
  %v646 = vsel %vm624, %v642, %v644
  %649 = vst [vmem:[#allocation2 + $0xf4] sm:$0xf] %v645
  %650 = vst [vmem:[#allocation2 + $0xfc] sm:$0xf] %v646
  %v651 = vld [vmem:[%s0] sm:$0xff]
  %v652 = vld [vmem:[%s0 + $0x8] sm:$0xff]
  %v653 = vld [vmem:[%s0 + $0x10] sm:$0xff]
  %v654 = vld [vmem:[%s0 + $0x18] sm:$0xff]
  %v655 = vpack.c.bf16 %v652, %v651
  %v656 = vpack.c.bf16 %v654, %v653
  %659 = vrot.lane.b32.xlu0 %v655, 112
  %v660 = vpop.permute.xlu0 %659
  %661 = vrot.lane.b32.xlu0 %v656, 112
  %v662 = vpop.permute.xlu0 %661
  %v663 = vrot.slane %v660, 4
  %v664 = vrot.slane %v662, 4
  %vm665 = vcmask 916480
  %v666 = vsel %vm665, %v660, %v663
  %v667 = vsel %vm665, %v662, %v664
  %670 = vst [vmem:[#allocation2 + $0x100] sm:$0xf] %v666
  %671 = vst [vmem:[#allocation2 + $0x108] sm:$0xf] %v667
  %v672 = vld [vmem:[%s29] sm:$0xff]
  %v673 = vld [vmem:[%s29 + $0x8] sm:$0xff]
  %v674 = vld [vmem:[%s29 + $0x10] sm:$0xff]
  %v675 = vld [vmem:[%s29 + $0x18] sm:$0xff]
  %v676 = vpack.c.bf16 %v673, %v672
  %v677 = vpack.c.bf16 %v675, %v674
  %680 = vrot.lane.b32.xlu0 %v676, 112
  %v681 = vpop.permute.xlu0 %680
  %682 = vrot.lane.b32.xlu0 %v677, 112
  %v683 = vpop.permute.xlu0 %682
  %v684 = vrot.slane %v681, 4
  %v685 = vrot.slane %v683, 4
  %v686 = vsel %vm665, %v681, %v684
  %v687 = vsel %vm665, %v683, %v685
  %690 = vst [vmem:[#allocation2 + $0x104] sm:$0xf] %v686
  %691 = vst [vmem:[#allocation2 + $0x10c] sm:$0xf] %v687
  %v692 = vld [vmem:[%s0] sm:$0xff]
  %v693 = vld [vmem:[%s0 + $0x8] sm:$0xff]
  %v694 = vld [vmem:[%s0 + $0x10] sm:$0xff]
  %v695 = vld [vmem:[%s0 + $0x18] sm:$0xff]
  %v696 = vpack.c.bf16 %v693, %v692
  %v697 = vpack.c.bf16 %v695, %v694
  %700 = vrot.lane.b32.xlu0 %v696, 111
  %v701 = vpop.permute.xlu0 %700
  %702 = vrot.lane.b32.xlu0 %v697, 111
  %v703 = vpop.permute.xlu0 %702
  %v704 = vrot.slane %v701, 4
  %v705 = vrot.slane %v703, 4
  %vm706 = vcmask 908288
  %v707 = vsel %vm706, %v701, %v704
  %v708 = vsel %vm706, %v703, %v705
  %711 = vst [vmem:[#allocation2 + $0x110] sm:$0xf] %v707
  %712 = vst [vmem:[#allocation2 + $0x118] sm:$0xf] %v708
  %v713 = vld [vmem:[%s29] sm:$0xff]
  %v714 = vld [vmem:[%s29 + $0x8] sm:$0xff]
  %v715 = vld [vmem:[%s29 + $0x10] sm:$0xff]
  %v716 = vld [vmem:[%s29 + $0x18] sm:$0xff]
  %v717 = vpack.c.bf16 %v714, %v713
  %v718 = vpack.c.bf16 %v716, %v715
  %721 = vrot.lane.b32.xlu0 %v717, 111
  %v722 = vpop.permute.xlu0 %721
  %723 = vrot.lane.b32.xlu0 %v718, 111
  %v724 = vpop.permute.xlu0 %723
  %v725 = vrot.slane %v722, 4
  %v726 = vrot.slane %v724, 4
  %v727 = vsel %vm706, %v722, %v725
  %v728 = vsel %vm706, %v724, %v726
  %731 = vst [vmem:[#allocation2 + $0x114] sm:$0xf] %v727
  %732 = vst [vmem:[#allocation2 + $0x11c] sm:$0xf] %v728
  %v733 = vld [vmem:[%s0] sm:$0xff]
  %v734 = vld [vmem:[%s0 + $0x8] sm:$0xff]
  %v735 = vld [vmem:[%s0 + $0x10] sm:$0xff]
  %v736 = vld [vmem:[%s0 + $0x18] sm:$0xff]
  %v737 = vpack.c.bf16 %v734, %v733
  %v738 = vpack.c.bf16 %v736, %v735
  %741 = vrot.lane.b32.xlu0 %v737, 110
  %v742 = vpop.permute.xlu0 %741
  %743 = vrot.lane.b32.xlu0 %v738, 110
  %v744 = vpop.permute.xlu0 %743
  %v745 = vrot.slane %v742, 4
  %v746 = vrot.slane %v744, 4
  %vm747 = vcmask 900096
  %v748 = vsel %vm747, %v742, %v745
  %v749 = vsel %vm747, %v744, %v746
  %752 = vst [vmem:[#allocation2 + $0x120] sm:$0xf] %v748
  %753 = vst [vmem:[#allocation2 + $0x128] sm:$0xf] %v749
  %v754 = vld [vmem:[%s29] sm:$0xff]
  %v755 = vld [vmem:[%s29 + $0x8] sm:$0xff]
  %v756 = vld [vmem:[%s29 + $0x10] sm:$0xff]
  %v757 = vld [vmem:[%s29 + $0x18] sm:$0xff]
  %v758 = vpack.c.bf16 %v755, %v754
  %v759 = vpack.c.bf16 %v757, %v756
  %762 = vrot.lane.b32.xlu0 %v758, 110
  %v763 = vpop.permute.xlu0 %762
  %764 = vrot.lane.b32.xlu0 %v759, 110
  %v765 = vpop.permute.xlu0 %764
  %v766 = vrot.slane %v763, 4
  %v767 = vrot.slane %v765, 4
  %v768 = vsel %vm747, %v763, %v766
  %v769 = vsel %vm747, %v765, %v767
  %772 = vst [vmem:[#allocation2 + $0x124] sm:$0xf] %v768
  %773 = vst [vmem:[#allocation2 + $0x12c] sm:$0xf] %v769
  %v774 = vld [vmem:[%s0] sm:$0xff]
  %v775 = vld [vmem:[%s0 + $0x8] sm:$0xff]
  %v776 = vld [vmem:[%s0 + $0x10] sm:$0xff]
  %v777 = vld [vmem:[%s0 + $0x18] sm:$0xff]
  %v778 = vpack.c.bf16 %v775, %v774
  %v779 = vpack.c.bf16 %v777, %v776
  %782 = vrot.lane.b32.xlu0 %v778, 109
  %v783 = vpop.permute.xlu0 %782
  %784 = vrot.lane.b32.xlu0 %v779, 109
  %v785 = vpop.permute.xlu0 %784
  %v786 = vrot.slane %v783, 4
  %v787 = vrot.slane %v785, 4
  %vm788 = vcmask 891904
  %v789 = vsel %vm788, %v783, %v786
  %v790 = vsel %vm788, %v785, %v787
  %793 = vst [vmem:[#allocation2 + $0x130] sm:$0xf] %v789
  %794 = vst [vmem:[#allocation2 + $0x138] sm:$0xf] %v790
  %v795 = vld [vmem:[%s29] sm:$0xff]
  %v796 = vld [vmem:[%s29 + $0x8] sm:$0xff]
  %v797 = vld [vmem:[%s29 + $0x10] sm:$0xff]
  %v798 = vld [vmem:[%s29 + $0x18] sm:$0xff]
  %v799 = vpack.c.bf16 %v796, %v795
  %v800 = vpack.c.bf16 %v798, %v797
  %803 = vrot.lane.b32.xlu0 %v799, 109
  %v804 = vpop.permute.xlu0 %803
  %805 = vrot.lane.b32.xlu0 %v800, 109
  %v806 = vpop.permute.xlu0 %805
  %v807 = vrot.slane %v804, 4
  %v808 = vrot.slane %v806, 4
  %v809 = vsel %vm788, %v804, %v807
  %v810 = vsel %vm788, %v806, %v808
  %813 = vst [vmem:[#allocation2 + $0x134] sm:$0xf] %v809
  %814 = vst [vmem:[#allocation2 + $0x13c] sm:$0xf] %v810
  %v815 = vld [vmem:[%s0] sm:$0xff]
  %v816 = vld [vmem:[%s0 + $0x8] sm:$0xff]
  %v817 = vld [vmem:[%s0 + $0x10] sm:$0xff]
  %v818 = vld [vmem:[%s0 + $0x18] sm:$0xff]
  %v819 = vpack.c.bf16 %v816, %v815
  %v820 = vpack.c.bf16 %v818, %v817
  %823 = vrot.lane.b32.xlu0 %v819, 108
  %v824 = vpop.permute.xlu0 %823
  %825 = vrot.lane.b32.xlu0 %v820, 108
  %v826 = vpop.permute.xlu0 %825
  %v827 = vrot.slane %v824, 4
  %v828 = vrot.slane %v826, 4
  %vm829 = vcmask 883712
  %v830 = vsel %vm829, %v824, %v827
  %v831 = vsel %vm829, %v826, %v828
  %834 = vst [vmem:[#allocation2 + $0x140] sm:$0xf] %v830
  %835 = vst [vmem:[#allocation2 + $0x148] sm:$0xf] %v831
  %v836 = vld [vmem:[%s29] sm:$0xff]
  %v837 = vld [vmem:[%s29 + $0x8] sm:$0xff]
  %v838 = vld [vmem:[%s29 + $0x10] sm:$0xff]
  %v839 = vld [vmem:[%s29 + $0x18] sm:$0xff]
  %v840 = vpack.c.bf16 %v837, %v836
  %v841 = vpack.c.bf16 %v839, %v838
  %844 = vrot.lane.b32.xlu0 %v840, 108
  %v845 = vpop.permute.xlu0 %844
  %846 = vrot.lane.b32.xlu0 %v841, 108
  %v847 = vpop.permute.xlu0 %846
  %v848 = vrot.slane %v845, 4
  %v849 = vrot.slane %v847, 4
  %v850 = vsel %vm829, %v845, %v848
  %v851 = vsel %vm829, %v847, %v849
  %854 = vst [vmem:[#allocation2 + $0x144] sm:$0xf] %v850
  %855 = vst [vmem:[#allocation2 + $0x14c] sm:$0xf] %v851
  %v856 = vld [vmem:[%s0] sm:$0xff]
  %v857 = vld [vmem:[%s0 + $0x8] sm:$0xff]
  %v858 = vld [vmem:[%s0 + $0x10] sm:$0xff]
  %v859 = vld [vmem:[%s0 + $0x18] sm:$0xff]
  %v860 = vpack.c.bf16 %v857, %v856
  %v861 = vpack.c.bf16 %v859, %v858
  %864 = vrot.lane.b32.xlu0 %v860, 107
  %v865 = vpop.permute.xlu0 %864
  %866 = vrot.lane.b32.xlu0 %v861, 107
  %v867 = vpop.permute.xlu0 %866
  %v868 = vrot.slane %v865, 4
  %v869 = vrot.slane %v867, 4
  %vm870 = vcmask 875520
  %v871 = vsel %vm870, %v865, %v868
  %v872 = vsel %vm870, %v867, %v869
  %875 = vst [vmem:[#allocation2 + $0x150] sm:$0xf] %v871
  %876 = vst [vmem:[#allocation2 + $0x158] sm:$0xf] %v872
  %v877 = vld [vmem:[%s29] sm:$0xff]
  %v878 = vld [vmem:[%s29 + $0x8] sm:$0xff]
  %v879 = vld [vmem:[%s29 + $0x10] sm:$0xff]
  %v880 = vld [vmem:[%s29 + $0x18] sm:$0xff]
  %v881 = vpack.c.bf16 %v878, %v877
  %v882 = vpack.c.bf16 %v880, %v879
  %885 = vrot.lane.b32.xlu0 %v881, 107
  %v886 = vpop.permute.xlu0 %885
  %887 = vrot.lane.b32.xlu0 %v882, 107
  %v888 = vpop.permute.xlu0 %887
  %v889 = vrot.slane %v886, 4
  %v890 = vrot.slane %v888, 4
  %v891 = vsel %vm870, %v886, %v889
  %v892 = vsel %vm870, %v888, %v890
  %895 = vst [vmem:[#allocation2 + $0x154] sm:$0xf] %v891
  %896 = vst [vmem:[#allocation2 + $0x15c] sm:$0xf] %v892
  %v897 = vld [vmem:[%s0] sm:$0xff]
  %v898 = vld [vmem:[%s0 + $0x8] sm:$0xff]
  %v899 = vld [vmem:[%s0 + $0x10] sm:$0xff]
  %v900 = vld [vmem:[%s0 + $0x18] sm:$0xff]
  %v901 = vpack.c.bf16 %v898, %v897
  %v902 = vpack.c.bf16 %v900, %v899
  %905 = vrot.lane.b32.xlu0 %v901, 106
  %v906 = vpop.permute.xlu0 %905
  %907 = vrot.lane.b32.xlu0 %v902, 106
  %v908 = vpop.permute.xlu0 %907
  %v909 = vrot.slane %v906, 4
  %v910 = vrot.slane %v908, 4
  %vm911 = vcmask 867328
  %v912 = vsel %vm911, %v906, %v909
  %v913 = vsel %vm911, %v908, %v910
  %916 = vst [vmem:[#allocation2 + $0x160] sm:$0xf] %v912
  %917 = vst [vmem:[#allocation2 + $0x168] sm:$0xf] %v913
  %v918 = vld [vmem:[%s29] sm:$0xff]
  %v919 = vld [vmem:[%s29 + $0x8] sm:$0xff]
  %v920 = vld [vmem:[%s29 + $0x10] sm:$0xff]
  %v921 = vld [vmem:[%s29 + $0x18] sm:$0xff]
  %v922 = vpack.c.bf16 %v919, %v918
  %v923 = vpack.c.bf16 %v921, %v920
  %926 = vrot.lane.b32.xlu0 %v922, 106
  %v927 = vpop.permute.xlu0 %926
  %928 = vrot.lane.b32.xlu0 %v923, 106
  %v929 = vpop.permute.xlu0 %928
  %v930 = vrot.slane %v927, 4
  %v931 = vrot.slane %v929, 4
  %v932 = vsel %vm911, %v927, %v930
  %v933 = vsel %vm911, %v929, %v931
  %936 = vst [vmem:[#allocation2 + $0x164] sm:$0xf] %v932
  %937 = vst [vmem:[#allocation2 + $0x16c] sm:$0xf] %v933
  %v938 = vld [vmem:[%s0] sm:$0xff]
  %v939 = vld [vmem:[%s0 + $0x8] sm:$0xff]
  %v940 = vld [vmem:[%s0 + $0x10] sm:$0xff]
  %v941 = vld [vmem:[%s0 + $0x18] sm:$0xff]
  %v942 = vpack.c.bf16 %v939, %v938
  %v943 = vpack.c.bf16 %v941, %v940
  %946 = vrot.lane.b32.xlu0 %v942, 105
  %v947 = vpop.permute.xlu0 %946
  %948 = vrot.lane.b32.xlu0 %v943, 105
  %v949 = vpop.permute.xlu0 %948
  %v950 = vrot.slane %v947, 4
  %v951 = vrot.slane %v949, 4
  %vm952 = vcmask 859136
  %v953 = vsel %vm952, %v947, %v950
  %v954 = vsel %vm952, %v949, %v951
  %957 = vst [vmem:[#allocation2 + $0x170] sm:$0xf] %v953
  %958 = vst [vmem:[#allocation2 + $0x178] sm:$0xf] %v954
  %v959 = vld [vmem:[%s29] sm:$0xff]
  %v960 = vld [vmem:[%s29 + $0x8] sm:$0xff]
  %v961 = vld [vmem:[%s29 + $0x10] sm:$0xff]
  %v962 = vld [vmem:[%s29 + $0x18] sm:$0xff]
  %v963 = vpack.c.bf16 %v960, %v959
  %v964 = vpack.c.bf16 %v962, %v961
  %967 = vrot.lane.b32.xlu0 %v963, 105
  %v968 = vpop.permute.xlu0 %967
  %969 = vrot.lane.b32.xlu0 %v964, 105
  %v970 = vpop.permute.xlu0 %969
  %v971 = vrot.slane %v968, 4
  %v972 = vrot.slane %v970, 4
  %v973 = vsel %vm952, %v968, %v971
  %v974 = vsel %vm952, %v970, %v972
  %977 = vst [vmem:[#allocation2 + $0x174] sm:$0xf] %v973
  %978 = vst [vmem:[#allocation2 + $0x17c] sm:$0xf] %v974
  %v979 = vld [vmem:[%s0] sm:$0xff]
  %v980 = vld [vmem:[%s0 + $0x8] sm:$0xff]
  %v981 = vld [vmem:[%s0 + $0x10] sm:$0xff]
  %v982 = vld [vmem:[%s0 + $0x18] sm:$0xff]
  %v983 = vpack.c.bf16 %v980, %v979
  %v984 = vpack.c.bf16 %v982, %v981
  %987 = vrot.lane.b32.xlu0 %v983, 104
  %v988 = vpop.permute.xlu0 %987
  %989 = vrot.lane.b32.xlu0 %v984, 104
  %v990 = vpop.permute.xlu0 %989
  %v991 = vrot.slane %v988, 4
  %v992 = vrot.slane %v990, 4
  %vm993 = vcmask 850944
  %v994 = vsel %vm993, %v988, %v991
  %v995 = vsel %vm993, %v990, %v992
  %998 = vst [vmem:[#allocation2 + $0x180] sm:$0xf] %v994
  %999 = vst [vmem:[#allocation2 + $0x188] sm:$0xf] %v995
  %v1000 = vld [vmem:[%s29] sm:$0xff]
  %v1001 = vld [vmem:[%s29 + $0x8] sm:$0xff]
  %v1002 = vld [vmem:[%s29 + $0x10] sm:$0xff]
  %v1003 = vld [vmem:[%s29 + $0x18] sm:$0xff]
  %v1004 = vpack.c.bf16 %v1001, %v1000
  %v1005 = vpack.c.bf16 %v1003, %v1002
  %1008 = vrot.lane.b32.xlu0 %v1004, 104
  %v1009 = vpop.permute.xlu0 %1008
  %1010 = vrot.lane.b32.xlu0 %v1005, 104
  %v1011 = vpop.permute.xlu0 %1010
  %v1012 = vrot.slane %v1009, 4
  %v1013 = vrot.slane %v1011, 4
  %v1014 = vsel %vm993, %v1009, %v1012
  %v1015 = vsel %vm993, %v1011, %v1013
  %1018 = vst [vmem:[#allocation2 + $0x184] sm:$0xf] %v1014
  %1019 = vst [vmem:[#allocation2 + $0x18c] sm:$0xf] %v1015
  %v1020 = vld [vmem:[%s0] sm:$0xff]
  %v1021 = vld [vmem:[%s0 + $0x8] sm:$0xff]
  %v1022 = vld [vmem:[%s0 + $0x10] sm:$0xff]
  %v1023 = vld [vmem:[%s0 + $0x18] sm:$0xff]
  %v1024 = vpack.c.bf16 %v1021, %v1020
  %v1025 = vpack.c.bf16 %v1023, %v1022
  %1028 = vrot.lane.b32.xlu0 %v1024, 103
  %v1029 = vpop.permute.xlu0 %1028
  %1030 = vrot.lane.b32.xlu0 %v1025, 103
  %v1031 = vpop.permute.xlu0 %1030
  %v1032 = vrot.slane %v1029, 4
  %v1033 = vrot.slane %v1031, 4
  %vm1034 = vcmask 842752
  %v1035 = vsel %vm1034, %v1029, %v1032
  %v1036 = vsel %vm1034, %v1031, %v1033
  %1039 = vst [vmem:[#allocation2 + $0x190] sm:$0xf] %v1035
  %1040 = vst [vmem:[#allocation2 + $0x198] sm:$0xf] %v1036
  %v1041 = vld [vmem:[%s29] sm:$0xff]
  %v1042 = vld [vmem:[%s29 + $0x8] sm:$0xff]
  %v1043 = vld [vmem:[%s29 + $0x10] sm:$0xff]
  %v1044 = vld [vmem:[%s29 + $0x18] sm:$0xff]
  %v1045 = vpack.c.bf16 %v1042, %v1041
  %v1046 = vpack.c.bf16 %v1044, %v1043
  %1049 = vrot.lane.b32.xlu0 %v1045, 103
  %v1050 = vpop.permute.xlu0 %1049
  %1051 = vrot.lane.b32.xlu0 %v1046, 103
  %v1052 = vpop.permute.xlu0 %1051
  %v1053 = vrot.slane %v1050, 4
  %v1054 = vrot.slane %v1052, 4
  %v1055 = vsel %vm1034, %v1050, %v1053
  %v1056 = vsel %vm1034, %v1052, %v1054
  %1059 = vst [vmem:[#allocation2 + $0x194] sm:$0xf] %v1055
  %1060 = vst [vmem:[#allocation2 + $0x19c] sm:$0xf] %v1056
  %v1061 = vld [vmem:[%s0] sm:$0xff]
  %v1062 = vld [vmem:[%s0 + $0x8] sm:$0xff]
  %v1063 = vld [vmem:[%s0 + $0x10] sm:$0xff]
  %v1064 = vld [vmem:[%s0 + $0x18] sm:$0xff]
  %v1065 = vpack.c.bf16 %v1062, %v1061
  %v1066 = vpack.c.bf16 %v1064, %v1063
  %1069 = vrot.lane.b32.xlu0 %v1065, 102
  %v1070 = vpop.permute.xlu0 %1069
  %1071 = vrot.lane.b32.xlu0 %v1066, 102
  %v1072 = vpop.permute.xlu0 %1071
  %v1073 = vrot.slane %v1070, 4
  %v1074 = vrot.slane %v1072, 4
  %vm1075 = vcmask 834560
  %v1076 = vsel %vm1075, %v1070, %v1073
  %v1077 = vsel %vm1075, %v1072, %v1074
  %1080 = vst [vmem:[#allocation2 + $0x1a0] sm:$0xf] %v1076
  %1081 = vst [vmem:[#allocation2 + $0x1a8] sm:$0xf] %v1077
  %v1082 = vld [vmem:[%s29] sm:$0xff]
  %v1083 = vld [vmem:[%s29 + $0x8] sm:$0xff]
  %v1084 = vld [vmem:[%s29 + $0x10] sm:$0xff]
  %v1085 = vld [vmem:[%s29 + $0x18] sm:$0xff]
  %v1086 = vpack.c.bf16 %v1083, %v1082
  %v1087 = vpack.c.bf16 %v1085, %v1084
  %1090 = vrot.lane.b32.xlu0 %v1086, 102
  %v1091 = vpop.permute.xlu0 %1090
  %1092 = vrot.lane.b32.xlu0 %v1087, 102
  %v1093 = vpop.permute.xlu0 %1092
  %v1094 = vrot.slane %v1091, 4
  %v1095 = vrot.slane %v1093, 4
  %v1096 = vsel %vm1075, %v1091, %v1094
  %v1097 = vsel %vm1075, %v1093, %v1095
  %1100 = vst [vmem:[#allocation2 + $0x1a4] sm:$0xf] %v1096
  %1101 = vst [vmem:[#allocation2 + $0x1ac] sm:$0xf] %v1097
  %v1102 = vld [vmem:[%s0] sm:$0xff]
  %v1103 = vld [vmem:[%s0 + $0x8] sm:$0xff]
  %v1104 = vld [vmem:[%s0 + $0x10] sm:$0xff]
  %v1105 = vld [vmem:[%s0 + $0x18] sm:$0xff]
  %v1106 = vpack.c.bf16 %v1103, %v1102
  %v1107 = vpack.c.bf16 %v1105, %v1104
  %1110 = vrot.lane.b32.xlu0 %v1106, 101
  %v1111 = vpop.permute.xlu0 %1110
  %1112 = vrot.lane.b32.xlu0 %v1107, 101
  %v1113 = vpop.permute.xlu0 %1112
  %v1114 = vrot.slane %v1111, 4
  %v1115 = vrot.slane %v1113, 4
  %vm1116 = vcmask 826368
  %v1117 = vsel %vm1116, %v1111, %v1114
  %v1118 = vsel %vm1116, %v1113, %v1115
  %1121 = vst [vmem:[#allocation2 + $0x1b0] sm:$0xf] %v1117
  %1122 = vst [vmem:[#allocation2 + $0x1b8] sm:$0xf] %v1118
  %v1123 = vld [vmem:[%s29] sm:$0xff]
  %v1124 = vld [vmem:[%s29 + $0x8] sm:$0xff]
  %v1125 = vld [vmem:[%s29 + $0x10] sm:$0xff]
  %v1126 = vld [vmem:[%s29 + $0x18] sm:$0xff]
  %v1127 = vpack.c.bf16 %v1124, %v1123
  %v1128 = vpack.c.bf16 %v1126, %v1125
  %1131 = vrot.lane.b32.xlu0 %v1127, 101
  %v1132 = vpop.permute.xlu0 %1131
  %1133 = vrot.lane.b32.xlu0 %v1128, 101
  %v1134 = vpop.permute.xlu0 %1133
  %v1135 = vrot.slane %v1132, 4
  %v1136 = vrot.slane %v1134, 4
  %v1137 = vsel %vm1116, %v1132, %v1135
  %v1138 = vsel %vm1116, %v1134, %v1136
  %1141 = vst [vmem:[#allocation2 + $0x1b4] sm:$0xf] %v1137
  %1142 = vst [vmem:[#allocation2 + $0x1bc] sm:$0xf] %v1138
  %v1143 = vld [vmem:[%s0] sm:$0xff]
  %v1144 = vld [vmem:[%s0 + $0x8] sm:$0xff]
  %v1145 = vld [vmem:[%s0 + $0x10] sm:$0xff]
  %v1146 = vld [vmem:[%s0 + $0x18] sm:$0xff]
  %v1147 = vpack.c.bf16 %v1144, %v1143
  %v1148 = vpack.c.bf16 %v1146, %v1145
  %1151 = vrot.lane.b32.xlu0 %v1147, 100
  %v1152 = vpop.permute.xlu0 %1151
  %1153 = vrot.lane.b32.xlu0 %v1148, 100
  %v1154 = vpop.permute.xlu0 %1153
  %v1155 = vrot.slane %v1152, 4
  %v1156 = vrot.slane %v1154, 4
  %vm1157 = vcmask 818176
  %v1158 = vsel %vm1157, %v1152, %v1155
  %v1159 = vsel %vm1157, %v1154, %v1156
  %1162 = vst [vmem:[#allocation2 + $0x1c0] sm:$0xf] %v1158
  %1163 = vst [vmem:[#allocation2 + $0x1c8] sm:$0xf] %v1159
  %v1164 = vld [vmem:[%s29] sm:$0xff]
  %v1165 = vld [vmem:[%s29 + $0x8] sm:$0xff]
  %v1166 = vld [vmem:[%s29 + $0x10] sm:$0xff]
  %v1167 = vld [vmem:[%s29 + $0x18] sm:$0xff]
  %v1168 = vpack.c.bf16 %v1165, %v1164
  %v1169 = vpack.c.bf16 %v1167, %v1166
  %1172 = vrot.lane.b32.xlu0 %v1168, 100
  %v1173 = vpop.permute.xlu0 %1172
  %1174 = vrot.lane.b32.xlu0 %v1169, 100
  %v1175 = vpop.permute.xlu0 %1174
  %v1176 = vrot.slane %v1173, 4
  %v1177 = vrot.slane %v1175, 4
  %v1178 = vsel %vm1157, %v1173, %v1176
  %v1179 = vsel %vm1157, %v1175, %v1177
  %1182 = vst [vmem:[#allocation2 + $0x1c4] sm:$0xf] %v1178
  %1183 = vst [vmem:[#allocation2 + $0x1cc] sm:$0xf] %v1179
  %v1184 = vld [vmem:[%s0] sm:$0xff]
  %v1185 = vld [vmem:[%s0 + $0x8] sm:$0xff]
  %v1186 = vld [vmem:[%s0 + $0x10] sm:$0xff]
  %v1187 = vld [vmem:[%s0 + $0x18] sm:$0xff]
  %v1188 = vpack.c.bf16 %v1185, %v1184
  %v1189 = vpack.c.bf16 %v1187, %v1186
  %1192 = vrot.lane.b32.xlu0 %v1188, 99
  %v1193 = vpop.permute.xlu0 %1192
  %1194 = vrot.lane.b32.xlu0 %v1189, 99
  %v1195 = vpop.permute.xlu0 %1194
  %v1196 = vrot.slane %v1193, 4
  %v1197 = vrot.slane %v1195, 4
  %vm1198 = vcmask 809984
  %v1199 = vsel %vm1198, %v1193, %v1196
  %v1200 = vsel %vm1198, %v1195, %v1197
  %1203 = vst [vmem:[#allocation2 + $0x1d0] sm:$0xf] %v1199
  %1204 = vst [vmem:[#allocation2 + $0x1d8] sm:$0xf] %v1200
  %v1205 = vld [vmem:[%s29] sm:$0xff]
  %v1206 = vld [vmem:[%s29 + $0x8] sm:$0xff]
  %v1207 = vld [vmem:[%s29 + $0x10] sm:$0xff]
  %v1208 = vld [vmem:[%s29 + $0x18] sm:$0xff]
  %v1209 = vpack.c.bf16 %v1206, %v1205
  %v1210 = vpack.c.bf16 %v1208, %v1207
  %1213 = vrot.lane.b32.xlu0 %v1209, 99
  %v1214 = vpop.permute.xlu0 %1213
  %1215 = vrot.lane.b32.xlu0 %v1210, 99
  %v1216 = vpop.permute.xlu0 %1215
  %v1217 = vrot.slane %v1214, 4
  %v1218 = vrot.slane %v1216, 4
  %v1219 = vsel %vm1198, %v1214, %v1217
  %v1220 = vsel %vm1198, %v1216, %v1218
  %1223 = vst [vmem:[#allocation2 + $0x1d4] sm:$0xf] %v1219
  %1224 = vst [vmem:[#allocation2 + $0x1dc] sm:$0xf] %v1220
  %v1225 = vld [vmem:[%s0] sm:$0xff]
  %v1226 = vld [vmem:[%s0 + $0x8] sm:$0xff]
  %v1227 = vld [vmem:[%s0 + $0x10] sm:$0xff]
  %v1228 = vld [vmem:[%s0 + $0x18] sm:$0xff]
  %v1229 = vpack.c.bf16 %v1226, %v1225
  %v1230 = vpack.c.bf16 %v1228, %v1227
  %1233 = vrot.lane.b32.xlu0 %v1229, 98
  %v1234 = vpop.permute.xlu0 %1233
  %1235 = vrot.lane.b32.xlu0 %v1230, 98
  %v1236 = vpop.permute.xlu0 %1235
  %v1237 = vrot.slane %v1234, 4
  %v1238 = vrot.slane %v1236, 4
  %vm1239 = vcmask 801792
  %v1240 = vsel %vm1239, %v1234, %v1237
  %v1241 = vsel %vm1239, %v1236, %v1238
  %1244 = vst [vmem:[#allocation2 + $0x1e0] sm:$0xf] %v1240
  %1245 = vst [vmem:[#allocation2 + $0x1e8] sm:$0xf] %v1241
  %v1246 = vld [vmem:[%s29] sm:$0xff]
  %v1247 = vld [vmem:[%s29 + $0x8] sm:$0xff]
  %v1248 = vld [vmem:[%s29 + $0x10] sm:$0xff]
  %v1249 = vld [vmem:[%s29 + $0x18] sm:$0xff]
  %v1250 = vpack.c.bf16 %v1247, %v1246
  %v1251 = vpack.c.bf16 %v1249, %v1248
  %1254 = vrot.lane.b32.xlu0 %v1250, 98
  %v1255 = vpop.permute.xlu0 %1254
  %1256 = vrot.lane.b32.xlu0 %v1251, 98
  %v1257 = vpop.permute.xlu0 %1256
  %v1258 = vrot.slane %v1255, 4
  %v1259 = vrot.slane %v1257, 4
  %v1260 = vsel %vm1239, %v1255, %v1258
  %v1261 = vsel %vm1239, %v1257, %v1259
  %1264 = vst [vmem:[#allocation2 + $0x1e4] sm:$0xf] %v1260
  %1265 = vst [vmem:[#allocation2 + $0x1ec] sm:$0xf] %v1261
  %v1266 = vld [vmem:[%s0] sm:$0xff]
  %v1267 = vld [vmem:[%s0 + $0x8] sm:$0xff]
  %v1268 = vld [vmem:[%s0 + $0x10] sm:$0xff]
  %v1269 = vld [vmem:[%s0 + $0x18] sm:$0xff]
  %v1270 = vpack.c.bf16 %v1267, %v1266
  %v1271 = vpack.c.bf16 %v1269, %v1268
  %1274 = vrot.lane.b32.xlu0 %v1270, 97
  %v1275 = vpop.permute.xlu0 %1274
  %1276 = vrot.lane.b32.xlu0 %v1271, 97
  %v1277 = vpop.permute.xlu0 %1276
  %v1278 = vrot.slane %v1275, 4
  %v1279 = vrot.slane %v1277, 4
  %vm1280 = vcmask 793600
  %v1281 = vsel %vm1280, %v1275, %v1278
  %v1282 = vsel %vm1280, %v1277, %v1279
  %1285 = vst [vmem:[#allocation2 + $0x1f0] sm:$0xf] %v1281
  %1286 = vst [vmem:[#allocation2 + $0x1f8] sm:$0xf] %v1282
  %v1287 = vld [vmem:[%s29] sm:$0xff]
  %v1288 = vld [vmem:[%s29 + $0x8] sm:$0xff]
  %v1289 = vld [vmem:[%s29 + $0x10] sm:$0xff]
  %v1290 = vld [vmem:[%s29 + $0x18] sm:$0xff]
  %v1291 = vpack.c.bf16 %v1288, %v1287
  %v1292 = vpack.c.bf16 %v1290, %v1289
  %1295 = vrot.lane.b32.xlu0 %v1291, 97
  %v1296 = vpop.permute.xlu0 %1295
  %1297 = vrot.lane.b32.xlu0 %v1292, 97
  %v1298 = vpop.permute.xlu0 %1297
  %v1299 = vrot.slane %v1296, 4
  %v1300 = vrot.slane %v1298, 4
  %v1301 = vsel %vm1280, %v1296, %v1299
  %v1302 = vsel %vm1280, %v1298, %v1300
  %1305 = vst [vmem:[#allocation2 + $0x1f4] sm:$0xf] %v1301
  %1306 = vst [vmem:[#allocation2 + $0x1fc] sm:$0xf] %v1302
  %v1307 = vld [vmem:[%s0] sm:$0xff]
  %v1308 = vld [vmem:[%s0 + $0x8] sm:$0xff]
  %v1309 = vld [vmem:[%s0 + $0x10] sm:$0xff]
  %v1310 = vld [vmem:[%s0 + $0x18] sm:$0xff]
  %v1311 = vpack.c.bf16 %v1308, %v1307
  %v1312 = vpack.c.bf16 %v1310, %v1309
  %1315 = vrot.lane.b32.xlu0 %v1311, 96
  %v1316 = vpop.permute.xlu0 %1315
  %1317 = vrot.lane.b32.xlu0 %v1312, 96
  %v1318 = vpop.permute.xlu0 %1317
  %v1319 = vrot.slane %v1316, 4
  %v1320 = vrot.slane %v1318, 4
  %vm1321 = vcmask 785408
  %v1322 = vsel %vm1321, %v1316, %v1319
  %v1323 = vsel %vm1321, %v1318, %v1320
  %1326 = vst [vmem:[#allocation2 + $0x200] sm:$0xf] %v1322
  %1327 = vst [vmem:[#allocation2 + $0x208] sm:$0xf] %v1323
  %v1328 = vld [vmem:[%s29] sm:$0xff]
  %v1329 = vld [vmem:[%s29 + $0x8] sm:$0xff]
  %v1330 = vld [vmem:[%s29 + $0x10] sm:$0xff]
  %v1331 = vld [vmem:[%s29 + $0x18] sm:$0xff]
  %v1332 = vpack.c.bf16 %v1329, %v1328
  %v1333 = vpack.c.bf16 %v1331, %v1330
  %1336 = vrot.lane.b32.xlu0 %v1332, 96
  %v1337 = vpop.permute.xlu0 %1336
  %1338 = vrot.lane.b32.xlu0 %v1333, 96
  %v1339 = vpop.permute.xlu0 %1338
  %v1340 = vrot.slane %v1337, 4
  %v1341 = vrot.slane %v1339, 4
  %v1342 = vsel %vm1321, %v1337, %v1340
  %v1343 = vsel %vm1321, %v1339, %v1341
  %1346 = vst [vmem:[#allocation2 + $0x204] sm:$0xf] %v1342
  %1347 = vst [vmem:[#allocation2 + $0x20c] sm:$0xf] %v1343
  %v1348 = vld [vmem:[%s0] sm:$0xff]
  %v1349 = vld [vmem:[%s0 + $0x8] sm:$0xff]
  %v1350 = vld [vmem:[%s0 + $0x10] sm:$0xff]
  %v1351 = vld [vmem:[%s0 + $0x18] sm:$0xff]
  %v1352 = vpack.c.bf16 %v1349, %v1348
  %v1353 = vpack.c.bf16 %v1351, %v1350
  %1356 = vrot.lane.b32.xlu0 %v1352, 95
  %v1357 = vpop.permute.xlu0 %1356
  %1358 = vrot.lane.b32.xlu0 %v1353, 95
  %v1359 = vpop.permute.xlu0 %1358
  %v1360 = vrot.slane %v1357, 4
  %v1361 = vrot.slane %v1359, 4
  %vm1362 = vcmask 777216
  %v1363 = vsel %vm1362, %v1357, %v1360
  %v1364 = vsel %vm1362, %v1359, %v1361
  %1367 = vst [vmem:[#allocation2 + $0x210] sm:$0xf] %v1363
  %1368 = vst [vmem:[#allocation2 + $0x218] sm:$0xf] %v1364
  %v1369 = vld [vmem:[%s29] sm:$0xff]
  %v1370 = vld [vmem:[%s29 + $0x8] sm:$0xff]
  %v1371 = vld [vmem:[%s29 + $0x10] sm:$0xff]
  %v1372 = vld [vmem:[%s29 + $0x18] sm:$0xff]
  %v1373 = vpack.c.bf16 %v1370, %v1369
  %v1374 = vpack.c.bf16 %v1372, %v1371
  %1377 = vrot.lane.b32.xlu0 %v1373, 95
  %v1378 = vpop.permute.xlu0 %1377
  %1379 = vrot.lane.b32.xlu0 %v1374, 95
  %v1380 = vpop.permute.xlu0 %1379
  %v1381 = vrot.slane %v1378, 4
  %v1382 = vrot.slane %v1380, 4
  %v1383 = vsel %vm1362, %v1378, %v1381
  %v1384 = vsel %vm1362, %v1380, %v1382
  %1387 = vst [vmem:[#allocation2 + $0x214] sm:$0xf] %v1383
  %1388 = vst [vmem:[#allocation2 + $0x21c] sm:$0xf] %v1384
  %v1389 = vld [vmem:[%s0] sm:$0xff]
  %v1390 = vld [vmem:[%s0 + $0x8] sm:$0xff]
  %v1391 = vld [vmem:[%s0 + $0x10] sm:$0xff]
  %v1392 = vld [vmem:[%s0 + $0x18] sm:$0xff]
  %v1393 = vpack.c.bf16 %v1390, %v1389
  %v1394 = vpack.c.bf16 %v1392, %v1391
  %1397 = vrot.lane.b32.xlu0 %v1393, 94
  %v1398 = vpop.permute.xlu0 %1397
  %1399 = vrot.lane.b32.xlu0 %v1394, 94
  %v1400 = vpop.permute.xlu0 %1399
  %v1401 = vrot.slane %v1398, 4
  %v1402 = vrot.slane %v1400, 4
  %vm1403 = vcmask 769024
  %v1404 = vsel %vm1403, %v1398, %v1401
  %v1405 = vsel %vm1403, %v1400, %v1402
  %1408 = vst [vmem:[#allocation2 + $0x220] sm:$0xf] %v1404
  %1409 = vst [vmem:[#allocation2 + $0x228] sm:$0xf] %v1405
  %v1410 = vld [vmem:[%s29] sm:$0xff]
  %v1411 = vld [vmem:[%s29 + $0x8] sm:$0xff]
  %v1412 = vld [vmem:[%s29 + $0x10] sm:$0xff]
  %v1413 = vld [vmem:[%s29 + $0x18] sm:$0xff]
  %v1414 = vpack.c.bf16 %v1411, %v1410
  %v1415 = vpack.c.bf16 %v1413, %v1412
  %1418 = vrot.lane.b32.xlu0 %v1414, 94
  %v1419 = vpop.permute.xlu0 %1418
  %1420 = vrot.lane.b32.xlu0 %v1415, 94
  %v1421 = vpop.permute.xlu0 %1420
  %v1422 = vrot.slane %v1419, 4
  %v1423 = vrot.slane %v1421, 4
  %v1424 = vsel %vm1403, %v1419, %v1422
  %v1425 = vsel %vm1403, %v1421, %v1423
  %1428 = vst [vmem:[#allocation2 + $0x224] sm:$0xf] %v1424
  %1429 = vst [vmem:[#allocation2 + $0x22c] sm:$0xf] %v1425
  %v1430 = vld [vmem:[%s0] sm:$0xff]
  %v1431 = vld [vmem:[%s0 + $0x8] sm:$0xff]
  %v1432 = vld [vmem:[%s0 + $0x10] sm:$0xff]
  %v1433 = vld [vmem:[%s0 + $0x18] sm:$0xff]
  %v1434 = vpack.c.bf16 %v1431, %v1430
  %v1435 = vpack.c.bf16 %v1433, %v1432
  %1438 = vrot.lane.b32.xlu0 %v1434, 93
  %v1439 = vpop.permute.xlu0 %1438
  %1440 = vrot.lane.b32.xlu0 %v1435, 93
  %v1441 = vpop.permute.xlu0 %1440
  %v1442 = vrot.slane %v1439, 4
  %v1443 = vrot.slane %v1441, 4
  %vm1444 = vcmask 760832
  %v1445 = vsel %vm1444, %v1439, %v1442
  %v1446 = vsel %vm1444, %v1441, %v1443
  %1449 = vst [vmem:[#allocation2 + $0x230] sm:$0xf] %v1445
  %1450 = vst [vmem:[#allocation2 + $0x238] sm:$0xf] %v1446
  %v1451 = vld [vmem:[%s29] sm:$0xff]
  %v1452 = vld [vmem:[%s29 + $0x8] sm:$0xff]
  %v1453 = vld [vmem:[%s29 + $0x10] sm:$0xff]
  %v1454 = vld [vmem:[%s29 + $0x18] sm:$0xff]
  %v1455 = vpack.c.bf16 %v1452, %v1451
  %v1456 = vpack.c.bf16 %v1454, %v1453
  %1459 = vrot.lane.b32.xlu0 %v1455, 93
  %v1460 = vpop.permute.xlu0 %1459
  %1461 = vrot.lane.b32.xlu0 %v1456, 93
  %v1462 = vpop.permute.xlu0 %1461
  %v1463 = vrot.slane %v1460, 4
  %v1464 = vrot.slane %v1462, 4
  %v1465 = vsel %vm1444, %v1460, %v1463
  %v1466 = vsel %vm1444, %v1462, %v1464
  %1469 = vst [vmem:[#allocation2 + $0x234] sm:$0xf] %v1465
  %1470 = vst [vmem:[#allocation2 + $0x23c] sm:$0xf] %v1466
  %v1471 = vld [vmem:[%s0] sm:$0xff]
  %v1472 = vld [vmem:[%s0 + $0x8] sm:$0xff]
  %v1473 = vld [vmem:[%s0 + $0x10] sm:$0xff]
  %v1474 = vld [vmem:[%s0 + $0x18] sm:$0xff]
  %v1475 = vpack.c.bf16 %v1472, %v1471
  %v1476 = vpack.c.bf16 %v1474, %v1473
  %1479 = vrot.lane.b32.xlu0 %v1475, 92
  %v1480 = vpop.permute.xlu0 %1479
  %1481 = vrot.lane.b32.xlu0 %v1476, 92
  %v1482 = vpop.permute.xlu0 %1481
  %v1483 = vrot.slane %v1480, 4
  %v1484 = vrot.slane %v1482, 4
  %vm1485 = vcmask 752640
  %v1486 = vsel %vm1485, %v1480, %v1483
  %v1487 = vsel %vm1485, %v1482, %v1484
  %1490 = vst [vmem:[#allocation2 + $0x240] sm:$0xf] %v1486
  %1491 = vst [vmem:[#allocation2 + $0x248] sm:$0xf] %v1487
  %v1492 = vld [vmem:[%s29] sm:$0xff]
  %v1493 = vld [vmem:[%s29 + $0x8] sm:$0xff]
  %v1494 = vld [vmem:[%s29 + $0x10] sm:$0xff]
  %v1495 = vld [vmem:[%s29 + $0x18] sm:$0xff]
  %v1496 = vpack.c.bf16 %v1493, %v1492
  %v1497 = vpack.c.bf16 %v1495, %v1494
  %1500 = vrot.lane.b32.xlu0 %v1496, 92
  %v1501 = vpop.permute.xlu0 %1500
  %1502 = vrot.lane.b32.xlu0 %v1497, 92
  %v1503 = vpop.permute.xlu0 %1502
  %v1504 = vrot.slane %v1501, 4
  %v1505 = vrot.slane %v1503, 4
  %v1506 = vsel %vm1485, %v1501, %v1504
  %v1507 = vsel %vm1485, %v1503, %v1505
  %1510 = vst [vmem:[#allocation2 + $0x244] sm:$0xf] %v1506
  %1511 = vst [vmem:[#allocation2 + $0x24c] sm:$0xf] %v1507
  %v1512 = vld [vmem:[%s0] sm:$0xff]
  %v1513 = vld [vmem:[%s0 + $0x8] sm:$0xff]
  %v1514 = vld [vmem:[%s0 + $0x10] sm:$0xff]
  %v1515 = vld [vmem:[%s0 + $0x18] sm:$0xff]
  %v1516 = vpack.c.bf16 %v1513, %v1512
  %v1517 = vpack.c.bf16 %v1515, %v1514
  %1520 = vrot.lane.b32.xlu0 %v1516, 91
  %v1521 = vpop.permute.xlu0 %1520
  %1522 = vrot.lane.b32.xlu0 %v1517, 91
  %v1523 = vpop.permute.xlu0 %1522
  %v1524 = vrot.slane %v1521, 4
  %v1525 = vrot.slane %v1523, 4
  %vm1526 = vcmask 744448
  %v1527 = vsel %vm1526, %v1521, %v1524
  %v1528 = vsel %vm1526, %v1523, %v1525
  %1531 = vst [vmem:[#allocation2 + $0x250] sm:$0xf] %v1527
  %1532 = vst [vmem:[#allocation2 + $0x258] sm:$0xf] %v1528
  %v1533 = vld [vmem:[%s29] sm:$0xff]
  %v1534 = vld [vmem:[%s29 + $0x8] sm:$0xff]
  %v1535 = vld [vmem:[%s29 + $0x10] sm:$0xff]
  %v1536 = vld [vmem:[%s29 + $0x18] sm:$0xff]
  %v1537 = vpack.c.bf16 %v1534, %v1533
  %v1538 = vpack.c.bf16 %v1536, %v1535
  %1541 = vrot.lane.b32.xlu0 %v1537, 91
  %v1542 = vpop.permute.xlu0 %1541
  %1543 = vrot.lane.b32.xlu0 %v1538, 91
  %v1544 = vpop.permute.xlu0 %1543
  %v1545 = vrot.slane %v1542, 4
  %v1546 = vrot.slane %v1544, 4
  %v1547 = vsel %vm1526, %v1542, %v1545
  %v1548 = vsel %vm1526, %v1544, %v1546
  %1551 = vst [vmem:[#allocation2 + $0x254] sm:$0xf] %v1547
  %1552 = vst [vmem:[#allocation2 + $0x25c] sm:$0xf] %v1548
  %v1553 = vld [vmem:[%s0] sm:$0xff]
  %v1554 = vld [vmem:[%s0 + $0x8] sm:$0xff]
  %v1555 = vld [vmem:[%s0 + $0x10] sm:$0xff]
  %v1556 = vld [vmem:[%s0 + $0x18] sm:$0xff]
  %v1557 = vpack.c.bf16 %v1554, %v1553
  %v1558 = vpack.c.bf16 %v1556, %v1555
  %1561 = vrot.lane.b32.xlu0 %v1557, 90
  %v1562 = vpop.permute.xlu0 %1561
  %1563 = vrot.lane.b32.xlu0 %v1558, 90
  %v1564 = vpop.permute.xlu0 %1563
  %v1565 = vrot.slane %v1562, 4
  %v1566 = vrot.slane %v1564, 4
  %vm1567 = vcmask 736256
  %v1568 = vsel %vm1567, %v1562, %v1565
  %v1569 = vsel %vm1567, %v1564, %v1566
  %1572 = vst [vmem:[#allocation2 + $0x260] sm:$0xf] %v1568
  %1573 = vst [vmem:[#allocation2 + $0x268] sm:$0xf] %v1569
  %v1574 = vld [vmem:[%s29] sm:$0xff]
  %v1575 = vld [vmem:[%s29 + $0x8] sm:$0xff]
  %v1576 = vld [vmem:[%s29 + $0x10] sm:$0xff]
  %v1577 = vld [vmem:[%s29 + $0x18] sm:$0xff]
  %v1578 = vpack.c.bf16 %v1575, %v1574
  %v1579 = vpack.c.bf16 %v1577, %v1576
  %1582 = vrot.lane.b32.xlu0 %v1578, 90
  %v1583 = vpop.permute.xlu0 %1582
  %1584 = vrot.lane.b32.xlu0 %v1579, 90
  %v1585 = vpop.permute.xlu0 %1584
  %v1586 = vrot.slane %v1583, 4
  %v1587 = vrot.slane %v1585, 4
  %v1588 = vsel %vm1567, %v1583, %v1586
  %v1589 = vsel %vm1567, %v1585, %v1587
  %1592 = vst [vmem:[#allocation2 + $0x264] sm:$0xf] %v1588
  %1593 = vst [vmem:[#allocation2 + $0x26c] sm:$0xf] %v1589
  %v1594 = vld [vmem:[%s0] sm:$0xff]
  %v1595 = vld [vmem:[%s0 + $0x8] sm:$0xff]
  %v1596 = vld [vmem:[%s0 + $0x10] sm:$0xff]
  %v1597 = vld [vmem:[%s0 + $0x18] sm:$0xff]
  %v1598 = vpack.c.bf16 %v1595, %v1594
  %v1599 = vpack.c.bf16 %v1597, %v1596
  %1602 = vrot.lane.b32.xlu0 %v1598, 89
  %v1603 = vpop.permute.xlu0 %1602
  %1604 = vrot.lane.b32.xlu0 %v1599, 89
  %v1605 = vpop.permute.xlu0 %1604
  %v1606 = vrot.slane %v1603, 4
  %v1607 = vrot.slane %v1605, 4
  %vm1608 = vcmask 728064
  %v1609 = vsel %vm1608, %v1603, %v1606
  %v1610 = vsel %vm1608, %v1605, %v1607
  %1613 = vst [vmem:[#allocation2 + $0x270] sm:$0xf] %v1609
  %1614 = vst [vmem:[#allocation2 + $0x278] sm:$0xf] %v1610
  %v1615 = vld [vmem:[%s29] sm:$0xff]
  %v1616 = vld [vmem:[%s29 + $0x8] sm:$0xff]
  %v1617 = vld [vmem:[%s29 + $0x10] sm:$0xff]
  %v1618 = vld [vmem:[%s29 + $0x18] sm:$0xff]
  %v1619 = vpack.c.bf16 %v1616, %v1615
  %v1620 = vpack.c.bf16 %v1618, %v1617
  %1623 = vrot.lane.b32.xlu0 %v1619, 89
  %v1624 = vpop.permute.xlu0 %1623
  %1625 = vrot.lane.b32.xlu0 %v1620, 89
  %v1626 = vpop.permute.xlu0 %1625
  %v1627 = vrot.slane %v1624, 4
  %v1628 = vrot.slane %v1626, 4
  %v1629 = vsel %vm1608, %v1624, %v1627
  %v1630 = vsel %vm1608, %v1626, %v1628
  %1633 = vst [vmem:[#allocation2 + $0x274] sm:$0xf] %v1629
  %1634 = vst [vmem:[#allocation2 + $0x27c] sm:$0xf] %v1630
  %v1635 = vld [vmem:[%s0] sm:$0xff]
  %v1636 = vld [vmem:[%s0 + $0x8] sm:$0xff]
  %v1637 = vld [vmem:[%s0 + $0x10] sm:$0xff]
  %v1638 = vld [vmem:[%s0 + $0x18] sm:$0xff]
  %v1639 = vpack.c.bf16 %v1636, %v1635
  %v1640 = vpack.c.bf16 %v1638, %v1637
  %1643 = vrot.lane.b32.xlu0 %v1639, 88
  %v1644 = vpop.permute.xlu0 %1643
  %1645 = vrot.lane.b32.xlu0 %v1640, 88
  %v1646 = vpop.permute.xlu0 %1645
  %v1647 = vrot.slane %v1644, 4
  %v1648 = vrot.slane %v1646, 4
  %vm1649 = vcmask 719872
  %v1650 = vsel %vm1649, %v1644, %v1647
  %v1651 = vsel %vm1649, %v1646, %v1648
  %1654 = vst [vmem:[#allocation2 + $0x280] sm:$0xf] %v1650
  %1655 = vst [vmem:[#allocation2 + $0x288] sm:$0xf] %v1651
  %v1656 = vld [vmem:[%s29] sm:$0xff]
  %v1657 = vld [vmem:[%s29 + $0x8] sm:$0xff]
  %v1658 = vld [vmem:[%s29 + $0x10] sm:$0xff]
  %v1659 = vld [vmem:[%s29 + $0x18] sm:$0xff]
  %v1660 = vpack.c.bf16 %v1657, %v1656
  %v1661 = vpack.c.bf16 %v1659, %v1658
  %1664 = vrot.lane.b32.xlu0 %v1660, 88
  %v1665 = vpop.permute.xlu0 %1664
  %1666 = vrot.lane.b32.xlu0 %v1661, 88
  %v1667 = vpop.permute.xlu0 %1666
  %v1668 = vrot.slane %v1665, 4
  %v1669 = vrot.slane %v1667, 4
  %v1670 = vsel %vm1649, %v1665, %v1668
  %v1671 = vsel %vm1649, %v1667, %v1669
  %1674 = vst [vmem:[#allocation2 + $0x284] sm:$0xf] %v1670
  %1675 = vst [vmem:[#allocation2 + $0x28c] sm:$0xf] %v1671
  %v1676 = vld [vmem:[%s0] sm:$0xff]
  %v1677 = vld [vmem:[%s0 + $0x8] sm:$0xff]
  %v1678 = vld [vmem:[%s0 + $0x10] sm:$0xff]
  %v1679 = vld [vmem:[%s0 + $0x18] sm:$0xff]
  %v1680 = vpack.c.bf16 %v1677, %v1676
  %v1681 = vpack.c.bf16 %v1679, %v1678
  %1684 = vrot.lane.b32.xlu0 %v1680, 87
  %v1685 = vpop.permute.xlu0 %1684
  %1686 = vrot.lane.b32.xlu0 %v1681, 87
  %v1687 = vpop.permute.xlu0 %1686
  %v1688 = vrot.slane %v1685, 4
  %v1689 = vrot.slane %v1687, 4
  %vm1690 = vcmask 711680
  %v1691 = vsel %vm1690, %v1685, %v1688
  %v1692 = vsel %vm1690, %v1687, %v1689
  %1695 = vst [vmem:[#allocation2 + $0x290] sm:$0xf] %v1691
  %1696 = vst [vmem:[#allocation2 + $0x298] sm:$0xf] %v1692
  %v1697 = vld [vmem:[%s29] sm:$0xff]
  %v1698 = vld [vmem:[%s29 + $0x8] sm:$0xff]
  %v1699 = vld [vmem:[%s29 + $0x10] sm:$0xff]
  %v1700 = vld [vmem:[%s29 + $0x18] sm:$0xff]
  %v1701 = vpack.c.bf16 %v1698, %v1697
  %v1702 = vpack.c.bf16 %v1700, %v1699
  %1705 = vrot.lane.b32.xlu0 %v1701, 87
  %v1706 = vpop.permute.xlu0 %1705
  %1707 = vrot.lane.b32.xlu0 %v1702, 87
  %v1708 = vpop.permute.xlu0 %1707
  %v1709 = vrot.slane %v1706, 4
  %v1710 = vrot.slane %v1708, 4
  %v1711 = vsel %vm1690, %v1706, %v1709
  %v1712 = vsel %vm1690, %v1708, %v1710
  %1715 = vst [vmem:[#allocation2 + $0x294] sm:$0xf] %v1711
  %1716 = vst [vmem:[#allocation2 + $0x29c] sm:$0xf] %v1712
  %v1717 = vld [vmem:[%s0] sm:$0xff]
  %v1718 = vld [vmem:[%s0 + $0x8] sm:$0xff]
  %v1719 = vld [vmem:[%s0 + $0x10] sm:$0xff]
  %v1720 = vld [vmem:[%s0 + $0x18] sm:$0xff]
  %v1721 = vpack.c.bf16 %v1718, %v1717
  %v1722 = vpack.c.bf16 %v1720, %v1719
  %1725 = vrot.lane.b32.xlu0 %v1721, 86
  %v1726 = vpop.permute.xlu0 %1725
  %1727 = vrot.lane.b32.xlu0 %v1722, 86
  %v1728 = vpop.permute.xlu0 %1727
  %v1729 = vrot.slane %v1726, 4
  %v1730 = vrot.slane %v1728, 4
  %vm1731 = vcmask 703488
  %v1732 = vsel %vm1731, %v1726, %v1729
  %v1733 = vsel %vm1731, %v1728, %v1730
  %1736 = vst [vmem:[#allocation2 + $0x2a0] sm:$0xf] %v1732
  %1737 = vst [vmem:[#allocation2 + $0x2a8] sm:$0xf] %v1733
  %v1738 = vld [vmem:[%s29] sm:$0xff]
  %v1739 = vld [vmem:[%s29 + $0x8] sm:$0xff]
  %v1740 = vld [vmem:[%s29 + $0x10] sm:$0xff]
  %v1741 = vld [vmem:[%s29 + $0x18] sm:$0xff]
  %v1742 = vpack.c.bf16 %v1739, %v1738
  %v1743 = vpack.c.bf16 %v1741, %v1740
  %1746 = vrot.lane.b32.xlu0 %v1742, 86
  %v1747 = vpop.permute.xlu0 %1746
  %1748 = vrot.lane.b32.xlu0 %v1743, 86
  %v1749 = vpop.permute.xlu0 %1748
  %v1750 = vrot.slane %v1747, 4
  %v1751 = vrot.slane %v1749, 4
  %v1752 = vsel %vm1731, %v1747, %v1750
  %v1753 = vsel %vm1731, %v1749, %v1751
  %1756 = vst [vmem:[#allocation2 + $0x2a4] sm:$0xf] %v1752
  %1757 = vst [vmem:[#allocation2 + $0x2ac] sm:$0xf] %v1753
  %v1758 = vld [vmem:[%s0] sm:$0xff]
  %v1759 = vld [vmem:[%s0 + $0x8] sm:$0xff]
  %v1760 = vld [vmem:[%s0 + $0x10] sm:$0xff]
  %v1761 = vld [vmem:[%s0 + $0x18] sm:$0xff]
  %v1762 = vpack.c.bf16 %v1759, %v1758
  %v1763 = vpack.c.bf16 %v1761, %v1760
  %1766 = vrot.lane.b32.xlu0 %v1762, 85
  %v1767 = vpop.permute.xlu0 %1766
  %1768 = vrot.lane.b32.xlu0 %v1763, 85
  %v1769 = vpop.permute.xlu0 %1768
  %v1770 = vrot.slane %v1767, 4
  %v1771 = vrot.slane %v1769, 4
  %vm1772 = vcmask 695296
  %v1773 = vsel %vm1772, %v1767, %v1770
  %v1774 = vsel %vm1772, %v1769, %v1771
  %1777 = vst [vmem:[#allocation2 + $0x2b0] sm:$0xf] %v1773
  %1778 = vst [vmem:[#allocation2 + $0x2b8] sm:$0xf] %v1774
  %v1779 = vld [vmem:[%s29] sm:$0xff]
  %v1780 = vld [vmem:[%s29 + $0x8] sm:$0xff]
  %v1781 = vld [vmem:[%s29 + $0x10] sm:$0xff]
  %v1782 = vld [vmem:[%s29 + $0x18] sm:$0xff]
  %v1783 = vpack.c.bf16 %v1780, %v1779
  %v1784 = vpack.c.bf16 %v1782, %v1781
  %1787 = vrot.lane.b32.xlu0 %v1783, 85
  %v1788 = vpop.permute.xlu0 %1787
  %1789 = vrot.lane.b32.xlu0 %v1784, 85
  %v1790 = vpop.permute.xlu0 %1789
  %v1791 = vrot.slane %v1788, 4
  %v1792 = vrot.slane %v1790, 4
  %v1793 = vsel %vm1772, %v1788, %v1791
  %v1794 = vsel %vm1772, %v1790, %v1792
  %1797 = vst [vmem:[#allocation2 + $0x2b4] sm:$0xf] %v1793
  %1798 = vst [vmem:[#allocation2 + $0x2bc] sm:$0xf] %v1794
  %v1799 = vld [vmem:[%s0] sm:$0xff]
  %v1800 = vld [vmem:[%s0 + $0x8] sm:$0xff]
  %v1801 = vld [vmem:[%s0 + $0x10] sm:$0xff]
  %v1802 = vld [vmem:[%s0 + $0x18] sm:$0xff]
  %v1803 = vpack.c.bf16 %v1800, %v1799
  %v1804 = vpack.c.bf16 %v1802, %v1801
  %1807 = vrot.lane.b32.xlu0 %v1803, 84
  %v1808 = vpop.permute.xlu0 %1807
  %1809 = vrot.lane.b32.xlu0 %v1804, 84
  %v1810 = vpop.permute.xlu0 %1809
  %v1811 = vrot.slane %v1808, 4
  %v1812 = vrot.slane %v1810, 4
  %vm1813 = vcmask 687104
  %v1814 = vsel %vm1813, %v1808, %v1811
  %v1815 = vsel %vm1813, %v1810, %v1812
  %1818 = vst [vmem:[#allocation2 + $0x2c0] sm:$0xf] %v1814
  %1819 = vst [vmem:[#allocation2 + $0x2c8] sm:$0xf] %v1815
  %v1820 = vld [vmem:[%s29] sm:$0xff]
  %v1821 = vld [vmem:[%s29 + $0x8] sm:$0xff]
  %v1822 = vld [vmem:[%s29 + $0x10] sm:$0xff]
  %v1823 = vld [vmem:[%s29 + $0x18] sm:$0xff]
  %v1824 = vpack.c.bf16 %v1821, %v1820
  %v1825 = vpack.c.bf16 %v1823, %v1822
  %1828 = vrot.lane.b32.xlu0 %v1824, 84
  %v1829 = vpop.permute.xlu0 %1828
  %1830 = vrot.lane.b32.xlu0 %v1825, 84
  %v1831 = vpop.permute.xlu0 %1830
  %v1832 = vrot.slane %v1829, 4
  %v1833 = vrot.slane %v1831, 4
  %v1834 = vsel %vm1813, %v1829, %v1832
  %v1835 = vsel %vm1813, %v1831, %v1833
  %1838 = vst [vmem:[#allocation2 + $0x2c4] sm:$0xf] %v1834
  %1839 = vst [vmem:[#allocation2 + $0x2cc] sm:$0xf] %v1835
  %v1840 = vld [vmem:[%s0] sm:$0xff]
  %v1841 = vld [vmem:[%s0 + $0x8] sm:$0xff]
  %v1842 = vld [vmem:[%s0 + $0x10] sm:$0xff]
  %v1843 = vld [vmem:[%s0 + $0x18] sm:$0xff]
  %v1844 = vpack.c.bf16 %v1841, %v1840
  %v1845 = vpack.c.bf16 %v1843, %v1842
  %1848 = vrot.lane.b32.xlu0 %v1844, 83
  %v1849 = vpop.permute.xlu0 %1848
  %1850 = vrot.lane.b32.xlu0 %v1845, 83
  %v1851 = vpop.permute.xlu0 %1850
  %v1852 = vrot.slane %v1849, 4
  %v1853 = vrot.slane %v1851, 4
  %vm1854 = vcmask 678912
  %v1855 = vsel %vm1854, %v1849, %v1852
  %v1856 = vsel %vm1854, %v1851, %v1853
  %1859 = vst [vmem:[#allocation2 + $0x2d0] sm:$0xf] %v1855
  %1860 = vst [vmem:[#allocation2 + $0x2d8] sm:$0xf] %v1856
  %v1861 = vld [vmem:[%s29] sm:$0xff]
  %v1862 = vld [vmem:[%s29 + $0x8] sm:$0xff]
  %v1863 = vld [vmem:[%s29 + $0x10] sm:$0xff]
  %v1864 = vld [vmem:[%s29 + $0x18] sm:$0xff]
  %v1865 = vpack.c.bf16 %v1862, %v1861
  %v1866 = vpack.c.bf16 %v1864, %v1863
  %1869 = vrot.lane.b32.xlu0 %v1865, 83
  %v1870 = vpop.permute.xlu0 %1869
  %1871 = vrot.lane.b32.xlu0 %v1866, 83
  %v1872 = vpop.permute.xlu0 %1871
  %v1873 = vrot.slane %v1870, 4
  %v1874 = vrot.slane %v1872, 4
  %v1875 = vsel %vm1854, %v1870, %v1873
  %v1876 = vsel %vm1854, %v1872, %v1874
  %1879 = vst [vmem:[#allocation2 + $0x2d4] sm:$0xf] %v1875
  %1880 = vst [vmem:[#allocation2 + $0x2dc] sm:$0xf] %v1876
  %v1881 = vld [vmem:[%s0] sm:$0xff]
  %v1882 = vld [vmem:[%s0 + $0x8] sm:$0xff]
  %v1883 = vld [vmem:[%s0 + $0x10] sm:$0xff]
  %v1884 = vld [vmem:[%s0 + $0x18] sm:$0xff]
  %v1885 = vpack.c.bf16 %v1882, %v1881
  %v1886 = vpack.c.bf16 %v1884, %v1883
  %1889 = vrot.lane.b32.xlu0 %v1885, 82
  %v1890 = vpop.permute.xlu0 %1889
  %1891 = vrot.lane.b32.xlu0 %v1886, 82
  %v1892 = vpop.permute.xlu0 %1891
  %v1893 = vrot.slane %v1890, 4
  %v1894 = vrot.slane %v1892, 4
  %vm1895 = vcmask 670720
  %v1896 = vsel %vm1895, %v1890, %v1893
  %v1897 = vsel %vm1895, %v1892, %v1894
  %1900 = vst [vmem:[#allocation2 + $0x2e0] sm:$0xf] %v1896
  %1901 = vst [vmem:[#allocation2 + $0x2e8] sm:$0xf] %v1897
  %v1902 = vld [vmem:[%s29] sm:$0xff]
  %v1903 = vld [vmem:[%s29 + $0x8] sm:$0xff]
  %v1904 = vld [vmem:[%s29 + $0x10] sm:$0xff]
  %v1905 = vld [vmem:[%s29 + $0x18] sm:$0xff]
  %v1906 = vpack.c.bf16 %v1903, %v1902
  %v1907 = vpack.c.bf16 %v1905, %v1904
  %1910 = vrot.lane.b32.xlu0 %v1906, 82
  %v1911 = vpop.permute.xlu0 %1910
  %1912 = vrot.lane.b32.xlu0 %v1907, 82
  %v1913 = vpop.permute.xlu0 %1912
  %v1914 = vrot.slane %v1911, 4
  %v1915 = vrot.slane %v1913, 4
  %v1916 = vsel %vm1895, %v1911, %v1914
  %v1917 = vsel %vm1895, %v1913, %v1915
  %1920 = vst [vmem:[#allocation2 + $0x2e4] sm:$0xf] %v1916
  %1921 = vst [vmem:[#allocation2 + $0x2ec] sm:$0xf] %v1917
  %v1922 = vld [vmem:[%s0] sm:$0xff]
  %v1923 = vld [vmem:[%s0 + $0x8] sm:$0xff]
  %v1924 = vld [vmem:[%s0 + $0x10] sm:$0xff]
  %v1925 = vld [vmem:[%s0 + $0x18] sm:$0xff]
  %v1926 = vpack.c.bf16 %v1923, %v1922
  %v1927 = vpack.c.bf16 %v1925, %v1924
  %1930 = vrot.lane.b32.xlu0 %v1926, 81
  %v1931 = vpop.permute.xlu0 %1930
  %1932 = vrot.lane.b32.xlu0 %v1927, 81
  %v1933 = vpop.permute.xlu0 %1932
  %v1934 = vrot.slane %v1931, 4
  %v1935 = vrot.slane %v1933, 4
  %vm1936 = vcmask 662528
  %v1937 = vsel %vm1936, %v1931, %v1934
  %v1938 = vsel %vm1936, %v1933, %v1935
  %1941 = vst [vmem:[#allocation2 + $0x2f0] sm:$0xf] %v1937
  %1942 = vst [vmem:[#allocation2 + $0x2f8] sm:$0xf] %v1938
  %v1943 = vld [vmem:[%s29] sm:$0xff]
  %v1944 = vld [vmem:[%s29 + $0x8] sm:$0xff]
  %v1945 = vld [vmem:[%s29 + $0x10] sm:$0xff]
  %v1946 = vld [vmem:[%s29 + $0x18] sm:$0xff]
  %v1947 = vpack.c.bf16 %v1944, %v1943
  %v1948 = vpack.c.bf16 %v1946, %v1945
  %1951 = vrot.lane.b32.xlu0 %v1947, 81
  %v1952 = vpop.permute.xlu0 %1951
  %1953 = vrot.lane.b32.xlu0 %v1948, 81
  %v1954 = vpop.permute.xlu0 %1953
  %v1955 = vrot.slane %v1952, 4
  %v1956 = vrot.slane %v1954, 4
  %v1957 = vsel %vm1936, %v1952, %v1955
  %v1958 = vsel %vm1936, %v1954, %v1956
  %1961 = vst [vmem:[#allocation2 + $0x2f4] sm:$0xf] %v1957
  %1962 = vst [vmem:[#allocation2 + $0x2fc] sm:$0xf] %v1958
  %v1963 = vld [vmem:[%s0] sm:$0xff]
  %v1964 = vld [vmem:[%s0 + $0x8] sm:$0xff]
  %v1965 = vld [vmem:[%s0 + $0x10] sm:$0xff]
  %v1966 = vld [vmem:[%s0 + $0x18] sm:$0xff]
  %v1967 = vpack.c.bf16 %v1964, %v1963
  %v1968 = vpack.c.bf16 %v1966, %v1965
  %1971 = vrot.lane.b32.xlu0 %v1967, 80
  %v1972 = vpop.permute.xlu0 %1971
  %1973 = vrot.lane.b32.xlu0 %v1968, 80
  %v1974 = vpop.permute.xlu0 %1973
  %v1975 = vrot.slane %v1972, 4
  %v1976 = vrot.slane %v1974, 4
  %vm1977 = vcmask 654336
  %v1978 = vsel %vm1977, %v1972, %v1975
  %v1979 = vsel %vm1977, %v1974, %v1976
  %1982 = vst [vmem:[#allocation2 + $0x300] sm:$0xf] %v1978
  %1983 = vst [vmem:[#allocation2 + $0x308] sm:$0xf] %v1979
  %v1984 = vld [vmem:[%s29] sm:$0xff]
  %v1985 = vld [vmem:[%s29 + $0x8] sm:$0xff]
  %v1986 = vld [vmem:[%s29 + $0x10] sm:$0xff]
  %v1987 = vld [vmem:[%s29 + $0x18] sm:$0xff]
  %v1988 = vpack.c.bf16 %v1985, %v1984
  %v1989 = vpack.c.bf16 %v1987, %v1986
  %1992 = vrot.lane.b32.xlu0 %v1988, 80
  %v1993 = vpop.permute.xlu0 %1992
  %1994 = vrot.lane.b32.xlu0 %v1989, 80
  %v1995 = vpop.permute.xlu0 %1994
  %v1996 = vrot.slane %v1993, 4
  %v1997 = vrot.slane %v1995, 4
  %v1998 = vsel %vm1977, %v1993, %v1996
  %v1999 = vsel %vm1977, %v1995, %v1997
  %2002 = vst [vmem:[#allocation2 + $0x304] sm:$0xf] %v1998
  %2003 = vst [vmem:[#allocation2 + $0x30c] sm:$0xf] %v1999
  %v2004 = vld [vmem:[%s0] sm:$0xff]
  %v2005 = vld [vmem:[%s0 + $0x8] sm:$0xff]
  %v2006 = vld [vmem:[%s0 + $0x10] sm:$0xff]
  %v2007 = vld [vmem:[%s0 + $0x18] sm:$0xff]
  %v2008 = vpack.c.bf16 %v2005, %v2004
  %v2009 = vpack.c.bf16 %v2007, %v2006
  %2012 = vrot.lane.b32.xlu0 %v2008, 79
  %v2013 = vpop.permute.xlu0 %2012
  %2014 = vrot.lane.b32.xlu0 %v2009, 79
  %v2015 = vpop.permute.xlu0 %2014
  %v2016 = vrot.slane %v2013, 4
  %v2017 = vrot.slane %v2015, 4
  %vm2018 = vcmask 646144
  %v2019 = vsel %vm2018, %v2013, %v2016
  %v2020 = vsel %vm2018, %v2015, %v2017
  %2023 = vst [vmem:[#allocation2 + $0x310] sm:$0xf] %v2019
  %2024 = vst [vmem:[#allocation2 + $0x318] sm:$0xf] %v2020
  %v2025 = vld [vmem:[%s29] sm:$0xff]
  %v2026 = vld [vmem:[%s29 + $0x8] sm:$0xff]
  %v2027 = vld [vmem:[%s29 + $0x10] sm:$0xff]
  %v2028 = vld [vmem:[%s29 + $0x18] sm:$0xff]
  %v2029 = vpack.c.bf16 %v2026, %v2025
  %v2030 = vpack.c.bf16 %v2028, %v2027
  %2033 = vrot.lane.b32.xlu0 %v2029, 79
  %v2034 = vpop.permute.xlu0 %2033
  %2035 = vrot.lane.b32.xlu0 %v2030, 79
  %v2036 = vpop.permute.xlu0 %2035
  %v2037 = vrot.slane %v2034, 4
  %v2038 = vrot.slane %v2036, 4
  %v2039 = vsel %vm2018, %v2034, %v2037
  %v2040 = vsel %vm2018, %v2036, %v2038
  %2043 = vst [vmem:[#allocation2 + $0x314] sm:$0xf] %v2039
  %2044 = vst [vmem:[#allocation2 + $0x31c] sm:$0xf] %v2040
  %v2045 = vld [vmem:[%s0] sm:$0xff]
  %v2046 = vld [vmem:[%s0 + $0x8] sm:$0xff]
  %v2047 = vld [vmem:[%s0 + $0x10] sm:$0xff]
  %v2048 = vld [vmem:[%s0 + $0x18] sm:$0xff]
  %v2049 = vpack.c.bf16 %v2046, %v2045
  %v2050 = vpack.c.bf16 %v2048, %v2047
  %2053 = vrot.lane.b32.xlu0 %v2049, 78
  %v2054 = vpop.permute.xlu0 %2053
  %2055 = vrot.lane.b32.xlu0 %v2050, 78
  %v2056 = vpop.permute.xlu0 %2055
  %v2057 = vrot.slane %v2054, 4
  %v2058 = vrot.slane %v2056, 4
  %vm2059 = vcmask 637952
  %v2060 = vsel %vm2059, %v2054, %v2057
  %v2061 = vsel %vm2059, %v2056, %v2058
  %2064 = vst [vmem:[#allocation2 + $0x320] sm:$0xf] %v2060
  %2065 = vst [vmem:[#allocation2 + $0x328] sm:$0xf] %v2061
  %v2066 = vld [vmem:[%s29] sm:$0xff]
  %v2067 = vld [vmem:[%s29 + $0x8] sm:$0xff]
  %v2068 = vld [vmem:[%s29 + $0x10] sm:$0xff]
  %v2069 = vld [vmem:[%s29 + $0x18] sm:$0xff]
  %v2070 = vpack.c.bf16 %v2067, %v2066
  %v2071 = vpack.c.bf16 %v2069, %v2068
  %2074 = vrot.lane.b32.xlu0 %v2070, 78
  %v2075 = vpop.permute.xlu0 %2074
  %2076 = vrot.lane.b32.xlu0 %v2071, 78
  %v2077 = vpop.permute.xlu0 %2076
  %v2078 = vrot.slane %v2075, 4
  %v2079 = vrot.slane %v2077, 4
  %v2080 = vsel %vm2059, %v2075, %v2078
  %v2081 = vsel %vm2059, %v2077, %v2079
  %2084 = vst [vmem:[#allocation2 + $0x324] sm:$0xf] %v2080
  %2085 = vst [vmem:[#allocation2 + $0x32c] sm:$0xf] %v2081
  %v2086 = vld [vmem:[%s0] sm:$0xff]
  %v2087 = vld [vmem:[%s0 + $0x8] sm:$0xff]
  %v2088 = vld [vmem:[%s0 + $0x10] sm:$0xff]
  %v2089 = vld [vmem:[%s0 + $0x18] sm:$0xff]
  %v2090 = vpack.c.bf16 %v2087, %v2086
  %v2091 = vpack.c.bf16 %v2089, %v2088
  %2094 = vrot.lane.b32.xlu0 %v2090, 77
  %v2095 = vpop.permute.xlu0 %2094
  %2096 = vrot.lane.b32.xlu0 %v2091, 77
  %v2097 = vpop.permute.xlu0 %2096
  %v2098 = vrot.slane %v2095, 4
  %v2099 = vrot.slane %v2097, 4
  %vm2100 = vcmask 629760
  %v2101 = vsel %vm2100, %v2095, %v2098
  %v2102 = vsel %vm2100, %v2097, %v2099
  %2105 = vst [vmem:[#allocation2 + $0x330] sm:$0xf] %v2101
  %2106 = vst [vmem:[#allocation2 + $0x338] sm:$0xf] %v2102
  %v2107 = vld [vmem:[%s29] sm:$0xff]
  %v2108 = vld [vmem:[%s29 + $0x8] sm:$0xff]
  %v2109 = vld [vmem:[%s29 + $0x10] sm:$0xff]
  %v2110 = vld [vmem:[%s29 + $0x18] sm:$0xff]
  %v2111 = vpack.c.bf16 %v2108, %v2107
  %v2112 = vpack.c.bf16 %v2110, %v2109
  %2115 = vrot.lane.b32.xlu0 %v2111, 77
  %v2116 = vpop.permute.xlu0 %2115
  %2117 = vrot.lane.b32.xlu0 %v2112, 77
  %v2118 = vpop.permute.xlu0 %2117
  %v2119 = vrot.slane %v2116, 4
  %v2120 = vrot.slane %v2118, 4
  %v2121 = vsel %vm2100, %v2116, %v2119
  %v2122 = vsel %vm2100, %v2118, %v2120
  %2125 = vst [vmem:[#allocation2 + $0x334] sm:$0xf] %v2121
  %2126 = vst [vmem:[#allocation2 + $0x33c] sm:$0xf] %v2122
  %v2127 = vld [vmem:[%s0] sm:$0xff]
  %v2128 = vld [vmem:[%s0 + $0x8] sm:$0xff]
  %v2129 = vld [vmem:[%s0 + $0x10] sm:$0xff]
  %v2130 = vld [vmem:[%s0 + $0x18] sm:$0xff]
  %v2131 = vpack.c.bf16 %v2128, %v2127
  %v2132 = vpack.c.bf16 %v2130, %v2129
  %2135 = vrot.lane.b32.xlu0 %v2131, 76
  %v2136 = vpop.permute.xlu0 %2135
  %2137 = vrot.lane.b32.xlu0 %v2132, 76
  %v2138 = vpop.permute.xlu0 %2137
  %v2139 = vrot.slane %v2136, 4
  %v2140 = vrot.slane %v2138, 4
  %vm2141 = vcmask 621568
  %v2142 = vsel %vm2141, %v2136, %v2139
  %v2143 = vsel %vm2141, %v2138, %v2140
  %2146 = vst [vmem:[#allocation2 + $0x340] sm:$0xf] %v2142
  %2147 = vst [vmem:[#allocation2 + $0x348] sm:$0xf] %v2143
  %v2148 = vld [vmem:[%s29] sm:$0xff]
  %v2149 = vld [vmem:[%s29 + $0x8] sm:$0xff]
  %v2150 = vld [vmem:[%s29 + $0x10] sm:$0xff]
  %v2151 = vld [vmem:[%s29 + $0x18] sm:$0xff]
  %v2152 = vpack.c.bf16 %v2149, %v2148
  %v2153 = vpack.c.bf16 %v2151, %v2150
  %2156 = vrot.lane.b32.xlu0 %v2152, 76
  %v2157 = vpop.permute.xlu0 %2156
  %2158 = vrot.lane.b32.xlu0 %v2153, 76
  %v2159 = vpop.permute.xlu0 %2158
  %v2160 = vrot.slane %v2157, 4
  %v2161 = vrot.slane %v2159, 4
  %v2162 = vsel %vm2141, %v2157, %v2160
  %v2163 = vsel %vm2141, %v2159, %v2161
  %2166 = vst [vmem:[#allocation2 + $0x344] sm:$0xf] %v2162
  %2167 = vst [vmem:[#allocation2 + $0x34c] sm:$0xf] %v2163
  %v2168 = vld [vmem:[%s0] sm:$0xff]
  %v2169 = vld [vmem:[%s0 + $0x8] sm:$0xff]
  %v2170 = vld [vmem:[%s0 + $0x10] sm:$0xff]
  %v2171 = vld [vmem:[%s0 + $0x18] sm:$0xff]
  %v2172 = vpack.c.bf16 %v2169, %v2168
  %v2173 = vpack.c.bf16 %v2171, %v2170
  %2176 = vrot.lane.b32.xlu0 %v2172, 75
  %v2177 = vpop.permute.xlu0 %2176
  %2178 = vrot.lane.b32.xlu0 %v2173, 75
  %v2179 = vpop.permute.xlu0 %2178
  %v2180 = vrot.slane %v2177, 4
  %v2181 = vrot.slane %v2179, 4
  %vm2182 = vcmask 613376
  %v2183 = vsel %vm2182, %v2177, %v2180
  %v2184 = vsel %vm2182, %v2179, %v2181
  %2187 = vst [vmem:[#allocation2 + $0x350] sm:$0xf] %v2183
  %2188 = vst [vmem:[#allocation2 + $0x358] sm:$0xf] %v2184
  %v2189 = vld [vmem:[%s29] sm:$0xff]
  %v2190 = vld [vmem:[%s29 + $0x8] sm:$0xff]
  %v2191 = vld [vmem:[%s29 + $0x10] sm:$0xff]
  %v2192 = vld [vmem:[%s29 + $0x18] sm:$0xff]
  %v2193 = vpack.c.bf16 %v2190, %v2189
  %v2194 = vpack.c.bf16 %v2192, %v2191
  %2197 = vrot.lane.b32.xlu0 %v2193, 75
  %v2198 = vpop.permute.xlu0 %2197
  %2199 = vrot.lane.b32.xlu0 %v2194, 75
  %v2200 = vpop.permute.xlu0 %2199
  %v2201 = vrot.slane %v2198, 4
  %v2202 = vrot.slane %v2200, 4
  %v2203 = vsel %vm2182, %v2198, %v2201
  %v2204 = vsel %vm2182, %v2200, %v2202
  %2207 = vst [vmem:[#allocation2 + $0x354] sm:$0xf] %v2203
  %2208 = vst [vmem:[#allocation2 + $0x35c] sm:$0xf] %v2204
  %v2209 = vld [vmem:[%s0] sm:$0xff]
  %v2210 = vld [vmem:[%s0 + $0x8] sm:$0xff]
  %v2211 = vld [vmem:[%s0 + $0x10] sm:$0xff]
  %v2212 = vld [vmem:[%s0 + $0x18] sm:$0xff]
  %v2213 = vpack.c.bf16 %v2210, %v2209
  %v2214 = vpack.c.bf16 %v2212, %v2211
  %2217 = vrot.lane.b32.xlu0 %v2213, 74
  %v2218 = vpop.permute.xlu0 %2217
  %2219 = vrot.lane.b32.xlu0 %v2214, 74
  %v2220 = vpop.permute.xlu0 %2219
  %v2221 = vrot.slane %v2218, 4
  %v2222 = vrot.slane %v2220, 4
  %vm2223 = vcmask 605184
  %v2224 = vsel %vm2223, %v2218, %v2221
  %v2225 = vsel %vm2223, %v2220, %v2222
  %2228 = vst [vmem:[#allocation2 + $0x360] sm:$0xf] %v2224
  %2229 = vst [vmem:[#allocation2 + $0x368] sm:$0xf] %v2225
  %v2230 = vld [vmem:[%s29] sm:$0xff]
  %v2231 = vld [vmem:[%s29 + $0x8] sm:$0xff]
  %v2232 = vld [vmem:[%s29 + $0x10] sm:$0xff]
  %v2233 = vld [vmem:[%s29 + $0x18] sm:$0xff]
  %v2234 = vpack.c.bf16 %v2231, %v2230
  %v2235 = vpack.c.bf16 %v2233, %v2232
  %2238 = vrot.lane.b32.xlu0 %v2234, 74
  %v2239 = vpop.permute.xlu0 %2238
  %2240 = vrot.lane.b32.xlu0 %v2235, 74
  %v2241 = vpop.permute.xlu0 %2240
  %v2242 = vrot.slane %v2239, 4
  %v2243 = vrot.slane %v2241, 4
  %v2244 = vsel %vm2223, %v2239, %v2242
  %v2245 = vsel %vm2223, %v2241, %v2243
  %2248 = vst [vmem:[#allocation2 + $0x364] sm:$0xf] %v2244
  %2249 = vst [vmem:[#allocation2 + $0x36c] sm:$0xf] %v2245
  %v2250 = vld [vmem:[%s0] sm:$0xff]
  %v2251 = vld [vmem:[%s0 + $0x8] sm:$0xff]
  %v2252 = vld [vmem:[%s0 + $0x10] sm:$0xff]
  %v2253 = vld [vmem:[%s0 + $0x18] sm:$0xff]
  %v2254 = vpack.c.bf16 %v2251, %v2250
  %v2255 = vpack.c.bf16 %v2253, %v2252
  %2258 = vrot.lane.b32.xlu0 %v2254, 73
  %v2259 = vpop.permute.xlu0 %2258
  %2260 = vrot.lane.b32.xlu0 %v2255, 73
  %v2261 = vpop.permute.xlu0 %2260
  %v2262 = vrot.slane %v2259, 4
  %v2263 = vrot.slane %v2261, 4
  %vm2264 = vcmask 596992
  %v2265 = vsel %vm2264, %v2259, %v2262
  %v2266 = vsel %vm2264, %v2261, %v2263
  %2269 = vst [vmem:[#allocation2 + $0x370] sm:$0xf] %v2265
  %2270 = vst [vmem:[#allocation2 + $0x378] sm:$0xf] %v2266
  %v2271 = vld [vmem:[%s29] sm:$0xff]
  %v2272 = vld [vmem:[%s29 + $0x8] sm:$0xff]
  %v2273 = vld [vmem:[%s29 + $0x10] sm:$0xff]
  %v2274 = vld [vmem:[%s29 + $0x18] sm:$0xff]
  %v2275 = vpack.c.bf16 %v2272, %v2271
  %v2276 = vpack.c.bf16 %v2274, %v2273
  %2279 = vrot.lane.b32.xlu0 %v2275, 73
  %v2280 = vpop.permute.xlu0 %2279
  %2281 = vrot.lane.b32.xlu0 %v2276, 73
  %v2282 = vpop.permute.xlu0 %2281
  %v2283 = vrot.slane %v2280, 4
  %v2284 = vrot.slane %v2282, 4
  %v2285 = vsel %vm2264, %v2280, %v2283
  %v2286 = vsel %vm2264, %v2282, %v2284
  %2289 = vst [vmem:[#allocation2 + $0x374] sm:$0xf] %v2285
  %2290 = vst [vmem:[#allocation2 + $0x37c] sm:$0xf] %v2286
  %v2291 = vld [vmem:[%s0] sm:$0xff]
  %v2292 = vld [vmem:[%s0 + $0x8] sm:$0xff]
  %v2293 = vld [vmem:[%s0 + $0x10] sm:$0xff]
  %v2294 = vld [vmem:[%s0 + $0x18] sm:$0xff]
  %v2295 = vpack.c.bf16 %v2292, %v2291
  %v2296 = vpack.c.bf16 %v2294, %v2293
  %2299 = vrot.lane.b32.xlu0 %v2295, 72
  %v2300 = vpop.permute.xlu0 %2299
  %2301 = vrot.lane.b32.xlu0 %v2296, 72
  %v2302 = vpop.permute.xlu0 %2301
  %v2303 = vrot.slane %v2300, 4
  %v2304 = vrot.slane %v2302, 4
  %vm2305 = vcmask 588800
  %v2306 = vsel %vm2305, %v2300, %v2303
  %v2307 = vsel %vm2305, %v2302, %v2304
  %2310 = vst [vmem:[#allocation2 + $0x380] sm:$0xf] %v2306
  %2311 = vst [vmem:[#allocation2 + $0x388] sm:$0xf] %v2307
  %v2312 = vld [vmem:[%s29] sm:$0xff]
  %v2313 = vld [vmem:[%s29 + $0x8] sm:$0xff]
  %v2314 = vld [vmem:[%s29 + $0x10] sm:$0xff]
  %v2315 = vld [vmem:[%s29 + $0x18] sm:$0xff]
  %v2316 = vpack.c.bf16 %v2313, %v2312
  %v2317 = vpack.c.bf16 %v2315, %v2314
  %2320 = vrot.lane.b32.xlu0 %v2316, 72
  %v2321 = vpop.permute.xlu0 %2320
  %2322 = vrot.lane.b32.xlu0 %v2317, 72
  %v2323 = vpop.permute.xlu0 %2322
  %v2324 = vrot.slane %v2321, 4
  %v2325 = vrot.slane %v2323, 4
  %v2326 = vsel %vm2305, %v2321, %v2324
  %v2327 = vsel %vm2305, %v2323, %v2325
  %2330 = vst [vmem:[#allocation2 + $0x384] sm:$0xf] %v2326
  %2331 = vst [vmem:[#allocation2 + $0x38c] sm:$0xf] %v2327
  %v2332 = vld [vmem:[%s0] sm:$0xff]
  %v2333 = vld [vmem:[%s0 + $0x8] sm:$0xff]
  %v2334 = vld [vmem:[%s0 + $0x10] sm:$0xff]
  %v2335 = vld [vmem:[%s0 + $0x18] sm:$0xff]
  %v2336 = vpack.c.bf16 %v2333, %v2332
  %v2337 = vpack.c.bf16 %v2335, %v2334
  %2340 = vrot.lane.b32.xlu0 %v2336, 71
  %v2341 = vpop.permute.xlu0 %2340
  %2342 = vrot.lane.b32.xlu0 %v2337, 71
  %v2343 = vpop.permute.xlu0 %2342
  %v2344 = vrot.slane %v2341, 4
  %v2345 = vrot.slane %v2343, 4
  %vm2346 = vcmask 580608
  %v2347 = vsel %vm2346, %v2341, %v2344
  %v2348 = vsel %vm2346, %v2343, %v2345
  %2351 = vst [vmem:[#allocation2 + $0x390] sm:$0xf] %v2347
  %2352 = vst [vmem:[#allocation2 + $0x398] sm:$0xf] %v2348
  %v2353 = vld [vmem:[%s29] sm:$0xff]
  %v2354 = vld [vmem:[%s29 + $0x8] sm:$0xff]
  %v2355 = vld [vmem:[%s29 + $0x10] sm:$0xff]
  %v2356 = vld [vmem:[%s29 + $0x18] sm:$0xff]
  %v2357 = vpack.c.bf16 %v2354, %v2353
  %v2358 = vpack.c.bf16 %v2356, %v2355
  %2361 = vrot.lane.b32.xlu0 %v2357, 71
  %v2362 = vpop.permute.xlu0 %2361
  %2363 = vrot.lane.b32.xlu0 %v2358, 71
  %v2364 = vpop.permute.xlu0 %2363
  %v2365 = vrot.slane %v2362, 4
  %v2366 = vrot.slane %v2364, 4
  %v2367 = vsel %vm2346, %v2362, %v2365
  %v2368 = vsel %vm2346, %v2364, %v2366
  %2371 = vst [vmem:[#allocation2 + $0x394] sm:$0xf] %v2367
  %2372 = vst [vmem:[#allocation2 + $0x39c] sm:$0xf] %v2368
  %v2373 = vld [vmem:[%s0] sm:$0xff]
  %v2374 = vld [vmem:[%s0 + $0x8] sm:$0xff]
  %v2375 = vld [vmem:[%s0 + $0x10] sm:$0xff]
  %v2376 = vld [vmem:[%s0 + $0x18] sm:$0xff]
  %v2377 = vpack.c.bf16 %v2374, %v2373
  %v2378 = vpack.c.bf16 %v2376, %v2375
  %2381 = vrot.lane.b32.xlu0 %v2377, 70
  %v2382 = vpop.permute.xlu0 %2381
  %2383 = vrot.lane.b32.xlu0 %v2378, 70
  %v2384 = vpop.permute.xlu0 %2383
  %v2385 = vrot.slane %v2382, 4
  %v2386 = vrot.slane %v2384, 4
  %vm2387 = vcmask 572416
  %v2388 = vsel %vm2387, %v2382, %v2385
  %v2389 = vsel %vm2387, %v2384, %v2386
  %2392 = vst [vmem:[#allocation2 + $0x3a0] sm:$0xf] %v2388
  %2393 = vst [vmem:[#allocation2 + $0x3a8] sm:$0xf] %v2389
  %v2394 = vld [vmem:[%s29] sm:$0xff]
  %v2395 = vld [vmem:[%s29 + $0x8] sm:$0xff]
  %v2396 = vld [vmem:[%s29 + $0x10] sm:$0xff]
  %v2397 = vld [vmem:[%s29 + $0x18] sm:$0xff]
  %v2398 = vpack.c.bf16 %v2395, %v2394
  %v2399 = vpack.c.bf16 %v2397, %v2396
  %2402 = vrot.lane.b32.xlu0 %v2398, 70
  %v2403 = vpop.permute.xlu0 %2402
  %2404 = vrot.lane.b32.xlu0 %v2399, 70
  %v2405 = vpop.permute.xlu0 %2404
  %v2406 = vrot.slane %v2403, 4
  %v2407 = vrot.slane %v2405, 4
  %v2408 = vsel %vm2387, %v2403, %v2406
  %v2409 = vsel %vm2387, %v2405, %v2407
  %2412 = vst [vmem:[#allocation2 + $0x3a4] sm:$0xf] %v2408
  %2413 = vst [vmem:[#allocation2 + $0x3ac] sm:$0xf] %v2409
  %v2414 = vld [vmem:[%s0] sm:$0xff]
  %v2415 = vld [vmem:[%s0 + $0x8] sm:$0xff]
  %v2416 = vld [vmem:[%s0 + $0x10] sm:$0xff]
  %v2417 = vld [vmem:[%s0 + $0x18] sm:$0xff]
  %v2418 = vpack.c.bf16 %v2415, %v2414
  %v2419 = vpack.c.bf16 %v2417, %v2416
  %2422 = vrot.lane.b32.xlu0 %v2418, 69
  %v2423 = vpop.permute.xlu0 %2422
  %2424 = vrot.lane.b32.xlu0 %v2419, 69
  %v2425 = vpop.permute.xlu0 %2424
  %v2426 = vrot.slane %v2423, 4
  %v2427 = vrot.slane %v2425, 4
  %vm2428 = vcmask 564224
  %v2429 = vsel %vm2428, %v2423, %v2426
  %v2430 = vsel %vm2428, %v2425, %v2427
  %2433 = vst [vmem:[#allocation2 + $0x3b0] sm:$0xf] %v2429
  %2434 = vst [vmem:[#allocation2 + $0x3b8] sm:$0xf] %v2430
  %v2435 = vld [vmem:[%s29] sm:$0xff]
  %v2436 = vld [vmem:[%s29 + $0x8] sm:$0xff]
  %v2437 = vld [vmem:[%s29 + $0x10] sm:$0xff]
  %v2438 = vld [vmem:[%s29 + $0x18] sm:$0xff]
  %v2439 = vpack.c.bf16 %v2436, %v2435
  %v2440 = vpack.c.bf16 %v2438, %v2437
  %2443 = vrot.lane.b32.xlu0 %v2439, 69
  %v2444 = vpop.permute.xlu0 %2443
  %2445 = vrot.lane.b32.xlu0 %v2440, 69
  %v2446 = vpop.permute.xlu0 %2445
  %v2447 = vrot.slane %v2444, 4
  %v2448 = vrot.slane %v2446, 4
  %v2449 = vsel %vm2428, %v2444, %v2447
  %v2450 = vsel %vm2428, %v2446, %v2448
  %2453 = vst [vmem:[#allocation2 + $0x3b4] sm:$0xf] %v2449
  %2454 = vst [vmem:[#allocation2 + $0x3bc] sm:$0xf] %v2450
  %v2455 = vld [vmem:[%s0] sm:$0xff]
  %v2456 = vld [vmem:[%s0 + $0x8] sm:$0xff]
  %v2457 = vld [vmem:[%s0 + $0x10] sm:$0xff]
  %v2458 = vld [vmem:[%s0 + $0x18] sm:$0xff]
  %v2459 = vpack.c.bf16 %v2456, %v2455
  %v2460 = vpack.c.bf16 %v2458, %v2457
  %2463 = vrot.lane.b32.xlu0 %v2459, 68
  %v2464 = vpop.permute.xlu0 %2463
  %2465 = vrot.lane.b32.xlu0 %v2460, 68
  %v2466 = vpop.permute.xlu0 %2465
  %v2467 = vrot.slane %v2464, 4
  %v2468 = vrot.slane %v2466, 4
  %vm2469 = vcmask 556032
  %v2470 = vsel %vm2469, %v2464, %v2467
  %v2471 = vsel %vm2469, %v2466, %v2468
  %2474 = vst [vmem:[#allocation2 + $0x3c0] sm:$0xf] %v2470
  %2475 = vst [vmem:[#allocation2 + $0x3c8] sm:$0xf] %v2471
  %v2476 = vld [vmem:[%s29] sm:$0xff]
  %v2477 = vld [vmem:[%s29 + $0x8] sm:$0xff]
  %v2478 = vld [vmem:[%s29 + $0x10] sm:$0xff]
  %v2479 = vld [vmem:[%s29 + $0x18] sm:$0xff]
  %v2480 = vpack.c.bf16 %v2477, %v2476
  %v2481 = vpack.c.bf16 %v2479, %v2478
  %2484 = vrot.lane.b32.xlu0 %v2480, 68
  %v2485 = vpop.permute.xlu0 %2484
  %2486 = vrot.lane.b32.xlu0 %v2481, 68
  %v2487 = vpop.permute.xlu0 %2486
  %v2488 = vrot.slane %v2485, 4
  %v2489 = vrot.slane %v2487, 4
  %v2490 = vsel %vm2469, %v2485, %v2488
  %v2491 = vsel %vm2469, %v2487, %v2489
  %2494 = vst [vmem:[#allocation2 + $0x3c4] sm:$0xf] %v2490
  %2495 = vst [vmem:[#allocation2 + $0x3cc] sm:$0xf] %v2491
  %v2496 = vld [vmem:[%s0] sm:$0xff]
  %v2497 = vld [vmem:[%s0 + $0x8] sm:$0xff]
  %v2498 = vld [vmem:[%s0 + $0x10] sm:$0xff]
  %v2499 = vld [vmem:[%s0 + $0x18] sm:$0xff]
  %v2500 = vpack.c.bf16 %v2497, %v2496
  %v2501 = vpack.c.bf16 %v2499, %v2498
  %2504 = vrot.lane.b32.xlu0 %v2500, 67
  %v2505 = vpop.permute.xlu0 %2504
  %2506 = vrot.lane.b32.xlu0 %v2501, 67
  %v2507 = vpop.permute.xlu0 %2506
  %v2508 = vrot.slane %v2505, 4
  %v2509 = vrot.slane %v2507, 4
  %vm2510 = vcmask 547840
  %v2511 = vsel %vm2510, %v2505, %v2508
  %v2512 = vsel %vm2510, %v2507, %v2509
  %2515 = vst [vmem:[#allocation2 + $0x3d0] sm:$0xf] %v2511
  %2516 = vst [vmem:[#allocation2 + $0x3d8] sm:$0xf] %v2512
  %v2517 = vld [vmem:[%s29] sm:$0xff]
  %v2518 = vld [vmem:[%s29 + $0x8] sm:$0xff]
  %v2519 = vld [vmem:[%s29 + $0x10] sm:$0xff]
  %v2520 = vld [vmem:[%s29 + $0x18] sm:$0xff]
  %v2521 = vpack.c.bf16 %v2518, %v2517
  %v2522 = vpack.c.bf16 %v2520, %v2519
  %2525 = vrot.lane.b32.xlu0 %v2521, 67
  %v2526 = vpop.permute.xlu0 %2525
  %2527 = vrot.lane.b32.xlu0 %v2522, 67
  %v2528 = vpop.permute.xlu0 %2527
  %v2529 = vrot.slane %v2526, 4
  %v2530 = vrot.slane %v2528, 4
  %v2531 = vsel %vm2510, %v2526, %v2529
  %v2532 = vsel %vm2510, %v2528, %v2530
  %2535 = vst [vmem:[#allocation2 + $0x3d4] sm:$0xf] %v2531
  %2536 = vst [vmem:[#allocation2 + $0x3dc] sm:$0xf] %v2532
  %v2537 = vld [vmem:[%s0] sm:$0xff]
  %v2538 = vld [vmem:[%s0 + $0x8] sm:$0xff]
  %v2539 = vld [vmem:[%s0 + $0x10] sm:$0xff]
  %v2540 = vld [vmem:[%s0 + $0x18] sm:$0xff]
  %v2541 = vpack.c.bf16 %v2538, %v2537
  %v2542 = vpack.c.bf16 %v2540, %v2539
  %2545 = vrot.lane.b32.xlu0 %v2541, 66
  %v2546 = vpop.permute.xlu0 %2545
  %2547 = vrot.lane.b32.xlu0 %v2542, 66
  %v2548 = vpop.permute.xlu0 %2547
  %v2549 = vrot.slane %v2546, 4
  %v2550 = vrot.slane %v2548, 4
  %vm2551 = vcmask 539648
  %v2552 = vsel %vm2551, %v2546, %v2549
  %v2553 = vsel %vm2551, %v2548, %v2550
  %2556 = vst [vmem:[#allocation2 + $0x3e0] sm:$0xf] %v2552
  %2557 = vst [vmem:[#allocation2 + $0x3e8] sm:$0xf] %v2553
  %v2558 = vld [vmem:[%s29] sm:$0xff]
  %v2559 = vld [vmem:[%s29 + $0x8] sm:$0xff]
  %v2560 = vld [vmem:[%s29 + $0x10] sm:$0xff]
  %v2561 = vld [vmem:[%s29 + $0x18] sm:$0xff]
  %v2562 = vpack.c.bf16 %v2559, %v2558
  %v2563 = vpack.c.bf16 %v2561, %v2560
  %2566 = vrot.lane.b32.xlu0 %v2562, 66
  %v2567 = vpop.permute.xlu0 %2566
  %2568 = vrot.lane.b32.xlu0 %v2563, 66
  %v2569 = vpop.permute.xlu0 %2568
  %v2570 = vrot.slane %v2567, 4
  %v2571 = vrot.slane %v2569, 4
  %v2572 = vsel %vm2551, %v2567, %v2570
  %v2573 = vsel %vm2551, %v2569, %v2571
  %2576 = vst [vmem:[#allocation2 + $0x3e4] sm:$0xf] %v2572
  %2577 = vst [vmem:[#allocation2 + $0x3ec] sm:$0xf] %v2573
  %v2578 = vld [vmem:[%s0] sm:$0xff]
  %v2579 = vld [vmem:[%s0 + $0x8] sm:$0xff]
  %v2580 = vld [vmem:[%s0 + $0x10] sm:$0xff]
  %v2581 = vld [vmem:[%s0 + $0x18] sm:$0xff]
  %v2582 = vpack.c.bf16 %v2579, %v2578
  %v2583 = vpack.c.bf16 %v2581, %v2580
  %2586 = vrot.lane.b32.xlu0 %v2582, 65
  %v2587 = vpop.permute.xlu0 %2586
  %2588 = vrot.lane.b32.xlu0 %v2583, 65
  %v2589 = vpop.permute.xlu0 %2588
  %v2590 = vrot.slane %v2587, 4
  %v2591 = vrot.slane %v2589, 4
  %vm2592 = vcmask 531456
  %v2593 = vsel %vm2592, %v2587, %v2590
  %v2594 = vsel %vm2592, %v2589, %v2591
  %2597 = vst [vmem:[#allocation2 + $0x3f0] sm:$0xf] %v2593
  %2598 = vst [vmem:[#allocation2 + $0x3f8] sm:$0xf] %v2594
  %v2599 = vld [vmem:[%s29] sm:$0xff]
  %v2600 = vld [vmem:[%s29 + $0x8] sm:$0xff]
  %v2601 = vld [vmem:[%s29 + $0x10] sm:$0xff]
  %v2602 = vld [vmem:[%s29 + $0x18] sm:$0xff]
  %v2603 = vpack.c.bf16 %v2600, %v2599
  %v2604 = vpack.c.bf16 %v2602, %v2601
  %2607 = vrot.lane.b32.xlu0 %v2603, 65
  %v2608 = vpop.permute.xlu0 %2607
  %2609 = vrot.lane.b32.xlu0 %v2604, 65
  %v2610 = vpop.permute.xlu0 %2609
  %v2611 = vrot.slane %v2608, 4
  %v2612 = vrot.slane %v2610, 4
  %v2613 = vsel %vm2592, %v2608, %v2611
  %v2614 = vsel %vm2592, %v2610, %v2612
  %2617 = vst [vmem:[#allocation2 + $0x3f4] sm:$0xf] %v2613
  %2618 = vst [vmem:[#allocation2 + $0x3fc] sm:$0xf] %v2614
  %v2619 = vld [vmem:[%s1] sm:$0xff]
  %v2620 = vld [vmem:[%s1 + $0x8] sm:$0xff]
  %v2621 = vld [vmem:[%s1 + $0x10] sm:$0xff]
  %v2622 = vld [vmem:[%s1 + $0x18] sm:$0xff]
  %v2623 = vld [vmem:[%s1 + $0x20] sm:$0xff]
  %v2624 = vld [vmem:[%s1 + $0x28] sm:$0xff]
  %v2625 = vld [vmem:[%s1 + $0x30] sm:$0xff]
  %v2626 = vld [vmem:[%s1 + $0x38] sm:$0xff]
  %v2627 = vld [vmem:[#allocation2] sm:$0xff]
  %v2628 = vld [vmem:[#allocation2 + $0x8] sm:$0xff]
  %v2629 = vld [vmem:[#allocation2 + $0x10] sm:$0xff]
  %v2630 = vld [vmem:[#allocation2 + $0x18] sm:$0xff]
  %v2631 = vld [vmem:[#allocation2 + $0x20] sm:$0xff]
  %v2632 = vld [vmem:[#allocation2 + $0x28] sm:$0xff]
  %v2633 = vld [vmem:[#allocation2 + $0x30] sm:$0xff]
  %v2634 = vld [vmem:[#allocation2 + $0x38] sm:$0xff]
  %v2635 = vld [vmem:[#allocation2 + $0x40] sm:$0xff]
  %v2636 = vld [vmem:[#allocation2 + $0x48] sm:$0xff]
  %v2637 = vld [vmem:[#allocation2 + $0x50] sm:$0xff]
  %v2638 = vld [vmem:[#allocation2 + $0x58] sm:$0xff]
  %v2639 = vld [vmem:[#allocation2 + $0x60] sm:$0xff]
  %v2640 = vld [vmem:[#allocation2 + $0x68] sm:$0xff]
  %v2641 = vld [vmem:[#allocation2 + $0x70] sm:$0xff]
  %v2642 = vld [vmem:[#allocation2 + $0x78] sm:$0xff]
  %v2643 = vld [vmem:[#allocation2 + $0x80] sm:$0xff]
  %v2644 = vld [vmem:[#allocation2 + $0x88] sm:$0xff]
  %v2645 = vld [vmem:[#allocation2 + $0x90] sm:$0xff]
  %v2646 = vld [vmem:[#allocation2 + $0x98] sm:$0xff]
  %v2647 = vld [vmem:[#allocation2 + $0xa0] sm:$0xff]
  %v2648 = vld [vmem:[#allocation2 + $0xa8] sm:$0xff]
  %v2649 = vld [vmem:[#allocation2 + $0xb0] sm:$0xff]
  %v2650 = vld [vmem:[#allocation2 + $0xb8] sm:$0xff]
  %v2651 = vld [vmem:[#allocation2 + $0xc0] sm:$0xff]
  %v2652 = vld [vmem:[#allocation2 + $0xc8] sm:$0xff]
  %v2653 = vld [vmem:[#allocation2 + $0xd0] sm:$0xff]
  %v2654 = vld [vmem:[#allocation2 + $0xd8] sm:$0xff]
  %v2655 = vld [vmem:[#allocation2 + $0xe0] sm:$0xff]
  %v2656 = vld [vmem:[#allocation2 + $0xe8] sm:$0xff]
  %v2657 = vld [vmem:[#allocation2 + $0xf0] sm:$0xff]
  %v2658 = vld [vmem:[#allocation2 + $0xf8] sm:$0xff]
  %v2659 = vld [vmem:[#allocation2 + $0x100] sm:$0xff]
  %v2660 = vld [vmem:[#allocation2 + $0x108] sm:$0xff]
  %v2661 = vld [vmem:[#allocation2 + $0x110] sm:$0xff]
  %v2662 = vld [vmem:[#allocation2 + $0x118] sm:$0xff]
  %v2663 = vld [vmem:[#allocation2 + $0x120] sm:$0xff]
  %v2664 = vld [vmem:[#allocation2 + $0x128] sm:$0xff]
  %v2665 = vld [vmem:[#allocation2 + $0x130] sm:$0xff]
  %v2666 = vld [vmem:[#allocation2 + $0x138] sm:$0xff]
  %v2667 = vld [vmem:[#allocation2 + $0x140] sm:$0xff]
  %v2668 = vld [vmem:[#allocation2 + $0x148] sm:$0xff]
  %v2669 = vld [vmem:[#allocation2 + $0x150] sm:$0xff]
  %v2670 = vld [vmem:[#allocation2 + $0x158] sm:$0xff]
  %v2671 = vld [vmem:[#allocation2 + $0x160] sm:$0xff]
  %v2672 = vld [vmem:[#allocation2 + $0x168] sm:$0xff]
  %v2673 = vld [vmem:[#allocation2 + $0x170] sm:$0xff]
  %v2674 = vld [vmem:[#allocation2 + $0x178] sm:$0xff]
  %v2675 = vld [vmem:[#allocation2 + $0x180] sm:$0xff]
  %v2676 = vld [vmem:[#allocation2 + $0x188] sm:$0xff]
  %v2677 = vld [vmem:[#allocation2 + $0x190] sm:$0xff]
  %v2678 = vld [vmem:[#allocation2 + $0x198] sm:$0xff]
  %v2679 = vld [vmem:[#allocation2 + $0x1a0] sm:$0xff]
  %v2680 = vld [vmem:[#allocation2 + $0x1a8] sm:$0xff]
  %v2681 = vld [vmem:[#allocation2 + $0x1b0] sm:$0xff]
  %v2682 = vld [vmem:[#allocation2 + $0x1b8] sm:$0xff]
  %v2683 = vld [vmem:[#allocation2 + $0x1c0] sm:$0xff]
  %v2684 = vld [vmem:[#allocation2 + $0x1c8] sm:$0xff]
  %v2685 = vld [vmem:[#allocation2 + $0x1d0] sm:$0xff]
  %v2686 = vld [vmem:[#allocation2 + $0x1d8] sm:$0xff]
  %v2687 = vld [vmem:[#allocation2 + $0x1e0] sm:$0xff]
  %v2688 = vld [vmem:[#allocation2 + $0x1e8] sm:$0xff]
  %v2689 = vld [vmem:[#allocation2 + $0x1f0] sm:$0xff]
  %v2690 = vld [vmem:[#allocation2 + $0x1f8] sm:$0xff]
  %v2691 = vld [vmem:[#allocation2 + $0x200] sm:$0xff]
  %v2692 = vld [vmem:[#allocation2 + $0x208] sm:$0xff]
  %v2693 = vld [vmem:[#allocation2 + $0x210] sm:$0xff]
  %v2694 = vld [vmem:[#allocation2 + $0x218] sm:$0xff]
  %v2695 = vld [vmem:[#allocation2 + $0x220] sm:$0xff]
  %v2696 = vld [vmem:[#allocation2 + $0x228] sm:$0xff]
  %v2697 = vld [vmem:[#allocation2 + $0x230] sm:$0xff]
  %v2698 = vld [vmem:[#allocation2 + $0x238] sm:$0xff]
  %v2699 = vld [vmem:[#allocation2 + $0x240] sm:$0xff]
  %v2700 = vld [vmem:[#allocation2 + $0x248] sm:$0xff]
  %v2701 = vld [vmem:[#allocation2 + $0x250] sm:$0xff]
  %v2702 = vld [vmem:[#allocation2 + $0x258] sm:$0xff]
  %v2703 = vld [vmem:[#allocation2 + $0x260] sm:$0xff]
  %v2704 = vld [vmem:[#allocation2 + $0x268] sm:$0xff]
  %v2705 = vld [vmem:[#allocation2 + $0x270] sm:$0xff]
  %v2706 = vld [vmem:[#allocation2 + $0x278] sm:$0xff]
  %v2707 = vld [vmem:[#allocation2 + $0x280] sm:$0xff]
  %v2708 = vld [vmem:[#allocation2 + $0x288] sm:$0xff]
  %v2709 = vld [vmem:[#allocation2 + $0x290] sm:$0xff]
  %v2710 = vld [vmem:[#allocation2 + $0x298] sm:$0xff]
  %v2711 = vld [vmem:[#allocation2 + $0x2a0] sm:$0xff]
  %v2712 = vld [vmem:[#allocation2 + $0x2a8] sm:$0xff]
  %v2713 = vld [vmem:[#allocation2 + $0x2b0] sm:$0xff]
  %v2714 = vld [vmem:[#allocation2 + $0x2b8] sm:$0xff]
  %v2715 = vld [vmem:[#allocation2 + $0x2c0] sm:$0xff]
  %v2716 = vld [vmem:[#allocation2 + $0x2c8] sm:$0xff]
  %v2717 = vld [vmem:[#allocation2 + $0x2d0] sm:$0xff]
  %v2718 = vld [vmem:[#allocation2 + $0x2d8] sm:$0xff]
  %v2719 = vld [vmem:[#allocation2 + $0x2e0] sm:$0xff]
  %v2720 = vld [vmem:[#allocation2 + $0x2e8] sm:$0xff]
  %v2721 = vld [vmem:[#allocation2 + $0x2f0] sm:$0xff]
  %v2722 = vld [vmem:[#allocation2 + $0x2f8] sm:$0xff]
  %v2723 = vld [vmem:[#allocation2 + $0x300] sm:$0xff]
  %v2724 = vld [vmem:[#allocation2 + $0x308] sm:$0xff]
  %v2725 = vld [vmem:[#allocation2 + $0x310] sm:$0xff]
  %v2726 = vld [vmem:[#allocation2 + $0x318] sm:$0xff]
  %v2727 = vld [vmem:[#allocation2 + $0x320] sm:$0xff]
  %v2728 = vld [vmem:[#allocation2 + $0x328] sm:$0xff]
  %v2729 = vld [vmem:[#allocation2 + $0x330] sm:$0xff]
  %v2730 = vld [vmem:[#allocation2 + $0x338] sm:$0xff]
  %v2731 = vld [vmem:[#allocation2 + $0x340] sm:$0xff]
  %v2732 = vld [vmem:[#allocation2 + $0x348] sm:$0xff]
  %v2733 = vld [vmem:[#allocation2 + $0x350] sm:$0xff]
  %v2734 = vld [vmem:[#allocation2 + $0x358] sm:$0xff]
  %v2735 = vld [vmem:[#allocation2 + $0x360] sm:$0xff]
  %v2736 = vld [vmem:[#allocation2 + $0x368] sm:$0xff]
  %v2737 = vld [vmem:[#allocation2 + $0x370] sm:$0xff]
  %v2738 = vld [vmem:[#allocation2 + $0x378] sm:$0xff]
  %v2739 = vld [vmem:[#allocation2 + $0x380] sm:$0xff]
  %v2740 = vld [vmem:[#allocation2 + $0x388] sm:$0xff]
  %v2741 = vld [vmem:[#allocation2 + $0x390] sm:$0xff]
  %v2742 = vld [vmem:[#allocation2 + $0x398] sm:$0xff]
  %v2743 = vld [vmem:[#allocation2 + $0x3a0] sm:$0xff]
  %v2744 = vld [vmem:[#allocation2 + $0x3a8] sm:$0xff]
  %v2745 = vld [vmem:[#allocation2 + $0x3b0] sm:$0xff]
  %v2746 = vld [vmem:[#allocation2 + $0x3b8] sm:$0xff]
  %v2747 = vld [vmem:[#allocation2 + $0x3c0] sm:$0xff]
  %v2748 = vld [vmem:[#allocation2 + $0x3c8] sm:$0xff]
  %v2749 = vld [vmem:[#allocation2 + $0x3d0] sm:$0xff]
  %v2750 = vld [vmem:[#allocation2 + $0x3d8] sm:$0xff]
  %v2751 = vld [vmem:[#allocation2 + $0x3e0] sm:$0xff]
  %v2752 = vld [vmem:[#allocation2 + $0x3e8] sm:$0xff]
  %v2753 = vld [vmem:[#allocation2 + $0x3f0] sm:$0xff]
  %v2754 = vld [vmem:[#allocation2 + $0x3f8] sm:$0xff]
  %v2755 = vld [vmem:[%s2] sm:$0xff]
  %v2756 = vld [vmem:[%s2 + $0x8] sm:$0xff]
  %2758 = vset.pattern.permute.xlu0 0
  %2759 = vperm.xlu0 %2758, %v2755
  %v2760 = vpop.permute.xlu0 %2759
  %2763 = vset.pattern.permute.xlu0 0
  %2764 = vperm.xlu0 %2763, %v2756
  %v2765 = vpop.permute.xlu0 %2764
  %v2775 = vunpack.c.l.b16 %v2619
  %v2776 = vunpack.c.h.b16 %v2619
  %v2777 = vunpack.c.l.b16 %v2620
  %v2778 = vunpack.c.h.b16 %v2620
  %v2779 = vunpack.c.l.b16 %v2621
  %v2780 = vunpack.c.h.b16 %v2621
  %v2781 = vunpack.c.l.b16 %v2622
  %v2782 = vunpack.c.h.b16 %v2622
  %v2783 = vunpack.c.l.b16 %v2623
  %v2784 = vunpack.c.h.b16 %v2623
  %v2785 = vunpack.c.l.b16 %v2624
  %v2786 = vunpack.c.h.b16 %v2624
  %v2787 = vunpack.c.l.b16 %v2625
  %v2788 = vunpack.c.h.b16 %v2625
  %v2789 = vunpack.c.l.b16 %v2626
  %v2790 = vunpack.c.h.b16 %v2626
  %v2791 = vpack.c.b16 %v2783, %v2775
  %v2792 = vpack.c.b16 %v2784, %v2776
  %v2793 = vpack.c.b16 %v2785, %v2777
  %v2794 = vpack.c.b16 %v2786, %v2778
  %v2795 = vpack.c.b16 %v2787, %v2779
  %v2796 = vpack.c.b16 %v2788, %v2780
  %v2797 = vpack.c.b16 %v2789, %v2781
  %v2798 = vpack.c.b16 %v2790, %v2782
  %v2935 = vunpack.c.l.b16 %v2627
  %v2936 = vunpack.c.h.b16 %v2627
  %v2937 = vunpack.c.l.b16 %v2628
  %v2938 = vunpack.c.h.b16 %v2628
  %v2939 = vunpack.c.l.b16 %v2629
  %v2940 = vunpack.c.h.b16 %v2629
  %v2941 = vunpack.c.l.b16 %v2630
  %v2942 = vunpack.c.h.b16 %v2630
  %v2943 = vunpack.c.l.b16 %v2631
  %v2944 = vunpack.c.h.b16 %v2631
  %v2945 = vunpack.c.l.b16 %v2632
  %v2946 = vunpack.c.h.b16 %v2632
  %v2947 = vunpack.c.l.b16 %v2633
  %v2948 = vunpack.c.h.b16 %v2633
  %v2949 = vunpack.c.l.b16 %v2634
  %v2950 = vunpack.c.h.b16 %v2634
  %v2951 = vunpack.c.l.b16 %v2635
  %v2952 = vunpack.c.h.b16 %v2635
  %v2953 = vunpack.c.l.b16 %v2636
  %v2954 = vunpack.c.h.b16 %v2636
  %v2955 = vunpack.c.l.b16 %v2637
  %v2956 = vunpack.c.h.b16 %v2637
  %v2957 = vunpack.c.l.b16 %v2638
  %v2958 = vunpack.c.h.b16 %v2638
  %v2959 = vunpack.c.l.b16 %v2639
  %v2960 = vunpack.c.h.b16 %v2639
  %v2961 = vunpack.c.l.b16 %v2640
  %v2962 = vunpack.c.h.b16 %v2640
  %v2963 = vunpack.c.l.b16 %v2641
  %v2964 = vunpack.c.h.b16 %v2641
  %v2965 = vunpack.c.l.b16 %v2642
  %v2966 = vunpack.c.h.b16 %v2642
  %v2967 = vunpack.c.l.b16 %v2643
  %v2968 = vunpack.c.h.b16 %v2643
  %v2969 = vunpack.c.l.b16 %v2644
  %v2970 = vunpack.c.h.b16 %v2644
  %v2971 = vunpack.c.l.b16 %v2645
  %v2972 = vunpack.c.h.b16 %v2645
  %v2973 = vunpack.c.l.b16 %v2646
  %v2974 = vunpack.c.h.b16 %v2646
  %v2975 = vunpack.c.l.b16 %v2647
  %v2976 = vunpack.c.h.b16 %v2647
  %v2977 = vunpack.c.l.b16 %v2648
  %v2978 = vunpack.c.h.b16 %v2648
  %v2979 = vunpack.c.l.b16 %v2649
  %v2980 = vunpack.c.h.b16 %v2649
  %v2981 = vunpack.c.l.b16 %v2650
  %v2982 = vunpack.c.h.b16 %v2650
  %v2983 = vunpack.c.l.b16 %v2651
  %v2984 = vunpack.c.h.b16 %v2651
  %v2985 = vunpack.c.l.b16 %v2652
  %v2986 = vunpack.c.h.b16 %v2652
  %v2987 = vunpack.c.l.b16 %v2653
  %v2988 = vunpack.c.h.b16 %v2653
  %v2989 = vunpack.c.l.b16 %v2654
  %v2990 = vunpack.c.h.b16 %v2654
  %v2991 = vunpack.c.l.b16 %v2655
  %v2992 = vunpack.c.h.b16 %v2655
  %v2993 = vunpack.c.l.b16 %v2656
  %v2994 = vunpack.c.h.b16 %v2656
  %v2995 = vunpack.c.l.b16 %v2657
  %v2996 = vunpack.c.h.b16 %v2657
  %v2997 = vunpack.c.l.b16 %v2658
  %v2998 = vunpack.c.h.b16 %v2658
  %v2999 = vunpack.c.l.b16 %v2659
  %v3000 = vunpack.c.h.b16 %v2659
  %v3001 = vunpack.c.l.b16 %v2660
  %v3002 = vunpack.c.h.b16 %v2660
  %v3003 = vunpack.c.l.b16 %v2661
  %v3004 = vunpack.c.h.b16 %v2661
  %v3005 = vunpack.c.l.b16 %v2662
  %v3006 = vunpack.c.h.b16 %v2662
  %v3007 = vunpack.c.l.b16 %v2663
  %v3008 = vunpack.c.h.b16 %v2663
  %v3009 = vunpack.c.l.b16 %v2664
  %v3010 = vunpack.c.h.b16 %v2664
  %v3011 = vunpack.c.l.b16 %v2665
  %v3012 = vunpack.c.h.b16 %v2665
  %v3013 = vunpack.c.l.b16 %v2666
  %v3014 = vunpack.c.h.b16 %v2666
  %v3015 = vunpack.c.l.b16 %v2667
  %v3016 = vunpack.c.h.b16 %v2667
  %v3017 = vunpack.c.l.b16 %v2668
  %v3018 = vunpack.c.h.b16 %v2668
  %v3019 = vunpack.c.l.b16 %v2669
  %v3020 = vunpack.c.h.b16 %v2669
  %v3021 = vunpack.c.l.b16 %v2670
  %v3022 = vunpack.c.h.b16 %v2670
  %v3023 = vunpack.c.l.b16 %v2671
  %v3024 = vunpack.c.h.b16 %v2671
  %v3025 = vunpack.c.l.b16 %v2672
  %v3026 = vunpack.c.h.b16 %v2672
  %v3027 = vunpack.c.l.b16 %v2673
  %v3028 = vunpack.c.h.b16 %v2673
  %v3029 = vunpack.c.l.b16 %v2674
  %v3030 = vunpack.c.h.b16 %v2674
  %v3031 = vunpack.c.l.b16 %v2675
  %v3032 = vunpack.c.h.b16 %v2675
  %v3033 = vunpack.c.l.b16 %v2676
  %v3034 = vunpack.c.h.b16 %v2676
  %v3035 = vunpack.c.l.b16 %v2677
  %v3036 = vunpack.c.h.b16 %v2677
  %v3037 = vunpack.c.l.b16 %v2678
  %v3038 = vunpack.c.h.b16 %v2678
  %v3039 = vunpack.c.l.b16 %v2679
  %v3040 = vunpack.c.h.b16 %v2679
  %v3041 = vunpack.c.l.b16 %v2680
  %v3042 = vunpack.c.h.b16 %v2680
  %v3043 = vunpack.c.l.b16 %v2681
  %v3044 = vunpack.c.h.b16 %v2681
  %v3045 = vunpack.c.l.b16 %v2682
  %v3046 = vunpack.c.h.b16 %v2682
  %v3047 = vunpack.c.l.b16 %v2683
  %v3048 = vunpack.c.h.b16 %v2683
  %v3049 = vunpack.c.l.b16 %v2684
  %v3050 = vunpack.c.h.b16 %v2684
  %v3051 = vunpack.c.l.b16 %v2685
  %v3052 = vunpack.c.h.b16 %v2685
  %v3053 = vunpack.c.l.b16 %v2686
  %v3054 = vunpack.c.h.b16 %v2686
  %v3055 = vunpack.c.l.b16 %v2687
  %v3056 = vunpack.c.h.b16 %v2687
  %v3057 = vunpack.c.l.b16 %v2688
  %v3058 = vunpack.c.h.b16 %v2688
  %v3059 = vunpack.c.l.b16 %v2689
  %v3060 = vunpack.c.h.b16 %v2689
  %v3061 = vunpack.c.l.b16 %v2690
  %v3062 = vunpack.c.h.b16 %v2690
  %v3063 = vunpack.c.l.b16 %v2691
  %v3064 = vunpack.c.h.b16 %v2691
  %v3065 = vunpack.c.l.b16 %v2692
  %v3066 = vunpack.c.h.b16 %v2692
  %v3067 = vunpack.c.l.b16 %v2693
  %v3068 = vunpack.c.h.b16 %v2693
  %v3069 = vunpack.c.l.b16 %v2694
  %v3070 = vunpack.c.h.b16 %v2694
  %v3071 = vunpack.c.l.b16 %v2695
  %v3072 = vunpack.c.h.b16 %v2695
  %v3073 = vunpack.c.l.b16 %v2696
  %v3074 = vunpack.c.h.b16 %v2696
  %v3075 = vunpack.c.l.b16 %v2697
  %v3076 = vunpack.c.h.b16 %v2697
  %v3077 = vunpack.c.l.b16 %v2698
  %v3078 = vunpack.c.h.b16 %v2698
  %v3079 = vunpack.c.l.b16 %v2699
  %v3080 = vunpack.c.h.b16 %v2699
  %v3081 = vunpack.c.l.b16 %v2700
  %v3082 = vunpack.c.h.b16 %v2700
  %v3083 = vunpack.c.l.b16 %v2701
  %v3084 = vunpack.c.h.b16 %v2701
  %v3085 = vunpack.c.l.b16 %v2702
  %v3086 = vunpack.c.h.b16 %v2702
  %v3087 = vunpack.c.l.b16 %v2703
  %v3088 = vunpack.c.h.b16 %v2703
  %v3089 = vunpack.c.l.b16 %v2704
  %v3090 = vunpack.c.h.b16 %v2704
  %v3091 = vunpack.c.l.b16 %v2705
  %v3092 = vunpack.c.h.b16 %v2705
  %v3093 = vunpack.c.l.b16 %v2706
  %v3094 = vunpack.c.h.b16 %v2706
  %v3095 = vunpack.c.l.b16 %v2707
  %v3096 = vunpack.c.h.b16 %v2707
  %v3097 = vunpack.c.l.b16 %v2708
  %v3098 = vunpack.c.h.b16 %v2708
  %v3099 = vunpack.c.l.b16 %v2709
  %v3100 = vunpack.c.h.b16 %v2709
  %v3101 = vunpack.c.l.b16 %v2710
  %v3102 = vunpack.c.h.b16 %v2710
  %v3103 = vunpack.c.l.b16 %v2711
  %v3104 = vunpack.c.h.b16 %v2711
  %v3105 = vunpack.c.l.b16 %v2712
  %v3106 = vunpack.c.h.b16 %v2712
  %v3107 = vunpack.c.l.b16 %v2713
  %v3108 = vunpack.c.h.b16 %v2713
  %v3109 = vunpack.c.l.b16 %v2714
  %v3110 = vunpack.c.h.b16 %v2714
  %v3111 = vunpack.c.l.b16 %v2715
  %v3112 = vunpack.c.h.b16 %v2715
  %v3113 = vunpack.c.l.b16 %v2716
  %v3114 = vunpack.c.h.b16 %v2716
  %v3115 = vunpack.c.l.b16 %v2717
  %v3116 = vunpack.c.h.b16 %v2717
  %v3117 = vunpack.c.l.b16 %v2718
  %v3118 = vunpack.c.h.b16 %v2718
  %v3119 = vunpack.c.l.b16 %v2719
  %v3120 = vunpack.c.h.b16 %v2719
  %v3121 = vunpack.c.l.b16 %v2720
  %v3122 = vunpack.c.h.b16 %v2720
  %v3123 = vunpack.c.l.b16 %v2721
  %v3124 = vunpack.c.h.b16 %v2721
  %v3125 = vunpack.c.l.b16 %v2722
  %v3126 = vunpack.c.h.b16 %v2722
  %v3127 = vunpack.c.l.b16 %v2723
  %v3128 = vunpack.c.h.b16 %v2723
  %v3129 = vunpack.c.l.b16 %v2724
  %v3130 = vunpack.c.h.b16 %v2724
  %v3131 = vunpack.c.l.b16 %v2725
  %v3132 = vunpack.c.h.b16 %v2725
  %v3133 = vunpack.c.l.b16 %v2726
  %v3134 = vunpack.c.h.b16 %v2726
  %v3135 = vunpack.c.l.b16 %v2727
  %v3136 = vunpack.c.h.b16 %v2727
  %v3137 = vunpack.c.l.b16 %v2728
  %v3138 = vunpack.c.h.b16 %v2728
  %v3139 = vunpack.c.l.b16 %v2729
  %v3140 = vunpack.c.h.b16 %v2729
  %v3141 = vunpack.c.l.b16 %v2730
  %v3142 = vunpack.c.h.b16 %v2730
  %v3143 = vunpack.c.l.b16 %v2731
  %v3144 = vunpack.c.h.b16 %v2731
  %v3145 = vunpack.c.l.b16 %v2732
  %v3146 = vunpack.c.h.b16 %v2732
  %v3147 = vunpack.c.l.b16 %v2733
  %v3148 = vunpack.c.h.b16 %v2733
  %v3149 = vunpack.c.l.b16 %v2734
  %v3150 = vunpack.c.h.b16 %v2734
  %v3151 = vunpack.c.l.b16 %v2735
  %v3152 = vunpack.c.h.b16 %v2735
  %v3153 = vunpack.c.l.b16 %v2736
  %v3154 = vunpack.c.h.b16 %v2736
  %v3155 = vunpack.c.l.b16 %v2737
  %v3156 = vunpack.c.h.b16 %v2737
  %v3157 = vunpack.c.l.b16 %v2738
  %v3158 = vunpack.c.h.b16 %v2738
  %v3159 = vunpack.c.l.b16 %v2739
  %v3160 = vunpack.c.h.b16 %v2739
  %v3161 = vunpack.c.l.b16 %v2740
  %v3162 = vunpack.c.h.b16 %v2740
  %v3163 = vunpack.c.l.b16 %v2741
  %v3164 = vunpack.c.h.b16 %v2741
  %v3165 = vunpack.c.l.b16 %v2742
  %v3166 = vunpack.c.h.b16 %v2742
  %v3167 = vunpack.c.l.b16 %v2743
  %v3168 = vunpack.c.h.b16 %v2743
  %v3169 = vunpack.c.l.b16 %v2744
  %v3170 = vunpack.c.h.b16 %v2744
  %v3171 = vunpack.c.l.b16 %v2745
  %v3172 = vunpack.c.h.b16 %v2745
  %v3173 = vunpack.c.l.b16 %v2746
  %v3174 = vunpack.c.h.b16 %v2746
  %v3175 = vunpack.c.l.b16 %v2747
  %v3176 = vunpack.c.h.b16 %v2747
  %v3177 = vunpack.c.l.b16 %v2748
  %v3178 = vunpack.c.h.b16 %v2748
  %v3179 = vunpack.c.l.b16 %v2749
  %v3180 = vunpack.c.h.b16 %v2749
  %v3181 = vunpack.c.l.b16 %v2750
  %v3182 = vunpack.c.h.b16 %v2750
  %v3183 = vunpack.c.l.b16 %v2751
  %v3184 = vunpack.c.h.b16 %v2751
  %v3185 = vunpack.c.l.b16 %v2752
  %v3186 = vunpack.c.h.b16 %v2752
  %v3187 = vunpack.c.l.b16 %v2753
  %v3188 = vunpack.c.h.b16 %v2753
  %v3189 = vunpack.c.l.b16 %v2754
  %v3190 = vunpack.c.h.b16 %v2754
  %v3191 = vpack.c.b16 %v2937, %v2935
  %v3192 = vpack.c.b16 %v2938, %v2936
  %v3193 = vpack.c.b16 %v2941, %v2939
  %v3194 = vpack.c.b16 %v2942, %v2940
  %v3195 = vpack.c.b16 %v2945, %v2943
  %v3196 = vpack.c.b16 %v2946, %v2944
  %v3197 = vpack.c.b16 %v2949, %v2947
  %v3198 = vpack.c.b16 %v2950, %v2948
  %v3199 = vpack.c.b16 %v2953, %v2951
  %v3200 = vpack.c.b16 %v2954, %v2952
  %v3201 = vpack.c.b16 %v2957, %v2955
  %v3202 = vpack.c.b16 %v2958, %v2956
  %v3203 = vpack.c.b16 %v2961, %v2959
  %v3204 = vpack.c.b16 %v2962, %v2960
  %v3205 = vpack.c.b16 %v2965, %v2963
  %v3206 = vpack.c.b16 %v2966, %v2964
  %v3207 = vpack.c.b16 %v2969, %v2967
  %v3208 = vpack.c.b16 %v2970, %v2968
  %v3209 = vpack.c.b16 %v2973, %v2971
  %v3210 = vpack.c.b16 %v2974, %v2972
  %v3211 = vpack.c.b16 %v2977, %v2975
  %v3212 = vpack.c.b16 %v2978, %v2976
  %v3213 = vpack.c.b16 %v2981, %v2979
  %v3214 = vpack.c.b16 %v2982, %v2980
  %v3215 = vpack.c.b16 %v2985, %v2983
  %v3216 = vpack.c.b16 %v2986, %v2984
  %v3217 = vpack.c.b16 %v2989, %v2987
  %v3218 = vpack.c.b16 %v2990, %v2988
  %v3219 = vpack.c.b16 %v2993, %v2991
  %v3220 = vpack.c.b16 %v2994, %v2992
  %v3221 = vpack.c.b16 %v2997, %v2995
  %v3222 = vpack.c.b16 %v2998, %v2996
  %v3223 = vpack.c.b16 %v3001, %v2999
  %v3224 = vpack.c.b16 %v3002, %v3000
  %v3225 = vpack.c.b16 %v3005, %v3003
  %v3226 = vpack.c.b16 %v3006, %v3004
  %v3227 = vpack.c.b16 %v3009, %v3007
  %v3228 = vpack.c.b16 %v3010, %v3008
  %v3229 = vpack.c.b16 %v3013, %v3011
  %v3230 = vpack.c.b16 %v3014, %v3012
  %v3231 = vpack.c.b16 %v3017, %v3015
  %v3232 = vpack.c.b16 %v3018, %v3016
  %v3233 = vpack.c.b16 %v3021, %v3019
  %v3234 = vpack.c.b16 %v3022, %v3020
  %v3235 = vpack.c.b16 %v3025, %v3023
  %v3236 = vpack.c.b16 %v3026, %v3024
  %v3237 = vpack.c.b16 %v3029, %v3027
  %v3238 = vpack.c.b16 %v3030, %v3028
  %v3239 = vpack.c.b16 %v3033, %v3031
  %v3240 = vpack.c.b16 %v3034, %v3032
  %v3241 = vpack.c.b16 %v3037, %v3035
  %v3242 = vpack.c.b16 %v3038, %v3036
  %v3243 = vpack.c.b16 %v3041, %v3039
  %v3244 = vpack.c.b16 %v3042, %v3040
  %v3245 = vpack.c.b16 %v3045, %v3043
  %v3246 = vpack.c.b16 %v3046, %v3044
  %v3247 = vpack.c.b16 %v3049, %v3047
  %v3248 = vpack.c.b16 %v3050, %v3048
  %v3249 = vpack.c.b16 %v3053, %v3051
  %v3250 = vpack.c.b16 %v3054, %v3052
  %v3251 = vpack.c.b16 %v3057, %v3055
  %v3252 = vpack.c.b16 %v3058, %v3056
  %v3253 = vpack.c.b16 %v3061, %v3059
  %v3254 = vpack.c.b16 %v3062, %v3060
  %v3255 = vpack.c.b16 %v3065, %v3063
  %v3256 = vpack.c.b16 %v3066, %v3064
  %v3257 = vpack.c.b16 %v3069, %v3067
  %v3258 = vpack.c.b16 %v3070, %v3068
  %v3259 = vpack.c.b16 %v3073, %v3071
  %v3260 = vpack.c.b16 %v3074, %v3072
  %v3261 = vpack.c.b16 %v3077, %v3075
  %v3262 = vpack.c.b16 %v3078, %v3076
  %v3263 = vpack.c.b16 %v3081, %v3079
  %v3264 = vpack.c.b16 %v3082, %v3080
  %v3265 = vpack.c.b16 %v3085, %v3083
  %v3266 = vpack.c.b16 %v3086, %v3084
  %v3267 = vpack.c.b16 %v3089, %v3087
  %v3268 = vpack.c.b16 %v3090, %v3088
  %v3269 = vpack.c.b16 %v3093, %v3091
  %v3270 = vpack.c.b16 %v3094, %v3092
  %v3271 = vpack.c.b16 %v3097, %v3095
  %v3272 = vpack.c.b16 %v3098, %v3096
  %v3273 = vpack.c.b16 %v3101, %v3099
  %v3274 = vpack.c.b16 %v3102, %v3100
  %v3275 = vpack.c.b16 %v3105, %v3103
  %v3276 = vpack.c.b16 %v3106, %v3104
  %v3277 = vpack.c.b16 %v3109, %v3107
  %v3278 = vpack.c.b16 %v3110, %v3108
  %v3279 = vpack.c.b16 %v3113, %v3111
  %v3280 = vpack.c.b16 %v3114, %v3112
  %v3281 = vpack.c.b16 %v3117, %v3115
  %v3282 = vpack.c.b16 %v3118, %v3116
  %v3283 = vpack.c.b16 %v3121, %v3119
  %v3284 = vpack.c.b16 %v3122, %v3120
  %v3285 = vpack.c.b16 %v3125, %v3123
  %v3286 = vpack.c.b16 %v3126, %v3124
  %v3287 = vpack.c.b16 %v3129, %v3127
  %v3288 = vpack.c.b16 %v3130, %v3128
  %v3289 = vpack.c.b16 %v3133, %v3131
  %v3290 = vpack.c.b16 %v3134, %v3132
  %v3291 = vpack.c.b16 %v3137, %v3135
  %v3292 = vpack.c.b16 %v3138, %v3136
  %v3293 = vpack.c.b16 %v3141, %v3139
  %v3294 = vpack.c.b16 %v3142, %v3140
  %v3295 = vpack.c.b16 %v3145, %v3143
  %v3296 = vpack.c.b16 %v3146, %v3144
  %v3297 = vpack.c.b16 %v3149, %v3147
  %v3298 = vpack.c.b16 %v3150, %v3148
  %v3299 = vpack.c.b16 %v3153, %v3151
  %v3300 = vpack.c.b16 %v3154, %v3152
  %v3301 = vpack.c.b16 %v3157, %v3155
  %v3302 = vpack.c.b16 %v3158, %v3156
  %v3303 = vpack.c.b16 %v3161, %v3159
  %v3304 = vpack.c.b16 %v3162, %v3160
  %v3305 = vpack.c.b16 %v3165, %v3163
  %v3306 = vpack.c.b16 %v3166, %v3164
  %v3307 = vpack.c.b16 %v3169, %v3167
  %v3308 = vpack.c.b16 %v3170, %v3168
  %v3309 = vpack.c.b16 %v3173, %v3171
  %v3310 = vpack.c.b16 %v3174, %v3172
  %v3311 = vpack.c.b16 %v3177, %v3175
  %v3312 = vpack.c.b16 %v3178, %v3176
  %v3313 = vpack.c.b16 %v3181, %v3179
  %v3314 = vpack.c.b16 %v3182, %v3180
  %v3315 = vpack.c.b16 %v3185, %v3183
  %v3316 = vpack.c.b16 %v3186, %v3184
  %v3317 = vpack.c.b16 %v3189, %v3187
  %v3318 = vpack.c.b16 %v3190, %v3188
  %3447 = vmatpush.bf16.msra.mxu0 %v3205
  %3448 = vmatpush.bf16.msra.mxu0 %v3203
  %3449 = vmatpush.bf16.msra.mxu0 %v3201
  %3450 = vmatpush.bf16.msra.mxu0 %v3199
  %3451 = vmatpush.bf16.msra.mxu0 %v3197
  %3452 = vmatpush.bf16.msra.mxu0 %v3195
  %3453 = vmatpush.bf16.msra.mxu0 %v3193
  %3454 = vmatpush.bf16.msra.mxu0 %v3191
  %3455 = vmatmul.bf16.gmra.mxu0 %v2791
  %v3456 = vpop.f32.mrf.mxu0
  %v3457 = vadd.f32 %v2760, %v3456
  %v3458 = vpop.f32.mrf.mxu0
  %v3459 = vadd.f32 %v2765, %v3458
  %3460 = vdwg.mxu0
  %3461 = vmatpush.bf16.msra.mxu0 %v3221
  %3462 = vmatpush.bf16.msra.mxu0 %v3219
  %3463 = vmatpush.bf16.msra.mxu0 %v3217
  %3464 = vmatpush.bf16.msra.mxu0 %v3215
  %3465 = vmatpush.bf16.msra.mxu0 %v3213
  %3466 = vmatpush.bf16.msra.mxu0 %v3211
  %3467 = vmatpush.bf16.msra.mxu0 %v3209
  %3468 = vmatpush.bf16.msra.mxu0 %v3207
  %3469 = vmatmul.bf16.gmra.mxu0 %v2792
  %v3470 = vpop.f32.mrf.mxu0
  %v3471 = vadd.f32 %v3457, %v3470
  %v3472 = vpop.f32.mrf.mxu0
  %v3473 = vadd.f32 %v3459, %v3472
  %3474 = vdwg.mxu0
  %3475 = vmatpush.bf16.msra.mxu0 %v3237
  %3476 = vmatpush.bf16.msra.mxu0 %v3235
  %3477 = vmatpush.bf16.msra.mxu0 %v3233
  %3478 = vmatpush.bf16.msra.mxu0 %v3231
  %3479 = vmatpush.bf16.msra.mxu0 %v3229
  %3480 = vmatpush.bf16.msra.mxu0 %v3227
  %3481 = vmatpush.bf16.msra.mxu0 %v3225
  %3482 = vmatpush.bf16.msra.mxu0 %v3223
  %3483 = vmatmul.bf16.gmra.mxu0 %v2793
  %v3484 = vpop.f32.mrf.mxu0
  %v3485 = vadd.f32 %v3471, %v3484
  %v3486 = vpop.f32.mrf.mxu0
  %v3487 = vadd.f32 %v3473, %v3486
  %3488 = vdwg.mxu0
  %3489 = vmatpush.bf16.msra.mxu0 %v3253
  %3490 = vmatpush.bf16.msra.mxu0 %v3251
  %3491 = vmatpush.bf16.msra.mxu0 %v3249
  %3492 = vmatpush.bf16.msra.mxu0 %v3247
  %3493 = vmatpush.bf16.msra.mxu0 %v3245
  %3494 = vmatpush.bf16.msra.mxu0 %v3243
  %3495 = vmatpush.bf16.msra.mxu0 %v3241
  %3496 = vmatpush.bf16.msra.mxu0 %v3239
  %3497 = vmatmul.bf16.gmra.mxu0 %v2794
  %v3498 = vpop.f32.mrf.mxu0
  %v3499 = vadd.f32 %v3485, %v3498
  %v3500 = vpop.f32.mrf.mxu0
  %v3501 = vadd.f32 %v3487, %v3500
  %3502 = vdwg.mxu0
  %3503 = vmatpush.bf16.msra.mxu0 %v3269
  %3504 = vmatpush.bf16.msra.mxu0 %v3267
  %3505 = vmatpush.bf16.msra.mxu0 %v3265
  %3506 = vmatpush.bf16.msra.mxu0 %v3263
  %3507 = vmatpush.bf16.msra.mxu0 %v3261
  %3508 = vmatpush.bf16.msra.mxu0 %v3259
  %3509 = vmatpush.bf16.msra.mxu0 %v3257
  %3510 = vmatpush.bf16.msra.mxu0 %v3255
  %3511 = vmatmul.bf16.gmra.mxu0 %v2795
  %v3512 = vpop.f32.mrf.mxu0
  %v3513 = vadd.f32 %v3499, %v3512
  %v3514 = vpop.f32.mrf.mxu0
  %v3515 = vadd.f32 %v3501, %v3514
  %3516 = vdwg.mxu0
  %3517 = vmatpush.bf16.msra.mxu0 %v3285
  %3518 = vmatpush.bf16.msra.mxu0 %v3283
  %3519 = vmatpush.bf16.msra.mxu0 %v3281
  %3520 = vmatpush.bf16.msra.mxu0 %v3279
  %3521 = vmatpush.bf16.msra.mxu0 %v3277
  %3522 = vmatpush.bf16.msra.mxu0 %v3275
  %3523 = vmatpush.bf16.msra.mxu0 %v3273
  %3524 = vmatpush.bf16.msra.mxu0 %v3271
  %3525 = vmatmul.bf16.gmra.mxu0 %v2796
  %v3526 = vpop.f32.mrf.mxu0
  %v3527 = vadd.f32 %v3513, %v3526
  %v3528 = vpop.f32.mrf.mxu0
  %v3529 = vadd.f32 %v3515, %v3528
  %3530 = vdwg.mxu0
  %3531 = vmatpush.bf16.msra.mxu0 %v3301
  %3532 = vmatpush.bf16.msra.mxu0 %v3299
  %3533 = vmatpush.bf16.msra.mxu0 %v3297
  %3534 = vmatpush.bf16.msra.mxu0 %v3295
  %3535 = vmatpush.bf16.msra.mxu0 %v3293
  %3536 = vmatpush.bf16.msra.mxu0 %v3291
  %3537 = vmatpush.bf16.msra.mxu0 %v3289
  %3538 = vmatpush.bf16.msra.mxu0 %v3287
  %3539 = vmatmul.bf16.gmra.mxu0 %v2797
  %v3540 = vpop.f32.mrf.mxu0
  %v3541 = vadd.f32 %v3527, %v3540
  %v3542 = vpop.f32.mrf.mxu0
  %v3543 = vadd.f32 %v3529, %v3542
  %3544 = vdwg.mxu0
  %3545 = vmatpush.bf16.msra.mxu0 %v3317
  %3546 = vmatpush.bf16.msra.mxu0 %v3315
  %3547 = vmatpush.bf16.msra.mxu0 %v3313
  %3548 = vmatpush.bf16.msra.mxu0 %v3311
  %3549 = vmatpush.bf16.msra.mxu0 %v3309
  %3550 = vmatpush.bf16.msra.mxu0 %v3307
  %3551 = vmatpush.bf16.msra.mxu0 %v3305
  %3552 = vmatpush.bf16.msra.mxu0 %v3303
  %3553 = vmatmul.bf16.gmra.mxu0 %v2798
  %v3554 = vpop.f32.mrf.mxu0
  %v3555 = vadd.f32 %v3541, %v3554
  %v3556 = vpop.f32.mrf.mxu0
  %v3557 = vadd.f32 %v3543, %v3556
  %3558 = vdwg.mxu0
  %3559 = vmatpush.bf16.msra.mxu0 %v3206
  %3560 = vmatpush.bf16.msra.mxu0 %v3204
  %3561 = vmatpush.bf16.msra.mxu0 %v3202
  %3562 = vmatpush.bf16.msra.mxu0 %v3200
  %3563 = vmatpush.bf16.msra.mxu0 %v3198
  %3564 = vmatpush.bf16.msra.mxu0 %v3196
  %3565 = vmatpush.bf16.msra.mxu0 %v3194
  %3566 = vmatpush.bf16.msra.mxu0 %v3192
  %3567 = vmatmul.bf16.gmra.mxu0 %v2791
  %v3568 = vpop.f32.mrf.mxu0
  %v3569 = vadd.f32 %v2760, %v3568
  %v3570 = vpop.f32.mrf.mxu0
  %v3571 = vadd.f32 %v2765, %v3570
  %3572 = vdwg.mxu0
  %3573 = vmatpush.bf16.msra.mxu0 %v3222
  %3574 = vmatpush.bf16.msra.mxu0 %v3220
  %3575 = vmatpush.bf16.msra.mxu0 %v3218
  %3576 = vmatpush.bf16.msra.mxu0 %v3216
  %3577 = vmatpush.bf16.msra.mxu0 %v3214
  %3578 = vmatpush.bf16.msra.mxu0 %v3212
  %3579 = vmatpush.bf16.msra.mxu0 %v3210
  %3580 = vmatpush.bf16.msra.mxu0 %v3208
  %3581 = vmatmul.bf16.gmra.mxu0 %v2792
  %v3582 = vpop.f32.mrf.mxu0
  %v3583 = vadd.f32 %v3569, %v3582
  %v3584 = vpop.f32.mrf.mxu0
  %v3585 = vadd.f32 %v3571, %v3584
  %3586 = vdwg.mxu0
  %3587 = vmatpush.bf16.msra.mxu0 %v3238
  %3588 = vmatpush.bf16.msra.mxu0 %v3236
  %3589 = vmatpush.bf16.msra.mxu0 %v3234
  %3590 = vmatpush.bf16.msra.mxu0 %v3232
  %3591 = vmatpush.bf16.msra.mxu0 %v3230
  %3592 = vmatpush.bf16.msra.mxu0 %v3228
  %3593 = vmatpush.bf16.msra.mxu0 %v3226
  %3594 = vmatpush.bf16.msra.mxu0 %v3224
  %3595 = vmatmul.bf16.gmra.mxu0 %v2793
  %v3596 = vpop.f32.mrf.mxu0
  %v3597 = vadd.f32 %v3583, %v3596
  %v3598 = vpop.f32.mrf.mxu0
  %v3599 = vadd.f32 %v3585, %v3598
  %3600 = vdwg.mxu0
  %3601 = vmatpush.bf16.msra.mxu0 %v3254
  %3602 = vmatpush.bf16.msra.mxu0 %v3252
  %3603 = vmatpush.bf16.msra.mxu0 %v3250
  %3604 = vmatpush.bf16.msra.mxu0 %v3248
  %3605 = vmatpush.bf16.msra.mxu0 %v3246
  %3606 = vmatpush.bf16.msra.mxu0 %v3244
  %3607 = vmatpush.bf16.msra.mxu0 %v3242
  %3608 = vmatpush.bf16.msra.mxu0 %v3240
  %3609 = vmatmul.bf16.gmra.mxu0 %v2794
  %v3610 = vpop.f32.mrf.mxu0
  %v3611 = vadd.f32 %v3597, %v3610
  %v3612 = vpop.f32.mrf.mxu0
  %v3613 = vadd.f32 %v3599, %v3612
  %3614 = vdwg.mxu0
  %3615 = vmatpush.bf16.msra.mxu0 %v3270
  %3616 = vmatpush.bf16.msra.mxu0 %v3268
  %3617 = vmatpush.bf16.msra.mxu0 %v3266
  %3618 = vmatpush.bf16.msra.mxu0 %v3264
  %3619 = vmatpush.bf16.msra.mxu0 %v3262
  %3620 = vmatpush.bf16.msra.mxu0 %v3260
  %3621 = vmatpush.bf16.msra.mxu0 %v3258
  %3622 = vmatpush.bf16.msra.mxu0 %v3256
  %3623 = vmatmul.bf16.gmra.mxu0 %v2795
  %v3624 = vpop.f32.mrf.mxu0
  %v3625 = vadd.f32 %v3611, %v3624
  %v3626 = vpop.f32.mrf.mxu0
  %v3627 = vadd.f32 %v3613, %v3626
  %3628 = vdwg.mxu0
  %3629 = vmatpush.bf16.msra.mxu0 %v3286
  %3630 = vmatpush.bf16.msra.mxu0 %v3284
  %3631 = vmatpush.bf16.msra.mxu0 %v3282
  %3632 = vmatpush.bf16.msra.mxu0 %v3280
  %3633 = vmatpush.bf16.msra.mxu0 %v3278
  %3634 = vmatpush.bf16.msra.mxu0 %v3276
  %3635 = vmatpush.bf16.msra.mxu0 %v3274
  %3636 = vmatpush.bf16.msra.mxu0 %v3272
  %3637 = vmatmul.bf16.gmra.mxu0 %v2796
  %v3638 = vpop.f32.mrf.mxu0
  %v3639 = vadd.f32 %v3625, %v3638
  %v3640 = vpop.f32.mrf.mxu0
  %v3641 = vadd.f32 %v3627, %v3640
  %3642 = vdwg.mxu0
  %3643 = vmatpush.bf16.msra.mxu0 %v3302
  %3644 = vmatpush.bf16.msra.mxu0 %v3300
  %3645 = vmatpush.bf16.msra.mxu0 %v3298
  %3646 = vmatpush.bf16.msra.mxu0 %v3296
  %3647 = vmatpush.bf16.msra.mxu0 %v3294
  %3648 = vmatpush.bf16.msra.mxu0 %v3292
  %3649 = vmatpush.bf16.msra.mxu0 %v3290
  %3650 = vmatpush.bf16.msra.mxu0 %v3288
  %3651 = vmatmul.bf16.gmra.mxu0 %v2797
  %v3652 = vpop.f32.mrf.mxu0
  %v3653 = vadd.f32 %v3639, %v3652
  %v3654 = vpop.f32.mrf.mxu0
  %v3655 = vadd.f32 %v3641, %v3654
  %3656 = vdwg.mxu0
  %3657 = vmatpush.bf16.msra.mxu0 %v3318
  %3658 = vmatpush.bf16.msra.mxu0 %v3316
  %3659 = vmatpush.bf16.msra.mxu0 %v3314
  %3660 = vmatpush.bf16.msra.mxu0 %v3312
  %3661 = vmatpush.bf16.msra.mxu0 %v3310
  %3662 = vmatpush.bf16.msra.mxu0 %v3308
  %3663 = vmatpush.bf16.msra.mxu0 %v3306
  %3664 = vmatpush.bf16.msra.mxu0 %v3304
  %3665 = vmatmul.bf16.gmra.mxu0 %v2798
  %v3666 = vpop.f32.mrf.mxu0
  %v3667 = vadd.f32 %v3653, %v3666
  %v3668 = vpop.f32.mrf.mxu0
  %v3669 = vadd.f32 %v3655, %v3668
  %3670 = vdwg.mxu0
  %vm3671 = vcmp.gt.f32.partialorder %v3555, 0.0
  %vm3672 = vcmp.gt.f32.partialorder %v3667, 0.0
  %vm3673 = vcmp.gt.f32.partialorder %v3557, 0.0
  %vm3674 = vcmp.gt.f32.partialorder %v3669, 0.0
  %v3675 = vmin.f32 %v3555, 0.0
  %v3676 = vmin.f32 %v3667, 0.0
  %v3677 = vmin.f32 %v3557, 0.0
  %v3678 = vmin.f32 %v3669, 0.0
  %v3679 = vmul.f32 %v3675, 1.442695
  %v3680 = vpow.pop %v3679
  %v3681 = vmul.f32 %v3676, 1.442695
  %v3682 = vpow.pop %v3681
  %v3683 = vmul.f32 %v3677, 1.442695
  %v3684 = vpow.pop %v3683
  %v3685 = vmul.f32 %v3678, 1.442695
  %v3686 = vpow.pop %v3685
  %v3687 = vsub.f32 %v3680, 1.0
  %v3688 = vsub.f32 %v3682, 1.0
  %v3689 = vsub.f32 %v3684, 1.0
  %v3690 = vsub.f32 %v3686, 1.0
  %v3691 = vsel %vm3671, %v3555, %v3687
  %v3692 = vsel %vm3672, %v3667, %v3688
  %v3693 = vsel %vm3673, %v3557, %v3689
  %v3694 = vsel %vm3674, %v3669, %v3690
  %v3695 = vpack.c.bf16 %v3693, %v3691
  %v3696 = vpack.c.bf16 %v3694, %v3692
  %v3697 = vld [vmem:[%s3] sm:$0xf]
  %v3698 = vld [vmem:[%s3 + $0x4] sm:$0xf]
  %v3699 = vld [vmem:[%s3 + $0x8] sm:$0xf]
  %v3700 = vld [vmem:[%s3 + $0xc] sm:$0xf]
  %v3701 = vld [vmem:[%s3 + $0x10] sm:$0xf]
  %v3702 = vld [vmem:[%s3 + $0x14] sm:$0xf]
  %v3703 = vld [vmem:[%s3 + $0x18] sm:$0xf]
  %v3704 = vld [vmem:[%s3 + $0x1c] sm:$0xf]
  %v3705 = vld [vmem:[%s3 + $0x20] sm:$0xf]
  %v3706 = vld [vmem:[%s3 + $0x24] sm:$0xf]
  %v3707 = vld [vmem:[%s3 + $0x28] sm:$0xf]
  %v3708 = vld [vmem:[%s3 + $0x2c] sm:$0xf]
  %v3709 = vld [vmem:[%s3 + $0x30] sm:$0xf]
  %v3710 = vld [vmem:[%s3 + $0x34] sm:$0xf]
  %v3711 = vld [vmem:[%s3 + $0x38] sm:$0xf]
  %v3712 = vld [vmem:[%s3 + $0x3c] sm:$0xf]
  %v3713 = vld [vmem:[%s3 + $0x40] sm:$0xf]
  %v3714 = vld [vmem:[%s3 + $0x44] sm:$0xf]
  %v3715 = vld [vmem:[%s3 + $0x48] sm:$0xf]
  %v3716 = vld [vmem:[%s3 + $0x4c] sm:$0xf]
  %v3717 = vld [vmem:[%s3 + $0x50] sm:$0xf]
  %v3718 = vld [vmem:[%s3 + $0x54] sm:$0xf]
  %v3719 = vld [vmem:[%s3 + $0x58] sm:$0xf]
  %v3720 = vld [vmem:[%s3 + $0x5c] sm:$0xf]
  %v3721 = vld [vmem:[%s3 + $0x60] sm:$0xf]
  %v3722 = vld [vmem:[%s3 + $0x64] sm:$0xf]
  %v3723 = vld [vmem:[%s3 + $0x68] sm:$0xf]
  %v3724 = vld [vmem:[%s3 + $0x6c] sm:$0xf]
  %v3725 = vld [vmem:[%s3 + $0x70] sm:$0xf]
  %v3726 = vld [vmem:[%s3 + $0x74] sm:$0xf]
  %v3727 = vld [vmem:[%s3 + $0x78] sm:$0xf]
  %v3728 = vld [vmem:[%s3 + $0x7c] sm:$0xf]
  %v3761 = vunpack.c.l.b16 %v3697
  %v3762 = vunpack.c.l.b16 %v3698
  %v3763 = vunpack.c.l.b16 %v3699
  %v3764 = vunpack.c.l.b16 %v3700
  %v3765 = vunpack.c.l.b16 %v3701
  %v3766 = vunpack.c.l.b16 %v3702
  %v3767 = vunpack.c.l.b16 %v3703
  %v3768 = vunpack.c.l.b16 %v3704
  %v3769 = vunpack.c.l.b16 %v3705
  %v3770 = vunpack.c.l.b16 %v3706
  %v3771 = vunpack.c.l.b16 %v3707
  %v3772 = vunpack.c.l.b16 %v3708
  %v3773 = vunpack.c.l.b16 %v3709
  %v3774 = vunpack.c.l.b16 %v3710
  %v3775 = vunpack.c.l.b16 %v3711
  %v3776 = vunpack.c.l.b16 %v3712
  %v3777 = vunpack.c.l.b16 %v3713
  %v3778 = vunpack.c.l.b16 %v3714
  %v3779 = vunpack.c.l.b16 %v3715
  %v3780 = vunpack.c.l.b16 %v3716
  %v3781 = vunpack.c.l.b16 %v3717
  %v3782 = vunpack.c.l.b16 %v3718
  %v3783 = vunpack.c.l.b16 %v3719
  %v3784 = vunpack.c.l.b16 %v3720
  %v3785 = vunpack.c.l.b16 %v3721
  %v3786 = vunpack.c.l.b16 %v3722
  %v3787 = vunpack.c.l.b16 %v3723
  %v3788 = vunpack.c.l.b16 %v3724
  %v3789 = vunpack.c.l.b16 %v3725
  %v3790 = vunpack.c.l.b16 %v3726
  %v3791 = vunpack.c.l.b16 %v3727
  %v3792 = vunpack.c.l.b16 %v3728
  %v3793 = vpack.c.b16 %v3762, %v3761
  %v3794 = vpack.c.b16 %v3764, %v3763
  %v3795 = vpack.c.b16 %v3766, %v3765
  %v3796 = vpack.c.b16 %v3768, %v3767
  %v3797 = vpack.c.b16 %v3770, %v3769
  %v3798 = vpack.c.b16 %v3772, %v3771
  %v3799 = vpack.c.b16 %v3774, %v3773
  %v3800 = vpack.c.b16 %v3776, %v3775
  %v3801 = vpack.c.b16 %v3778, %v3777
  %v3802 = vpack.c.b16 %v3780, %v3779
  %v3803 = vpack.c.b16 %v3782, %v3781
  %v3804 = vpack.c.b16 %v3784, %v3783
  %v3805 = vpack.c.b16 %v3786, %v3785
  %v3806 = vpack.c.b16 %v3788, %v3787
  %v3807 = vpack.c.b16 %v3790, %v3789
  %v3808 = vpack.c.b16 %v3792, %v3791
  %3825 = vmatpush.bf16.msra.mxu0 %v3800
  %3826 = vmatpush.bf16.msra.mxu0 %v3799
  %3827 = vmatpush.bf16.msra.mxu0 %v3798
  %3828 = vmatpush.bf16.msra.mxu0 %v3797
  %3829 = vmatpush.bf16.msra.mxu0 %v3796
  %3830 = vmatpush.bf16.msra.mxu0 %v3795
  %3831 = vmatpush.bf16.msra.mxu0 %v3794
  %3832 = vmatpush.bf16.msra.mxu0 %v3793
  %3833 = vmatmul.bf16.gmra.mxu0 %v3695
  %v3834 = vpop.f32.mrf.mxu0
  %v3835 = vadd.f32 0.0, %v3834
  %v3836 = vpop.f32.mrf.mxu0
  %v3837 = vadd.f32 0.0, %v3836
  %3838 = vdwg.mxu0
  %3839 = vmatpush.bf16.msra.mxu0 %v3808
  %3840 = vmatpush.bf16.msra.mxu0 %v3807
  %3841 = vmatpush.bf16.msra.mxu0 %v3806
  %3842 = vmatpush.bf16.msra.mxu0 %v3805
  %3843 = vmatpush.bf16.msra.mxu0 %v3804
  %3844 = vmatpush.bf16.msra.mxu0 %v3803
  %3845 = vmatpush.bf16.msra.mxu0 %v3802
  %3846 = vmatpush.bf16.msra.mxu0 %v3801
  %3847 = vmatmul.bf16.gmra.mxu0 %v3696
  %v3848 = vpop.f32.mrf.mxu0
  %v3849 = vadd.f32 %v3835, %v3848
  %v3850 = vpop.f32.mrf.mxu0
  %v3851 = vadd.f32 %v3837, %v3850
  %3852 = vdwg.mxu0
  %vm3853 = vcmask 523264
  %3854 = vst.msk [vmem:[#allocation3] sm:$0xff] %vm3853, %v3849
  %3855 = vst.msk [vmem:[#allocation3 + $0x8] sm:$0xff] %vm3853, %v3851
  %vm3856 = vcmask 392192
  %3857 = vst.msk [vmem:[#allocation4] sm:$0xff] %vm3856, 0.0
  %3858 = vst.msk [vmem:[#allocation4 + $0x8] sm:$0xff] %vm3856, 0.0
  %v3859 = vld [vmem:[%s4] sm:$0xff]
  %v3860 = vld [vmem:[%s4 + $0x8] sm:$0xff]
  %v3861 = vld [vmem:[%s5] sm:$0xff]
  %v3862 = vld [vmem:[%s5 + $0x8] sm:$0xff]
  %v3863 = vld [vmem:[#allocation3] sm:$0xff]
  %v3864 = vld [vmem:[#allocation3 + $0x8] sm:$0xff]
  %3867 = vrot.lane.b32.xlu0 %v3863, 7
  %v3868 = vpop.permute.xlu0 %3867
  %3869 = vrot.lane.b32.xlu0 %v3864, 7
  %v3870 = vpop.permute.xlu0 %3869
  %vm3873 = vcmask 89144
  %3874 = vst.msk [vmem:[#allocation4] sm:$0xff] %vm3873, %v3868
  %3875 = vst.msk [vmem:[#allocation4 + $0x8] sm:$0xff] %vm3873, %v3870
  %v3876 = vld [vmem:[#allocation4] sm:$0xff]
  %v3877 = vld [vmem:[#allocation4 + $0x8] sm:$0xff]
  %3879 = vset.pattern.permute.xlu0 0
  %3880 = vperm.xlu0 %3879, %v3859
  %v3881 = vpop.permute.xlu0 %3880
  %3884 = vset.pattern.permute.xlu0 0
  %3885 = vperm.xlu0 %3884, %v3860
  %v3886 = vpop.permute.xlu0 %3885
  %v3888 = vmul.f32 %v3881, %v3876
  %v3889 = vmul.f32 %v3886, %v3877
  %v3890 = vadd.f32 %v3888, 0.0
  %v3891 = vadd.f32 %v3889, 0.0
  %3892 = vset.pattern.permute.xlu0 1
  %3893 = vperm.xlu0 %3892, %v3859
  %v3894 = vpop.permute.xlu0 %3893
  %3896 = vset.pattern.permute.xlu0 1
  %3897 = vperm.xlu0 %3896, %v3860
  %v3898 = vpop.permute.xlu0 %3897
  %v3900 = vmul.f32 %v3894, %v3876
  %v3901 = vmul.f32 %v3898, %v3877
  %3904 = vrot.lane.b32.xlu0 %v3900, 127
  %v3905 = vpop.permute.xlu0 %3904
  %3906 = vrot.lane.b32.xlu0 %v3901, 127
  %v3907 = vpop.permute.xlu0 %3906
  %v3910 = vadd.f32 %v3890, %v3905
  %v3911 = vadd.f32 %v3891, %v3907
  %3912 = vset.pattern.permute.xlu0 2
  %3913 = vperm.xlu0 %3912, %v3859
  %v3914 = vpop.permute.xlu0 %3913
  %3916 = vset.pattern.permute.xlu0 2
  %3917 = vperm.xlu0 %3916, %v3860
  %v3918 = vpop.permute.xlu0 %3917
  %v3920 = vmul.f32 %v3914, %v3876
  %v3921 = vmul.f32 %v3918, %v3877
  %3924 = vrot.lane.b32.xlu0 %v3920, 126
  %v3925 = vpop.permute.xlu0 %3924
  %3926 = vrot.lane.b32.xlu0 %v3921, 126
  %v3927 = vpop.permute.xlu0 %3926
  %v3930 = vadd.f32 %v3910, %v3925
  %v3931 = vadd.f32 %v3911, %v3927
  %3932 = vset.pattern.permute.xlu0 3
  %3933 = vperm.xlu0 %3932, %v3859
  %v3934 = vpop.permute.xlu0 %3933
  %3936 = vset.pattern.permute.xlu0 3
  %3937 = vperm.xlu0 %3936, %v3860
  %v3938 = vpop.permute.xlu0 %3937
  %v3940 = vmul.f32 %v3934, %v3876
  %v3941 = vmul.f32 %v3938, %v3877
  %3944 = vrot.lane.b32.xlu0 %v3940, 125
  %v3945 = vpop.permute.xlu0 %3944
  %3946 = vrot.lane.b32.xlu0 %v3941, 125
  %v3947 = vpop.permute.xlu0 %3946
  %v3950 = vadd.f32 %v3930, %v3945
  %v3951 = vadd.f32 %v3931, %v3947
  %3952 = vset.pattern.permute.xlu0 4
  %3953 = vperm.xlu0 %3952, %v3859
  %v3954 = vpop.permute.xlu0 %3953
  %3956 = vset.pattern.permute.xlu0 4
  %3957 = vperm.xlu0 %3956, %v3860
  %v3958 = vpop.permute.xlu0 %3957
  %v3960 = vmul.f32 %v3954, %v3876
  %v3961 = vmul.f32 %v3958, %v3877
  %3964 = vrot.lane.b32.xlu0 %v3960, 124
  %v3965 = vpop.permute.xlu0 %3964
  %3966 = vrot.lane.b32.xlu0 %v3961, 124
  %v3967 = vpop.permute.xlu0 %3966
  %v3970 = vadd.f32 %v3950, %v3965
  %v3971 = vadd.f32 %v3951, %v3967
  %3972 = vset.pattern.permute.xlu0 5
  %3973 = vperm.xlu0 %3972, %v3859
  %v3974 = vpop.permute.xlu0 %3973
  %3976 = vset.pattern.permute.xlu0 5
  %3977 = vperm.xlu0 %3976, %v3860
  %v3978 = vpop.permute.xlu0 %3977
  %v3980 = vmul.f32 %v3974, %v3876
  %v3981 = vmul.f32 %v3978, %v3877
  %3984 = vrot.lane.b32.xlu0 %v3980, 123
  %v3985 = vpop.permute.xlu0 %3984
  %3986 = vrot.lane.b32.xlu0 %v3981, 123
  %v3987 = vpop.permute.xlu0 %3986
  %v3990 = vadd.f32 %v3970, %v3985
  %v3991 = vadd.f32 %v3971, %v3987
  %3992 = vset.pattern.permute.xlu0 6
  %3993 = vperm.xlu0 %3992, %v3859
  %v3994 = vpop.permute.xlu0 %3993
  %3996 = vset.pattern.permute.xlu0 6
  %3997 = vperm.xlu0 %3996, %v3860
  %v3998 = vpop.permute.xlu0 %3997
  %v4000 = vmul.f32 %v3994, %v3876
  %v4001 = vmul.f32 %v3998, %v3877
  %4004 = vrot.lane.b32.xlu0 %v4000, 122
  %v4005 = vpop.permute.xlu0 %4004
  %4006 = vrot.lane.b32.xlu0 %v4001, 122
  %v4007 = vpop.permute.xlu0 %4006
  %v4010 = vadd.f32 %v3990, %v4005
  %v4011 = vadd.f32 %v3991, %v4007
  %4012 = vset.pattern.permute.xlu0 7
  %4013 = vperm.xlu0 %4012, %v3859
  %v4014 = vpop.permute.xlu0 %4013
  %4016 = vset.pattern.permute.xlu0 7
  %4017 = vperm.xlu0 %4016, %v3860
  %v4018 = vpop.permute.xlu0 %4017
  %v4020 = vmul.f32 %v4014, %v3876
  %v4021 = vmul.f32 %v4018, %v3877
  %4024 = vrot.lane.b32.xlu0 %v4020, 121
  %v4025 = vpop.permute.xlu0 %4024
  %4026 = vrot.lane.b32.xlu0 %v4021, 121
  %v4027 = vpop.permute.xlu0 %4026
  %v4030 = vadd.f32 %v4010, %v4025
  %v4031 = vadd.f32 %v4011, %v4027
  %4032 = vset.pattern.permute.xlu0 8
  %4033 = vperm.xlu0 %4032, %v3859
  %v4034 = vpop.permute.xlu0 %4033
  %4036 = vset.pattern.permute.xlu0 8
  %4037 = vperm.xlu0 %4036, %v3860
  %v4038 = vpop.permute.xlu0 %4037
  %v4040 = vmul.f32 %v4034, %v3876
  %v4041 = vmul.f32 %v4038, %v3877
  %4044 = vrot.lane.b32.xlu0 %v4040, 120
  %v4045 = vpop.permute.xlu0 %4044
  %4046 = vrot.lane.b32.xlu0 %v4041, 120
  %v4047 = vpop.permute.xlu0 %4046
  %v4050 = vadd.f32 %v4030, %v4045
  %v4051 = vadd.f32 %v4031, %v4047
  %4052 = vset.pattern.permute.xlu0 9
  %4053 = vperm.xlu0 %4052, %v3859
  %v4054 = vpop.permute.xlu0 %4053
  %4056 = vset.pattern.permute.xlu0 9
  %4057 = vperm.xlu0 %4056, %v3860
  %v4058 = vpop.permute.xlu0 %4057
  %v4060 = vmul.f32 %v4054, %v3876
  %v4061 = vmul.f32 %v4058, %v3877
  %4064 = vrot.lane.b32.xlu0 %v4060, 119
  %v4065 = vpop.permute.xlu0 %4064
  %4066 = vrot.lane.b32.xlu0 %v4061, 119
  %v4067 = vpop.permute.xlu0 %4066
  %v4070 = vadd.f32 %v4050, %v4065
  %v4071 = vadd.f32 %v4051, %v4067
  %4072 = vset.pattern.permute.xlu0 10
  %4073 = vperm.xlu0 %4072, %v3859
  %v4074 = vpop.permute.xlu0 %4073
  %4076 = vset.pattern.permute.xlu0 10
  %4077 = vperm.xlu0 %4076, %v3860
  %v4078 = vpop.permute.xlu0 %4077
  %v4080 = vmul.f32 %v4074, %v3876
  %v4081 = vmul.f32 %v4078, %v3877
  %4084 = vrot.lane.b32.xlu0 %v4080, 118
  %v4085 = vpop.permute.xlu0 %4084
  %4086 = vrot.lane.b32.xlu0 %v4081, 118
  %v4087 = vpop.permute.xlu0 %4086
  %v4090 = vadd.f32 %v4070, %v4085
  %v4091 = vadd.f32 %v4071, %v4087
  %4092 = vset.pattern.permute.xlu0 11
  %4093 = vperm.xlu0 %4092, %v3859
  %v4094 = vpop.permute.xlu0 %4093
  %4096 = vset.pattern.permute.xlu0 11
  %4097 = vperm.xlu0 %4096, %v3860
  %v4098 = vpop.permute.xlu0 %4097
  %v4100 = vmul.f32 %v4094, %v3876
  %v4101 = vmul.f32 %v4098, %v3877
  %4104 = vrot.lane.b32.xlu0 %v4100, 117
  %v4105 = vpop.permute.xlu0 %4104
  %4106 = vrot.lane.b32.xlu0 %v4101, 117
  %v4107 = vpop.permute.xlu0 %4106
  %v4110 = vadd.f32 %v4090, %v4105
  %v4111 = vadd.f32 %v4091, %v4107
  %4112 = vset.pattern.permute.xlu0 12
  %4113 = vperm.xlu0 %4112, %v3859
  %v4114 = vpop.permute.xlu0 %4113
  %4116 = vset.pattern.permute.xlu0 12
  %4117 = vperm.xlu0 %4116, %v3860
  %v4118 = vpop.permute.xlu0 %4117
  %v4120 = vmul.f32 %v4114, %v3876
  %v4121 = vmul.f32 %v4118, %v3877
  %4124 = vrot.lane.b32.xlu0 %v4120, 116
  %v4125 = vpop.permute.xlu0 %4124
  %4126 = vrot.lane.b32.xlu0 %v4121, 116
  %v4127 = vpop.permute.xlu0 %4126
  %v4130 = vadd.f32 %v4110, %v4125
  %v4131 = vadd.f32 %v4111, %v4127
  %4132 = vset.pattern.permute.xlu0 13
  %4133 = vperm.xlu0 %4132, %v3859
  %v4134 = vpop.permute.xlu0 %4133
  %4136 = vset.pattern.permute.xlu0 13
  %4137 = vperm.xlu0 %4136, %v3860
  %v4138 = vpop.permute.xlu0 %4137
  %v4140 = vmul.f32 %v4134, %v3876
  %v4141 = vmul.f32 %v4138, %v3877
  %4144 = vrot.lane.b32.xlu0 %v4140, 115
  %v4145 = vpop.permute.xlu0 %4144
  %4146 = vrot.lane.b32.xlu0 %v4141, 115
  %v4147 = vpop.permute.xlu0 %4146
  %v4150 = vadd.f32 %v4130, %v4145
  %v4151 = vadd.f32 %v4131, %v4147
  %4152 = vset.pattern.permute.xlu0 14
  %4153 = vperm.xlu0 %4152, %v3859
  %v4154 = vpop.permute.xlu0 %4153
  %4156 = vset.pattern.permute.xlu0 14
  %4157 = vperm.xlu0 %4156, %v3860
  %v4158 = vpop.permute.xlu0 %4157
  %v4160 = vmul.f32 %v4154, %v3876
  %v4161 = vmul.f32 %v4158, %v3877
  %4164 = vrot.lane.b32.xlu0 %v4160, 114
  %v4165 = vpop.permute.xlu0 %4164
  %4166 = vrot.lane.b32.xlu0 %v4161, 114
  %v4167 = vpop.permute.xlu0 %4166
  %v4170 = vadd.f32 %v4150, %v4165
  %v4171 = vadd.f32 %v4151, %v4167
  %4172 = vset.pattern.permute.xlu0 15
  %4173 = vperm.xlu0 %4172, %v3859
  %v4174 = vpop.permute.xlu0 %4173
  %4176 = vset.pattern.permute.xlu0 15
  %4177 = vperm.xlu0 %4176, %v3860
  %v4178 = vpop.permute.xlu0 %4177
  %v4180 = vmul.f32 %v4174, %v3876
  %v4181 = vmul.f32 %v4178, %v3877
  %4184 = vrot.lane.b32.xlu0 %v4180, 113
  %v4185 = vpop.permute.xlu0 %4184
  %4186 = vrot.lane.b32.xlu0 %v4181, 113
  %v4187 = vpop.permute.xlu0 %4186
  %v4190 = vadd.f32 %v4170, %v4185
  %v4191 = vadd.f32 %v4171, %v4187
  %4193 = vset.pattern.permute.xlu0 0
  %4194 = vperm.xlu0 %4193, %v3861
  %v4195 = vpop.permute.xlu0 %4194
  %4198 = vset.pattern.permute.xlu0 0
  %4199 = vperm.xlu0 %4198, %v3862
  %v4200 = vpop.permute.xlu0 %4199
  %v4202 = vadd.f32 %v4190, %v4195
  %v4203 = vadd.f32 %v4191, %v4200
  %vm4204 = vcmp.gt.f32.partialorder %v4202, 0.0
  %vm4205 = vcmp.gt.f32.partialorder %v4203, 0.0
  %v4206 = vmin.f32 %v4202, 0.0
  %v4207 = vmin.f32 %v4203, 0.0
  %v4208 = vmul.f32 %v4206, 1.442695
  %v4209 = vpow.pop %v4208
  %v4210 = vmul.f32 %v4207, 1.442695
  %v4211 = vpow.pop %v4210
  %v4212 = vsub.f32 %v4209, 1.0
  %v4213 = vsub.f32 %v4211, 1.0
  %v4214 = vsel %vm4204, %v4202, %v4212
  %v4215 = vsel %vm4205, %v4203, %v4213
  %vm4216 = vcmask 261120
  %4217 = vst.msk [vmem:[%s6] sm:$0xff] %vm4216, %v4214
  %4218 = vst.msk [vmem:[%s6 + $0x8] sm:$0xff] %vm4216, %v4215
  %v4219 = vld [vmem:[#allocation3] sm:$0xff]
  %v4220 = vld [vmem:[#allocation3 + $0x8] sm:$0xff]
  %4223 = vrot.lane.b32.xlu0 %v4219, 103
  %v4224 = vpop.permute.xlu0 %4223
  %4225 = vrot.lane.b32.xlu0 %v4220, 103
  %v4226 = vpop.permute.xlu0 %4225
  %4229 = vst.msk [vmem:[#allocation4] sm:$0xff] %vm3873, %v4224
  %4230 = vst.msk [vmem:[#allocation4 + $0x8] sm:$0xff] %vm3873, %v4226
  %v4231 = vld [vmem:[#allocation4] sm:$0xff]
  %v4232 = vld [vmem:[#allocation4 + $0x8] sm:$0xff]
  %v4233 = vmul.f32 %v3881, %v4231
  %v4234 = vmul.f32 %v3886, %v4232
  %v4235 = vadd.f32 %v4233, 0.0
  %v4236 = vadd.f32 %v4234, 0.0
  %v4237 = vmul.f32 %v3894, %v4231
  %v4238 = vmul.f32 %v3898, %v4232
  %4241 = vrot.lane.b32.xlu0 %v4237, 127
  %v4242 = vpop.permute.xlu0 %4241
  %4243 = vrot.lane.b32.xlu0 %v4238, 127
  %v4244 = vpop.permute.xlu0 %4243
  %v4247 = vadd.f32 %v4235, %v4242
  %v4248 = vadd.f32 %v4236, %v4244
  %v4249 = vmul.f32 %v3914, %v4231
  %v4250 = vmul.f32 %v3918, %v4232
  %4253 = vrot.lane.b32.xlu0 %v4249, 126
  %v4254 = vpop.permute.xlu0 %4253
  %4255 = vrot.lane.b32.xlu0 %v4250, 126
  %v4256 = vpop.permute.xlu0 %4255
  %v4259 = vadd.f32 %v4247, %v4254
  %v4260 = vadd.f32 %v4248, %v4256
  %v4261 = vmul.f32 %v3934, %v4231
  %v4262 = vmul.f32 %v3938, %v4232
  %4265 = vrot.lane.b32.xlu0 %v4261, 125
  %v4266 = vpop.permute.xlu0 %4265
  %4267 = vrot.lane.b32.xlu0 %v4262, 125
  %v4268 = vpop.permute.xlu0 %4267
  %v4271 = vadd.f32 %v4259, %v4266
  %v4272 = vadd.f32 %v4260, %v4268
  %v4273 = vmul.f32 %v3954, %v4231
  %v4274 = vmul.f32 %v3958, %v4232
  %4277 = vrot.lane.b32.xlu0 %v4273, 124
  %v4278 = vpop.permute.xlu0 %4277
  %4279 = vrot.lane.b32.xlu0 %v4274, 124
  %v4280 = vpop.permute.xlu0 %4279
  %v4283 = vadd.f32 %v4271, %v4278
  %v4284 = vadd.f32 %v4272, %v4280
  %v4285 = vmul.f32 %v3974, %v4231
  %v4286 = vmul.f32 %v3978, %v4232
  %4289 = vrot.lane.b32.xlu0 %v4285, 123
  %v4290 = vpop.permute.xlu0 %4289
  %4291 = vrot.lane.b32.xlu0 %v4286, 123
  %v4292 = vpop.permute.xlu0 %4291
  %v4295 = vadd.f32 %v4283, %v4290
  %v4296 = vadd.f32 %v4284, %v4292
  %v4297 = vmul.f32 %v3994, %v4231
  %v4298 = vmul.f32 %v3998, %v4232
  %4301 = vrot.lane.b32.xlu0 %v4297, 122
  %v4302 = vpop.permute.xlu0 %4301
  %4303 = vrot.lane.b32.xlu0 %v4298, 122
  %v4304 = vpop.permute.xlu0 %4303
  %v4307 = vadd.f32 %v4295, %v4302
  %v4308 = vadd.f32 %v4296, %v4304
  %v4309 = vmul.f32 %v4014, %v4231
  %v4310 = vmul.f32 %v4018, %v4232
  %4313 = vrot.lane.b32.xlu0 %v4309, 121
  %v4314 = vpop.permute.xlu0 %4313
  %4315 = vrot.lane.b32.xlu0 %v4310, 121
  %v4316 = vpop.permute.xlu0 %4315
  %v4319 = vadd.f32 %v4307, %v4314
  %v4320 = vadd.f32 %v4308, %v4316
  %v4321 = vmul.f32 %v4034, %v4231
  %v4322 = vmul.f32 %v4038, %v4232
  %4325 = vrot.lane.b32.xlu0 %v4321, 120
  %v4326 = vpop.permute.xlu0 %4325
  %4327 = vrot.lane.b32.xlu0 %v4322, 120
  %v4328 = vpop.permute.xlu0 %4327
  %v4331 = vadd.f32 %v4319, %v4326
  %v4332 = vadd.f32 %v4320, %v4328
  %v4333 = vmul.f32 %v4054, %v4231
  %v4334 = vmul.f32 %v4058, %v4232
  %4337 = vrot.lane.b32.xlu0 %v4333, 119
  %v4338 = vpop.permute.xlu0 %4337
  %4339 = vrot.lane.b32.xlu0 %v4334, 119
  %v4340 = vpop.permute.xlu0 %4339
  %v4343 = vadd.f32 %v4331, %v4338
  %v4344 = vadd.f32 %v4332, %v4340
  %v4345 = vmul.f32 %v4074, %v4231
  %v4346 = vmul.f32 %v4078, %v4232
  %4349 = vrot.lane.b32.xlu0 %v4345, 118
  %v4350 = vpop.permute.xlu0 %4349
  %4351 = vrot.lane.b32.xlu0 %v4346, 118
  %v4352 = vpop.permute.xlu0 %4351
  %v4355 = vadd.f32 %v4343, %v4350
  %v4356 = vadd.f32 %v4344, %v4352
  %v4357 = vmul.f32 %v4094, %v4231
  %v4358 = vmul.f32 %v4098, %v4232
  %4361 = vrot.lane.b32.xlu0 %v4357, 117
  %v4362 = vpop.permute.xlu0 %4361
  %4363 = vrot.lane.b32.xlu0 %v4358, 117
  %v4364 = vpop.permute.xlu0 %4363
  %v4367 = vadd.f32 %v4355, %v4362
  %v4368 = vadd.f32 %v4356, %v4364
  %v4369 = vmul.f32 %v4114, %v4231
  %v4370 = vmul.f32 %v4118, %v4232
  %4373 = vrot.lane.b32.xlu0 %v4369, 116
  %v4374 = vpop.permute.xlu0 %4373
  %4375 = vrot.lane.b32.xlu0 %v4370, 116
  %v4376 = vpop.permute.xlu0 %4375
  %v4379 = vadd.f32 %v4367, %v4374
  %v4380 = vadd.f32 %v4368, %v4376
  %v4381 = vmul.f32 %v4134, %v4231
  %v4382 = vmul.f32 %v4138, %v4232
  %4385 = vrot.lane.b32.xlu0 %v4381, 115
  %v4386 = vpop.permute.xlu0 %4385
  %4387 = vrot.lane.b32.xlu0 %v4382, 115
  %v4388 = vpop.permute.xlu0 %4387
  %v4391 = vadd.f32 %v4379, %v4386
  %v4392 = vadd.f32 %v4380, %v4388
  %v4393 = vmul.f32 %v4154, %v4231
  %v4394 = vmul.f32 %v4158, %v4232
  %4397 = vrot.lane.b32.xlu0 %v4393, 114
  %v4398 = vpop.permute.xlu0 %4397
  %4399 = vrot.lane.b32.xlu0 %v4394, 114
  %v4400 = vpop.permute.xlu0 %4399
  %v4403 = vadd.f32 %v4391, %v4398
  %v4404 = vadd.f32 %v4392, %v4400
  %v4405 = vmul.f32 %v4174, %v4231
  %v4406 = vmul.f32 %v4178, %v4232
  %4409 = vrot.lane.b32.xlu0 %v4405, 113
  %v4410 = vpop.permute.xlu0 %4409
  %4411 = vrot.lane.b32.xlu0 %v4406, 113
  %v4412 = vpop.permute.xlu0 %4411
  %v4415 = vadd.f32 %v4403, %v4410
  %v4416 = vadd.f32 %v4404, %v4412
  %v4417 = vadd.f32 %v4415, %v4195
  %v4418 = vadd.f32 %v4416, %v4200
  %vm4419 = vcmp.gt.f32.partialorder %v4417, 0.0
  %vm4420 = vcmp.gt.f32.partialorder %v4418, 0.0
  %v4421 = vmin.f32 %v4417, 0.0
  %v4422 = vmin.f32 %v4418, 0.0
  %v4423 = vmul.f32 %v4421, 1.442695
  %v4424 = vpow.pop %v4423
  %v4425 = vmul.f32 %v4422, 1.442695
  %v4426 = vpow.pop %v4425
  %v4427 = vsub.f32 %v4424, 1.0
  %v4428 = vsub.f32 %v4426, 1.0
  %v4429 = vsel %vm4419, %v4417, %v4427
  %v4430 = vsel %vm4420, %v4418, %v4428
  %s4431 = scalar_lea.vmem %s6, 16
  %4432 = vst.msk [vmem:[%s4431] sm:$0xff] %vm4216, %v4429
  %4433 = vst.msk [vmem:[%s4431 + $0x8] sm:$0xff] %vm4216, %v4430
  // Predicated region
  $region26: #{patch_embedding_forward.1} parent=0 // pred_check
    _
  $region27: #{patch_embedding_forward.1} parent=0 // pred_check_branch
    %4435 = sbr.rel (0) target = $region29
  $region28: #{patch_embedding_forward.1} parent=0 // pred_region
    _
  $region29: #{patch_embedding_forward.1} parent=0 // pred_fallthru
    _
  // Predicated region
  $region30: #{patch_embedding_forward.1} parent=0 // pred_check
    _
  $region31: #{patch_embedding_forward.1} parent=0 // pred_check_branch
    %4437 = sbr.rel (0) target = $region33
  $region32: #{patch_embedding_forward.1} parent=0 // pred_region
    _
  $region33: #{patch_embedding_forward.1} parent=0 // pred_fallthru
    _

</llo_original>
